<compile_context>
chip_gen: v5e
topology: v5e:2x2
jax: 0.10.0
libtpu: 0.0.40
codegen_flags: <defaults>
</compile_context>

<pallas_src>
import math

import jax
import jax.numpy as jnp
from jax.experimental import pallas as pl
from jax.experimental.pallas import tpu as pltpu

# Small, module-consistent config.  The module's final tape reshape requires
# dim == n_tapes * mem_size, and dim % n_tapes == 0.
DIM = 128        # controller / model dim
N_TAPES = 4
MEM_SIZE = 32    # head_dim (mem_size)
TAPELEN = 8
SEQLEN = 8
BATCH = 2


# ---------------------------------------------------------------------------
# Single fused kernel: projections + LSTM controller + tape recurrence + output.
# All inputs/outputs are batch-major (rows b*S + s) so slices are tile aligned.
# ---------------------------------------------------------------------------
def nam_fused_kernel(x_ref, wx_ref, bx_ref, whh_ref, wa_ref, ba_ref,
                     wo_ref, bo_ref, out_ref, tape_ref, read_scr):
    BS, D = x_ref.shape
    L, BTC = tape_ref.shape
    S = read_scr.shape[0]
    B = BS // S
    TC = BTC // B
    f32 = jnp.float32
    bf16 = jnp.bfloat16

    def sig(x):
        # Numerically safe sigmoid: 0.5*(tanh(x/2)+1); tanh runs on the EUP slot.
        return 0.5 * (jnp.tanh(0.5 * x) + 1.0)

    # ----- fused input projections: [values | LSTM input transform] -----
    xa = (jnp.dot(x_ref[...], wx_ref[...], preferred_element_type=f32)
          + bx_ref[...])                       # (B*S, TC + 4D), rows b*S+s
    # values in batch-in-lanes layout: (S, B*TC), lane = b*TC + t*C + c
    values = jnp.concatenate([xa[b * S:(b + 1) * S, :TC] for b in range(B)],
                             axis=1)
    xp = xa[:, TC:]                            # (B*S, 4D)

    # ----- LSTM controller (unrolled); h rows = batch elements -----
    whh = whh_ref[...]                         # (D, 4D) bf16
    h = jnp.zeros((B, D), f32)
    c = jnp.zeros((B, D), f32)
    hs = [[] for _ in range(B)]
    for s in range(S):
        g_in = jnp.concatenate(
            [xp[b * S + s:b * S + s + 1, :] for b in range(B)], axis=0)  # (B, 4D)
        gates = g_in + jnp.dot(h.astype(bf16), whh, preferred_element_type=f32)
        i_g = sig(gates[:, 0 * D:1 * D])
        f_g = sig(gates[:, 1 * D:2 * D])
        g_g = jnp.tanh(gates[:, 2 * D:3 * D])
        o_g = sig(gates[:, 3 * D:4 * D])
        c = f_g * c + i_g * g_g
        h = o_g * jnp.tanh(c)
        for b in range(B):
            hs[b].append(h[b:b + 1, :])

    # ----- action projection (host pre-expanded -> lane-dense) -----
    wa = wa_ref[...]                           # (D, 9*TC) bf16
    acts = [jnp.dot(jnp.concatenate(hs[b], axis=0).astype(bf16), wa,
                    preferred_element_type=f32) + ba_ref[...]
            for b in range(B)]                 # B x (S, 9*TC)
    # 9 batch-in-lanes slabs of shape (S, B*TC), lane = b*TC + t*C + c
    slab = [jnp.concatenate([acts[b][:, k * TC:(k + 1) * TC] for b in range(B)],
                            axis=1) for k in range(9)]

    def softmax3(x0, x1, x2):
        m = jnp.maximum(jnp.maximum(x0, x1), x2)
        e0, e1, e2 = jnp.exp(x0 - m), jnp.exp(x1 - m), jnp.exp(x2 - m)
        inv = pl.reciprocal(e0 + e1 + e2, approx=True)
        return e0 * inv, e1 * inv, e2 * inv

    rd0, rd1, rd2 = softmax3(slab[0], slab[1], slab[2])   # read direction probs
    wd0, wd1, wd2 = softmax3(slab[3], slab[4], slab[5])   # write direction probs
    rwe0, rwe1, rwe2 = sig(slab[6]), sig(slab[7]), sig(slab[8])

    # ----- tape read/write recurrence, batch-in-lanes (L, B*TC) state -----
    pos0 = (jax.lax.broadcasted_iota(jnp.int32, (L, BTC), 0) == 0).astype(f32)
    tape = jnp.zeros((L, BTC), f32)
    rpos = pos0
    wpos = pos0
    for s in range(S):
        v = values[s:s + 1, :]                                    # (1, B*TC)
        oldval = jnp.sum(tape * wpos, axis=0, keepdims=True)      # (1, B*TC)
        wval = v * rwe1[s:s + 1, :] - oldval * rwe2[s:s + 1, :]
        tape = tape + wpos * wval
        nxt_w = pltpu.roll(wpos, shift=1, axis=0)                 # roll(+1)
        prv_w = pltpu.roll(wpos, shift=L - 1, axis=0)             # roll(-1)
        wpos = (prv_w * wd0[s:s + 1, :] + wpos * wd1[s:s + 1, :]
                + nxt_w * wd2[s:s + 1, :])
        read_scr[s:s + 1, :] = (jnp.sum(tape * rpos, axis=0, keepdims=True)
                                * rwe0[s:s + 1, :])
        nxt_r = pltpu.roll(rpos, shift=1, axis=0)
        prv_r = pltpu.roll(rpos, shift=L - 1, axis=0)
        rpos = (prv_r * rd0[s:s + 1, :] + rpos * rd1[s:s + 1, :]
                + nxt_r * rd2[s:s + 1, :])
    tape_ref[...] = tape

    # ----- output projection per batch, tile-aligned writebacks -----
    wo = wo_ref[...]                           # (TC, D) bf16
    reads = read_scr[...]                      # (S, B*TC)
    for b in range(B):
        rb = reads[:, b * TC:(b + 1) * TC].astype(bf16)           # (S, TC)
        out_ref[b * S:(b + 1) * S, :] = (
            jnp.dot(rb, wo, preferred_element_type=f32) + bo_ref[...])


# ---------------------------------------------------------------------------
# Wrapper: weight packing / expansion (jit-cached) + the single pallas_call.
# ---------------------------------------------------------------------------
def nam_turing_forward(params, inputs, tapelen):
    S, B, D = inputs.shape
    T, C = N_TAPES, MEM_SIZE
    TC = T * C
    bf16 = jnp.bfloat16

    # Batch-major rows (b*S + s) -> every per-batch slice in the kernel is aligned.
    x_bm = jnp.transpose(inputs, (1, 0, 2)).reshape(B * S, D).astype(bf16)

    # Fuse projections that consume the same input: [values | LSTM input transform].
    wx = jnp.concatenate([params['Wv'], params['W_ih']], axis=1).astype(bf16)
    bx = jnp.concatenate([params['bv'], params['b_lstm']]).reshape(1, TC + 4 * D)

    # Pre-expand the action layer to lane-dense (D, 9*TC): column k*TC + t*C + c.
    wa_r = jnp.transpose(params['Wa'].reshape(D, T, 9), (0, 2, 1))       # (D, 9, T)
    wa_exp = jnp.repeat(wa_r[..., None], C, axis=-1).reshape(D, 9 * TC).astype(bf16)
    ba_r = params['ba'].reshape(T, 9).T                                  # (9, T)
    ba_exp = jnp.repeat(ba_r[..., None], C, axis=-1).reshape(1, 9 * TC)

    out_bm, tape_flat = pl.pallas_call(
        nam_fused_kernel,
        out_shape=(jax.ShapeDtypeStruct((B * S, D), jnp.float32),
                   jax.ShapeDtypeStruct((tapelen, B * TC), jnp.float32)),
        scratch_shapes=[pltpu.VMEM((S, B * TC), jnp.float32)],
    )(x_bm, wx, bx, params['W_hh'].astype(bf16), wa_exp, ba_exp,
      params['Wo'].astype(bf16), params['bo'].reshape(1, D))

    outputs = jnp.transpose(out_bm.reshape(B, S, D), (1, 0, 2))   # (S, B, D)
    tape_out = tape_flat.reshape(tapelen, B, TC)                  # (L, B, dim)
    return outputs, tape_out


# ---------------------------------------------------------------------------
# Parameter init (deterministic, PyTorch-like uniform fan-in init).
# Weights are stored already transposed to math orientation: (in, out).
# ---------------------------------------------------------------------------
def init_params(key):
    D, T, C = DIM, N_TAPES, MEM_SIZE
    ks = jax.random.split(key, 6)

    def lin(k, fan_in, fan_out):
        k1, k2 = jax.random.split(k)
        bound = 1.0 / math.sqrt(fan_in)
        W = jax.random.uniform(k1, (fan_in, fan_out), jnp.float32, -bound, bound)
        b = jax.random.uniform(k2, (fan_out,), jnp.float32, -bound, bound)
        return W, b

    p = {}
    p['W_ih'], b_ih = lin(ks[0], D, 4 * D)       # LSTM input weights (transposed)
    p['W_hh'], b_hh = lin(ks[1], D, 4 * D)       # LSTM hidden weights (transposed)
    p['b_lstm'] = b_ih + b_hh
    p['Wa'], p['ba'] = lin(ks[2], D, 9 * T)      # actionlayer
    p['Wv'], p['bv'] = lin(ks[3], D, C * T)      # valuelayer
    p['Wo'], p['bo'] = lin(ks[4], C * T, D)      # outlayer
    return p


# ---------------------------------------------------------------------------
# Pure-JAX f32 reference (direct transcription of the PyTorch forward).
# ---------------------------------------------------------------------------
def nam_turing_reference(params, inputs, tapelen):
    S, B, D = inputs.shape
    T, C = N_TAPES, MEM_SIZE
    lin = lambda x, W, b: x @ W + b

    values = lin(inputs, params['Wv'], params['bv']).reshape(S, B, T, C)

    xp = lin(inputs, params['W_ih'], params['b_lstm'])
    h = jnp.zeros((B, D), jnp.float32)
    c = jnp.zeros((B, D), jnp.float32)
    hs = []
    for t in range(S):
        gates = xp[t] + h @ params['W_hh']
        i_g = jax.nn.sigmoid(gates[:, 0 * D:1 * D])
        f_g = jax.nn.sigmoid(gates[:, 1 * D:2 * D])
        g_g = jnp.tanh(gates[:, 2 * D:3 * D])
        o_g = jax.nn.sigmoid(gates[:, 3 * D:4 * D])
        c = f_g * c + i_g * g_g
        h = o_g * jnp.tanh(c)
        hs.append(h)
    hidden = jnp.stack(hs)

    actions = lin(hidden, params['Wa'], params['ba']).reshape(S, B, T, 9)
    dir_r = jax.nn.softmax(actions[..., 0:3], axis=-1)
    dir_w = jax.nn.softmax(actions[..., 3:6], axis=-1)
    rwe_all = jax.nn.sigmoid(actions[..., 6:9])

    tape = jnp.zeros((tapelen, B, T, C), jnp.float32)
    rpos = jnp.zeros((tapelen, B, T), jnp.float32).at[0].set(1.0)
    wpos = jnp.zeros((tapelen, B, T), jnp.float32).at[0].set(1.0)
    read_outs = []
    for t in range(S):
        rwe = rwe_all[t]
        rd = dir_r[t]
        wd = dir_w[t]
        oldval = jnp.einsum('lbtc,lbt->btc', tape, wpos)
        newmem = jnp.einsum('lbt,btc->lbtc', wpos,
                            values[t] * rwe[:, :, 1:2] - oldval * rwe[:, :, 2:3])
        tape = tape + newmem
        next_w = jnp.roll(wpos, 1, axis=0)
        prev_w = jnp.roll(wpos, -1, axis=0)
        wpos = (prev_w * wd[None, :, :, 0] + wpos * wd[None, :, :, 1]
                + next_w * wd[None, :, :, 2])
        read_out = jnp.einsum('lbtc,lbt->btc', tape, rpos * rwe[None, :, :, 0])
        read_outs.append(read_out)
        next_r = jnp.roll(rpos, 1, axis=0)
        prev_r = jnp.roll(rpos, -1, axis=0)
        rpos = (prev_r * rd[None, :, :, 0] + rpos * rd[None, :, :, 1]
                + next_r * rd[None, :, :, 2])
    outputs = jnp.stack(read_outs).reshape(S, B, T * C)
    outputs = lin(outputs, params['Wo'], params['bo'])
    return outputs, tape.reshape(tapelen, B, T * C)


if __name__ == "__main__":
    key = jax.random.PRNGKey(0)
    pkey, xkey = jax.random.split(key)
    params = init_params(pkey)
    inputs = jax.random.normal(xkey, (SEQLEN, BATCH, DIM), jnp.float32)

    # jit so the host-side weight packing / expansion / bf16 cast is compiled once.
    fwd = jax.jit(nam_turing_forward, static_argnums=2)
    outputs, tape = fwd(params, inputs, TAPELEN)
    jax.block_until_ready((outputs, tape))

    ref_out, ref_tape = nam_turing_reference(params, inputs, TAPELEN)
    assert outputs.shape == (SEQLEN, BATCH, DIM)
    assert tape.shape == (TAPELEN, BATCH, N_TAPES * MEM_SIZE)
    # Tolerance covers bf16 MXU operands (f32 accumulation) per the perf review.
    if not (jnp.allclose(outputs, ref_out, rtol=2e-2, atol=2e-2)
            and jnp.allclose(tape, ref_tape, rtol=2e-2, atol=2e-2)):
        raise AssertionError("Pallas result mismatch vs JAX reference")
    print("KERNEL_OK")
</pallas_src>

<mosaic_0001>
module attributes {stable_mosaic.version = 11 : i64} {
  func.func @nam_fused_kernel(%arg0: memref<16x128xbf16, #tpu.memory_space<vmem>>, %arg1: memref<128x640xbf16, #tpu.memory_space<vmem>>, %arg2: memref<1x640xf32, #tpu.memory_space<vmem>>, %arg3: memref<128x512xbf16, #tpu.memory_space<vmem>>, %arg4: memref<128x1152xbf16, #tpu.memory_space<vmem>>, %arg5: memref<1x1152xf32, #tpu.memory_space<vmem>>, %arg6: memref<128x128xbf16, #tpu.memory_space<vmem>>, %arg7: memref<1x128xf32, #tpu.memory_space<vmem>>, %arg8: memref<16x128xf32, #tpu.memory_space<vmem>>, %arg9: memref<8x256xf32, #tpu.memory_space<vmem>>, %arg10: memref<8x256xf32, #tpu.memory_space<vmem>>) attributes {dimension_semantics = [], scalar_prefetch = 0 : i64, scratch_operands = 1 : i64, tpu.core_type = #tpu.core_type<tc>} {
    %c0 = arith.constant 0 : index
    %c0_0 = arith.constant 0 : index
    %0 = vector.load %arg0[%c0, %c0_0] : memref<16x128xbf16, #tpu.memory_space<vmem>>, vector<16x128xbf16>
    %c0_1 = arith.constant 0 : index
    %c0_2 = arith.constant 0 : index
    %1 = vector.load %arg1[%c0_1, %c0_2] : memref<128x640xbf16, #tpu.memory_space<vmem>>, vector<128x640xbf16>
    %cst = arith.constant dense<0.000000e+00> : vector<16x640xf32>
    %2 = tpu.matmul %0, %1, %cst {dimension_numbers = #tpu.dot_dimension_numbers<[1], [0], [0], [1], [0, 0, 1, 1], [], []>} : vector<16x128xbf16>, vector<128x640xbf16>, vector<16x640xf32> -> vector<16x640xf32>
    %c0_3 = arith.constant 0 : index
    %c0_4 = arith.constant 0 : index
    %3 = vector.load %arg2[%c0_3, %c0_4] : memref<1x640xf32, #tpu.memory_space<vmem>>, vector<1x640xf32>
    %4 = vector.broadcast %3 : vector<1x640xf32> to vector<16x640xf32>
    %5 = arith.addf %2, %4 : vector<16x640xf32>
    %6 = vector.extract_strided_slice %5 {offsets = [0, 0], sizes = [8, 128], strides = [1, 1]} : vector<16x640xf32> to vector<8x128xf32>
    %7 = vector.extract_strided_slice %5 {offsets = [8, 0], sizes = [8, 128], strides = [1, 1]} : vector<16x640xf32> to vector<8x128xf32>
    %8 = tpu.concatenate %6, %7 in 1 : vector<8x128xf32>, vector<8x128xf32> -> vector<8x256xf32>
    %9 = vector.extract_strided_slice %5 {offsets = [0, 128], sizes = [16, 512], strides = [1, 1]} : vector<16x640xf32> to vector<16x512xf32>
    %c0_5 = arith.constant 0 : index
    %c0_6 = arith.constant 0 : index
    %10 = vector.load %arg3[%c0_5, %c0_6] : memref<128x512xbf16, #tpu.memory_space<vmem>>, vector<128x512xbf16>
    %cst_7 = arith.constant 0.000000e+00 : f32
    %11 = vector.broadcast %cst_7 : f32 to vector<2x128xf32>
    %cst_8 = arith.constant 0.000000e+00 : f32
    %12 = vector.broadcast %cst_8 : f32 to vector<2x128xf32>
    %13 = vector.extract_strided_slice %9 {offsets = [0, 0], sizes = [1, 512], strides = [1, 1]} : vector<16x512xf32> to vector<1x512xf32>
    %14 = vector.extract_strided_slice %9 {offsets = [8, 0], sizes = [1, 512], strides = [1, 1]} : vector<16x512xf32> to vector<1x512xf32>
    %15 = tpu.concatenate %13, %14 in 0 : vector<1x512xf32>, vector<1x512xf32> -> vector<2x512xf32>
    %16 = arith.truncf %11 : vector<2x128xf32> to vector<2x128xbf16>
    %cst_9 = arith.constant dense<0.000000e+00> : vector<2x512xf32>
    %17 = tpu.matmul %16, %10, %cst_9 {dimension_numbers = #tpu.dot_dimension_numbers<[1], [0], [0], [1], [0, 0, 1, 1], [], []>} : vector<2x128xbf16>, vector<128x512xbf16>, vector<2x512xf32> -> vector<2x512xf32>
    %18 = arith.addf %15, %17 : vector<2x512xf32>
    %19 = vector.extract_strided_slice %18 {offsets = [0, 0], sizes = [2, 128], strides = [1, 1]} : vector<2x512xf32> to vector<2x128xf32>
    %cst_10 = arith.constant 5.000000e-01 : f32
    %20 = vector.broadcast %cst_10 : f32 to vector<2x128xf32>
    %21 = arith.mulf %20, %19 : vector<2x128xf32>
    %22 = math.tanh %21 : vector<2x128xf32>
    %cst_11 = arith.constant 1.000000e+00 : f32
    %23 = vector.broadcast %cst_11 : f32 to vector<2x128xf32>
    %24 = arith.addf %22, %23 : vector<2x128xf32>
    %cst_12 = arith.constant 5.000000e-01 : f32
    %25 = vector.broadcast %cst_12 : f32 to vector<2x128xf32>
    %26 = arith.mulf %25, %24 : vector<2x128xf32>
    %27 = vector.extract_strided_slice %18 {offsets = [0, 128], sizes = [2, 128], strides = [1, 1]} : vector<2x512xf32> to vector<2x128xf32>
    %cst_13 = arith.constant 5.000000e-01 : f32
    %28 = vector.broadcast %cst_13 : f32 to vector<2x128xf32>
    %29 = arith.mulf %28, %27 : vector<2x128xf32>
    %30 = math.tanh %29 : vector<2x128xf32>
    %cst_14 = arith.constant 1.000000e+00 : f32
    %31 = vector.broadcast %cst_14 : f32 to vector<2x128xf32>
    %32 = arith.addf %30, %31 : vector<2x128xf32>
    %cst_15 = arith.constant 5.000000e-01 : f32
    %33 = vector.broadcast %cst_15 : f32 to vector<2x128xf32>
    %34 = arith.mulf %33, %32 : vector<2x128xf32>
    %35 = vector.extract_strided_slice %18 {offsets = [0, 256], sizes = [2, 128], strides = [1, 1]} : vector<2x512xf32> to vector<2x128xf32>
    %36 = math.tanh %35 : vector<2x128xf32>
    %37 = vector.extract_strided_slice %18 {offsets = [0, 384], sizes = [2, 128], strides = [1, 1]} : vector<2x512xf32> to vector<2x128xf32>
    %cst_16 = arith.constant 5.000000e-01 : f32
    %38 = vector.broadcast %cst_16 : f32 to vector<2x128xf32>
    %39 = arith.mulf %38, %37 : vector<2x128xf32>
    %40 = math.tanh %39 : vector<2x128xf32>
    %cst_17 = arith.constant 1.000000e+00 : f32
    %41 = vector.broadcast %cst_17 : f32 to vector<2x128xf32>
    %42 = arith.addf %40, %41 : vector<2x128xf32>
    %cst_18 = arith.constant 5.000000e-01 : f32
    %43 = vector.broadcast %cst_18 : f32 to vector<2x128xf32>
    %44 = arith.mulf %43, %42 : vector<2x128xf32>
    %45 = arith.mulf %34, %12 : vector<2x128xf32>
    %46 = arith.mulf %26, %36 : vector<2x128xf32>
    %47 = arith.addf %45, %46 : vector<2x128xf32>
    %48 = math.tanh %47 : vector<2x128xf32>
    %49 = arith.mulf %44, %48 : vector<2x128xf32>
    %50 = vector.extract_strided_slice %49 {offsets = [0, 0], sizes = [1, 128], strides = [1, 1]} : vector<2x128xf32> to vector<1x128xf32>
    %51 = vector.extract_strided_slice %49 {offsets = [1, 0], sizes = [1, 128], strides = [1, 1]} : vector<2x128xf32> to vector<1x128xf32>
    %52 = vector.extract_strided_slice %9 {offsets = [1, 0], sizes = [1, 512], strides = [1, 1]} : vector<16x512xf32> to vector<1x512xf32>
    %53 = vector.extract_strided_slice %9 {offsets = [9, 0], sizes = [1, 512], strides = [1, 1]} : vector<16x512xf32> to vector<1x512xf32>
    %54 = tpu.concatenate %52, %53 in 0 : vector<1x512xf32>, vector<1x512xf32> -> vector<2x512xf32>
    %55 = arith.truncf %49 : vector<2x128xf32> to vector<2x128xbf16>
    %cst_19 = arith.constant dense<0.000000e+00> : vector<2x512xf32>
    %56 = tpu.matmul %55, %10, %cst_19 {dimension_numbers = #tpu.dot_dimension_numbers<[1], [0], [0], [1], [0, 0, 1, 1], [], []>} : vector<2x128xbf16>, vector<128x512xbf16>, vector<2x512xf32> -> vector<2x512xf32>
    %57 = arith.addf %54, %56 : vector<2x512xf32>
    %58 = vector.extract_strided_slice %57 {offsets = [0, 0], sizes = [2, 128], strides = [1, 1]} : vector<2x512xf32> to vector<2x128xf32>
    %cst_20 = arith.constant 5.000000e-01 : f32
    %59 = vector.broadcast %cst_20 : f32 to vector<2x128xf32>
    %60 = arith.mulf %59, %58 : vector<2x128xf32>
    %61 = math.tanh %60 : vector<2x128xf32>
    %cst_21 = arith.constant 1.000000e+00 : f32
    %62 = vector.broadcast %cst_21 : f32 to vector<2x128xf32>
    %63 = arith.addf %61, %62 : vector<2x128xf32>
    %cst_22 = arith.constant 5.000000e-01 : f32
    %64 = vector.broadcast %cst_22 : f32 to vector<2x128xf32>
    %65 = arith.mulf %64, %63 : vector<2x128xf32>
    %66 = vector.extract_strided_slice %57 {offsets = [0, 128], sizes = [2, 128], strides = [1, 1]} : vector<2x512xf32> to vector<2x128xf32>
    %cst_23 = arith.constant 5.000000e-01 : f32
    %67 = vector.broadcast %cst_23 : f32 to vector<2x128xf32>
    %68 = arith.mulf %67, %66 : vector<2x128xf32>
    %69 = math.tanh %68 : vector<2x128xf32>
    %cst_24 = arith.constant 1.000000e+00 : f32
    %70 = vector.broadcast %cst_24 : f32 to vector<2x128xf32>
    %71 = arith.addf %69, %70 : vector<2x128xf32>
    %cst_25 = arith.constant 5.000000e-01 : f32
    %72 = vector.broadcast %cst_25 : f32 to vector<2x128xf32>
    %73 = arith.mulf %72, %71 : vector<2x128xf32>
    %74 = vector.extract_strided_slice %57 {offsets = [0, 256], sizes = [2, 128], strides = [1, 1]} : vector<2x512xf32> to vector<2x128xf32>
    %75 = math.tanh %74 : vector<2x128xf32>
    %76 = vector.extract_strided_slice %57 {offsets = [0, 384], sizes = [2, 128], strides = [1, 1]} : vector<2x512xf32> to vector<2x128xf32>
    %cst_26 = arith.constant 5.000000e-01 : f32
    %77 = vector.broadcast %cst_26 : f32 to vector<2x128xf32>
    %78 = arith.mulf %77, %76 : vector<2x128xf32>
    %79 = math.tanh %78 : vector<2x128xf32>
    %cst_27 = arith.constant 1.000000e+00 : f32
    %80 = vector.broadcast %cst_27 : f32 to vector<2x128xf32>
    %81 = arith.addf %79, %80 : vector<2x128xf32>
    %cst_28 = arith.constant 5.000000e-01 : f32
    %82 = vector.broadcast %cst_28 : f32 to vector<2x128xf32>
    %83 = arith.mulf %82, %81 : vector<2x128xf32>
    %84 = arith.mulf %73, %47 : vector<2x128xf32>
    %85 = arith.mulf %65, %75 : vector<2x128xf32>
    %86 = arith.addf %84, %85 : vector<2x128xf32>
    %87 = math.tanh %86 : vector<2x128xf32>
    %88 = arith.mulf %83, %87 : vector<2x128xf32>
    %89 = vector.extract_strided_slice %88 {offsets = [0, 0], sizes = [1, 128], strides = [1, 1]} : vector<2x128xf32> to vector<1x128xf32>
    %90 = vector.extract_strided_slice %88 {offsets = [1, 0], sizes = [1, 128], strides = [1, 1]} : vector<2x128xf32> to vector<1x128xf32>
    %91 = vector.extract_strided_slice %9 {offsets = [2, 0], sizes = [1, 512], strides = [1, 1]} : vector<16x512xf32> to vector<1x512xf32>
    %92 = vector.extract_strided_slice %9 {offsets = [10, 0], sizes = [1, 512], strides = [1, 1]} : vector<16x512xf32> to vector<1x512xf32>
    %93 = tpu.concatenate %91, %92 in 0 : vector<1x512xf32>, vector<1x512xf32> -> vector<2x512xf32>
    %94 = arith.truncf %88 : vector<2x128xf32> to vector<2x128xbf16>
    %cst_29 = arith.constant dense<0.000000e+00> : vector<2x512xf32>
    %95 = tpu.matmul %94, %10, %cst_29 {dimension_numbers = #tpu.dot_dimension_numbers<[1], [0], [0], [1], [0, 0, 1, 1], [], []>} : vector<2x128xbf16>, vector<128x512xbf16>, vector<2x512xf32> -> vector<2x512xf32>
    %96 = arith.addf %93, %95 : vector<2x512xf32>
    %97 = vector.extract_strided_slice %96 {offsets = [0, 0], sizes = [2, 128], strides = [1, 1]} : vector<2x512xf32> to vector<2x128xf32>
    %cst_30 = arith.constant 5.000000e-01 : f32
    %98 = vector.broadcast %cst_30 : f32 to vector<2x128xf32>
    %99 = arith.mulf %98, %97 : vector<2x128xf32>
    %100 = math.tanh %99 : vector<2x128xf32>
    %cst_31 = arith.constant 1.000000e+00 : f32
    %101 = vector.broadcast %cst_31 : f32 to vector<2x128xf32>
    %102 = arith.addf %100, %101 : vector<2x128xf32>
    %cst_32 = arith.constant 5.000000e-01 : f32
    %103 = vector.broadcast %cst_32 : f32 to vector<2x128xf32>
    %104 = arith.mulf %103, %102 : vector<2x128xf32>
    %105 = vector.extract_strided_slice %96 {offsets = [0, 128], sizes = [2, 128], strides = [1, 1]} : vector<2x512xf32> to vector<2x128xf32>
    %cst_33 = arith.constant 5.000000e-01 : f32
    %106 = vector.broadcast %cst_33 : f32 to vector<2x128xf32>
    %107 = arith.mulf %106, %105 : vector<2x128xf32>
    %108 = math.tanh %107 : vector<2x128xf32>
    %cst_34 = arith.constant 1.000000e+00 : f32
    %109 = vector.broadcast %cst_34 : f32 to vector<2x128xf32>
    %110 = arith.addf %108, %109 : vector<2x128xf32>
    %cst_35 = arith.constant 5.000000e-01 : f32
    %111 = vector.broadcast %cst_35 : f32 to vector<2x128xf32>
    %112 = arith.mulf %111, %110 : vector<2x128xf32>
    %113 = vector.extract_strided_slice %96 {offsets = [0, 256], sizes = [2, 128], strides = [1, 1]} : vector<2x512xf32> to vector<2x128xf32>
    %114 = math.tanh %113 : vector<2x128xf32>
    %115 = vector.extract_strided_slice %96 {offsets = [0, 384], sizes = [2, 128], strides = [1, 1]} : vector<2x512xf32> to vector<2x128xf32>
    %cst_36 = arith.constant 5.000000e-01 : f32
    %116 = vector.broadcast %cst_36 : f32 to vector<2x128xf32>
    %117 = arith.mulf %116, %115 : vector<2x128xf32>
    %118 = math.tanh %117 : vector<2x128xf32>
    %cst_37 = arith.constant 1.000000e+00 : f32
    %119 = vector.broadcast %cst_37 : f32 to vector<2x128xf32>
    %120 = arith.addf %118, %119 : vector<2x128xf32>
    %cst_38 = arith.constant 5.000000e-01 : f32
    %121 = vector.broadcast %cst_38 : f32 to vector<2x128xf32>
    %122 = arith.mulf %121, %120 : vector<2x128xf32>
    %123 = arith.mulf %112, %86 : vector<2x128xf32>
    %124 = arith.mulf %104, %114 : vector<2x128xf32>
    %125 = arith.addf %123, %124 : vector<2x128xf32>
    %126 = math.tanh %125 : vector<2x128xf32>
    %127 = arith.mulf %122, %126 : vector<2x128xf32>
    %128 = vector.extract_strided_slice %127 {offsets = [0, 0], sizes = [1, 128], strides = [1, 1]} : vector<2x128xf32> to vector<1x128xf32>
    %129 = vector.extract_strided_slice %127 {offsets = [1, 0], sizes = [1, 128], strides = [1, 1]} : vector<2x128xf32> to vector<1x128xf32>
    %130 = vector.extract_strided_slice %9 {offsets = [3, 0], sizes = [1, 512], strides = [1, 1]} : vector<16x512xf32> to vector<1x512xf32>
    %131 = vector.extract_strided_slice %9 {offsets = [11, 0], sizes = [1, 512], strides = [1, 1]} : vector<16x512xf32> to vector<1x512xf32>
    %132 = tpu.concatenate %130, %131 in 0 : vector<1x512xf32>, vector<1x512xf32> -> vector<2x512xf32>
    %133 = arith.truncf %127 : vector<2x128xf32> to vector<2x128xbf16>
    %cst_39 = arith.constant dense<0.000000e+00> : vector<2x512xf32>
    %134 = tpu.matmul %133, %10, %cst_39 {dimension_numbers = #tpu.dot_dimension_numbers<[1], [0], [0], [1], [0, 0, 1, 1], [], []>} : vector<2x128xbf16>, vector<128x512xbf16>, vector<2x512xf32> -> vector<2x512xf32>
    %135 = arith.addf %132, %134 : vector<2x512xf32>
    %136 = vector.extract_strided_slice %135 {offsets = [0, 0], sizes = [2, 128], strides = [1, 1]} : vector<2x512xf32> to vector<2x128xf32>
    %cst_40 = arith.constant 5.000000e-01 : f32
    %137 = vector.broadcast %cst_40 : f32 to vector<2x128xf32>
    %138 = arith.mulf %137, %136 : vector<2x128xf32>
    %139 = math.tanh %138 : vector<2x128xf32>
    %cst_41 = arith.constant 1.000000e+00 : f32
    %140 = vector.broadcast %cst_41 : f32 to vector<2x128xf32>
    %141 = arith.addf %139, %140 : vector<2x128xf32>
    %cst_42 = arith.constant 5.000000e-01 : f32
    %142 = vector.broadcast %cst_42 : f32 to vector<2x128xf32>
    %143 = arith.mulf %142, %141 : vector<2x128xf32>
    %144 = vector.extract_strided_slice %135 {offsets = [0, 128], sizes = [2, 128], strides = [1, 1]} : vector<2x512xf32> to vector<2x128xf32>
    %cst_43 = arith.constant 5.000000e-01 : f32
    %145 = vector.broadcast %cst_43 : f32 to vector<2x128xf32>
    %146 = arith.mulf %145, %144 : vector<2x128xf32>
    %147 = math.tanh %146 : vector<2x128xf32>
    %cst_44 = arith.constant 1.000000e+00 : f32
    %148 = vector.broadcast %cst_44 : f32 to vector<2x128xf32>
    %149 = arith.addf %147, %148 : vector<2x128xf32>
    %cst_45 = arith.constant 5.000000e-01 : f32
    %150 = vector.broadcast %cst_45 : f32 to vector<2x128xf32>
    %151 = arith.mulf %150, %149 : vector<2x128xf32>
    %152 = vector.extract_strided_slice %135 {offsets = [0, 256], sizes = [2, 128], strides = [1, 1]} : vector<2x512xf32> to vector<2x128xf32>
    %153 = math.tanh %152 : vector<2x128xf32>
    %154 = vector.extract_strided_slice %135 {offsets = [0, 384], sizes = [2, 128], strides = [1, 1]} : vector<2x512xf32> to vector<2x128xf32>
    %cst_46 = arith.constant 5.000000e-01 : f32
    %155 = vector.broadcast %cst_46 : f32 to vector<2x128xf32>
    %156 = arith.mulf %155, %154 : vector<2x128xf32>
    %157 = math.tanh %156 : vector<2x128xf32>
    %cst_47 = arith.constant 1.000000e+00 : f32
    %158 = vector.broadcast %cst_47 : f32 to vector<2x128xf32>
    %159 = arith.addf %157, %158 : vector<2x128xf32>
    %cst_48 = arith.constant 5.000000e-01 : f32
    %160 = vector.broadcast %cst_48 : f32 to vector<2x128xf32>
    %161 = arith.mulf %160, %159 : vector<2x128xf32>
    %162 = arith.mulf %151, %125 : vector<2x128xf32>
    %163 = arith.mulf %143, %153 : vector<2x128xf32>
    %164 = arith.addf %162, %163 : vector<2x128xf32>
    %165 = math.tanh %164 : vector<2x128xf32>
    %166 = arith.mulf %161, %165 : vector<2x128xf32>
    %167 = vector.extract_strided_slice %166 {offsets = [0, 0], sizes = [1, 128], strides = [1, 1]} : vector<2x128xf32> to vector<1x128xf32>
    %168 = vector.extract_strided_slice %166 {offsets = [1, 0], sizes = [1, 128], strides = [1, 1]} : vector<2x128xf32> to vector<1x128xf32>
    %169 = vector.extract_strided_slice %9 {offsets = [4, 0], sizes = [1, 512], strides = [1, 1]} : vector<16x512xf32> to vector<1x512xf32>
    %170 = vector.extract_strided_slice %9 {offsets = [12, 0], sizes = [1, 512], strides = [1, 1]} : vector<16x512xf32> to vector<1x512xf32>
    %171 = tpu.concatenate %169, %170 in 0 : vector<1x512xf32>, vector<1x512xf32> -> vector<2x512xf32>
    %172 = arith.truncf %166 : vector<2x128xf32> to vector<2x128xbf16>
    %cst_49 = arith.constant dense<0.000000e+00> : vector<2x512xf32>
    %173 = tpu.matmul %172, %10, %cst_49 {dimension_numbers = #tpu.dot_dimension_numbers<[1], [0], [0], [1], [0, 0, 1, 1], [], []>} : vector<2x128xbf16>, vector<128x512xbf16>, vector<2x512xf32> -> vector<2x512xf32>
    %174 = arith.addf %171, %173 : vector<2x512xf32>
    %175 = vector.extract_strided_slice %174 {offsets = [0, 0], sizes = [2, 128], strides = [1, 1]} : vector<2x512xf32> to vector<2x128xf32>
    %cst_50 = arith.constant 5.000000e-01 : f32
    %176 = vector.broadcast %cst_50 : f32 to vector<2x128xf32>
    %177 = arith.mulf %176, %175 : vector<2x128xf32>
    %178 = math.tanh %177 : vector<2x128xf32>
    %cst_51 = arith.constant 1.000000e+00 : f32
    %179 = vector.broadcast %cst_51 : f32 to vector<2x128xf32>
    %180 = arith.addf %178, %179 : vector<2x128xf32>
    %cst_52 = arith.constant 5.000000e-01 : f32
    %181 = vector.broadcast %cst_52 : f32 to vector<2x128xf32>
    %182 = arith.mulf %181, %180 : vector<2x128xf32>
    %183 = vector.extract_strided_slice %174 {offsets = [0, 128], sizes = [2, 128], strides = [1, 1]} : vector<2x512xf32> to vector<2x128xf32>
    %cst_53 = arith.constant 5.000000e-01 : f32
    %184 = vector.broadcast %cst_53 : f32 to vector<2x128xf32>
    %185 = arith.mulf %184, %183 : vector<2x128xf32>
    %186 = math.tanh %185 : vector<2x128xf32>
    %cst_54 = arith.constant 1.000000e+00 : f32
    %187 = vector.broadcast %cst_54 : f32 to vector<2x128xf32>
    %188 = arith.addf %186, %187 : vector<2x128xf32>
    %cst_55 = arith.constant 5.000000e-01 : f32
    %189 = vector.broadcast %cst_55 : f32 to vector<2x128xf32>
    %190 = arith.mulf %189, %188 : vector<2x128xf32>
    %191 = vector.extract_strided_slice %174 {offsets = [0, 256], sizes = [2, 128], strides = [1, 1]} : vector<2x512xf32> to vector<2x128xf32>
    %192 = math.tanh %191 : vector<2x128xf32>
    %193 = vector.extract_strided_slice %174 {offsets = [0, 384], sizes = [2, 128], strides = [1, 1]} : vector<2x512xf32> to vector<2x128xf32>
    %cst_56 = arith.constant 5.000000e-01 : f32
    %194 = vector.broadcast %cst_56 : f32 to vector<2x128xf32>
    %195 = arith.mulf %194, %193 : vector<2x128xf32>
    %196 = math.tanh %195 : vector<2x128xf32>
    %cst_57 = arith.constant 1.000000e+00 : f32
    %197 = vector.broadcast %cst_57 : f32 to vector<2x128xf32>
    %198 = arith.addf %196, %197 : vector<2x128xf32>
    %cst_58 = arith.constant 5.000000e-01 : f32
    %199 = vector.broadcast %cst_58 : f32 to vector<2x128xf32>
    %200 = arith.mulf %199, %198 : vector<2x128xf32>
    %201 = arith.mulf %190, %164 : vector<2x128xf32>
    %202 = arith.mulf %182, %192 : vector<2x128xf32>
    %203 = arith.addf %201, %202 : vector<2x128xf32>
    %204 = math.tanh %203 : vector<2x128xf32>
    %205 = arith.mulf %200, %204 : vector<2x128xf32>
    %206 = vector.extract_strided_slice %205 {offsets = [0, 0], sizes = [1, 128], strides = [1, 1]} : vector<2x128xf32> to vector<1x128xf32>
    %207 = vector.extract_strided_slice %205 {offsets = [1, 0], sizes = [1, 128], strides = [1, 1]} : vector<2x128xf32> to vector<1x128xf32>
    %208 = vector.extract_strided_slice %9 {offsets = [5, 0], sizes = [1, 512], strides = [1, 1]} : vector<16x512xf32> to vector<1x512xf32>
    %209 = vector.extract_strided_slice %9 {offsets = [13, 0], sizes = [1, 512], strides = [1, 1]} : vector<16x512xf32> to vector<1x512xf32>
    %210 = tpu.concatenate %208, %209 in 0 : vector<1x512xf32>, vector<1x512xf32> -> vector<2x512xf32>
    %211 = arith.truncf %205 : vector<2x128xf32> to vector<2x128xbf16>
    %cst_59 = arith.constant dense<0.000000e+00> : vector<2x512xf32>
    %212 = tpu.matmul %211, %10, %cst_59 {dimension_numbers = #tpu.dot_dimension_numbers<[1], [0], [0], [1], [0, 0, 1, 1], [], []>} : vector<2x128xbf16>, vector<128x512xbf16>, vector<2x512xf32> -> vector<2x512xf32>
    %213 = arith.addf %210, %212 : vector<2x512xf32>
    %214 = vector.extract_strided_slice %213 {offsets = [0, 0], sizes = [2, 128], strides = [1, 1]} : vector<2x512xf32> to vector<2x128xf32>
    %cst_60 = arith.constant 5.000000e-01 : f32
    %215 = vector.broadcast %cst_60 : f32 to vector<2x128xf32>
    %216 = arith.mulf %215, %214 : vector<2x128xf32>
    %217 = math.tanh %216 : vector<2x128xf32>
    %cst_61 = arith.constant 1.000000e+00 : f32
    %218 = vector.broadcast %cst_61 : f32 to vector<2x128xf32>
    %219 = arith.addf %217, %218 : vector<2x128xf32>
    %cst_62 = arith.constant 5.000000e-01 : f32
    %220 = vector.broadcast %cst_62 : f32 to vector<2x128xf32>
    %221 = arith.mulf %220, %219 : vector<2x128xf32>
    %222 = vector.extract_strided_slice %213 {offsets = [0, 128], sizes = [2, 128], strides = [1, 1]} : vector<2x512xf32> to vector<2x128xf32>
    %cst_63 = arith.constant 5.000000e-01 : f32
    %223 = vector.broadcast %cst_63 : f32 to vector<2x128xf32>
    %224 = arith.mulf %223, %222 : vector<2x128xf32>
    %225 = math.tanh %224 : vector<2x128xf32>
    %cst_64 = arith.constant 1.000000e+00 : f32
    %226 = vector.broadcast %cst_64 : f32 to vector<2x128xf32>
    %227 = arith.addf %225, %226 : vector<2x128xf32>
    %cst_65 = arith.constant 5.000000e-01 : f32
    %228 = vector.broadcast %cst_65 : f32 to vector<2x128xf32>
    %229 = arith.mulf %228, %227 : vector<2x128xf32>
    %230 = vector.extract_strided_slice %213 {offsets = [0, 256], sizes = [2, 128], strides = [1, 1]} : vector<2x512xf32> to vector<2x128xf32>
    %231 = math.tanh %230 : vector<2x128xf32>
    %232 = vector.extract_strided_slice %213 {offsets = [0, 384], sizes = [2, 128], strides = [1, 1]} : vector<2x512xf32> to vector<2x128xf32>
    %cst_66 = arith.constant 5.000000e-01 : f32
    %233 = vector.broadcast %cst_66 : f32 to vector<2x128xf32>
    %234 = arith.mulf %233, %232 : vector<2x128xf32>
    %235 = math.tanh %234 : vector<2x128xf32>
    %cst_67 = arith.constant 1.000000e+00 : f32
    %236 = vector.broadcast %cst_67 : f32 to vector<2x128xf32>
    %237 = arith.addf %235, %236 : vector<2x128xf32>
    %cst_68 = arith.constant 5.000000e-01 : f32
    %238 = vector.broadcast %cst_68 : f32 to vector<2x128xf32>
    %239 = arith.mulf %238, %237 : vector<2x128xf32>
    %240 = arith.mulf %229, %203 : vector<2x128xf32>
    %241 = arith.mulf %221, %231 : vector<2x128xf32>
    %242 = arith.addf %240, %241 : vector<2x128xf32>
    %243 = math.tanh %242 : vector<2x128xf32>
    %244 = arith.mulf %239, %243 : vector<2x128xf32>
    %245 = vector.extract_strided_slice %244 {offsets = [0, 0], sizes = [1, 128], strides = [1, 1]} : vector<2x128xf32> to vector<1x128xf32>
    %246 = vector.extract_strided_slice %244 {offsets = [1, 0], sizes = [1, 128], strides = [1, 1]} : vector<2x128xf32> to vector<1x128xf32>
    %247 = vector.extract_strided_slice %9 {offsets = [6, 0], sizes = [1, 512], strides = [1, 1]} : vector<16x512xf32> to vector<1x512xf32>
    %248 = vector.extract_strided_slice %9 {offsets = [14, 0], sizes = [1, 512], strides = [1, 1]} : vector<16x512xf32> to vector<1x512xf32>
    %249 = tpu.concatenate %247, %248 in 0 : vector<1x512xf32>, vector<1x512xf32> -> vector<2x512xf32>
    %250 = arith.truncf %244 : vector<2x128xf32> to vector<2x128xbf16>
    %cst_69 = arith.constant dense<0.000000e+00> : vector<2x512xf32>
    %251 = tpu.matmul %250, %10, %cst_69 {dimension_numbers = #tpu.dot_dimension_numbers<[1], [0], [0], [1], [0, 0, 1, 1], [], []>} : vector<2x128xbf16>, vector<128x512xbf16>, vector<2x512xf32> -> vector<2x512xf32>
    %252 = arith.addf %249, %251 : vector<2x512xf32>
    %253 = vector.extract_strided_slice %252 {offsets = [0, 0], sizes = [2, 128], strides = [1, 1]} : vector<2x512xf32> to vector<2x128xf32>
    %cst_70 = arith.constant 5.000000e-01 : f32
    %254 = vector.broadcast %cst_70 : f32 to vector<2x128xf32>
    %255 = arith.mulf %254, %253 : vector<2x128xf32>
    %256 = math.tanh %255 : vector<2x128xf32>
    %cst_71 = arith.constant 1.000000e+00 : f32
    %257 = vector.broadcast %cst_71 : f32 to vector<2x128xf32>
    %258 = arith.addf %256, %257 : vector<2x128xf32>
    %cst_72 = arith.constant 5.000000e-01 : f32
    %259 = vector.broadcast %cst_72 : f32 to vector<2x128xf32>
    %260 = arith.mulf %259, %258 : vector<2x128xf32>
    %261 = vector.extract_strided_slice %252 {offsets = [0, 128], sizes = [2, 128], strides = [1, 1]} : vector<2x512xf32> to vector<2x128xf32>
    %cst_73 = arith.constant 5.000000e-01 : f32
    %262 = vector.broadcast %cst_73 : f32 to vector<2x128xf32>
    %263 = arith.mulf %262, %261 : vector<2x128xf32>
    %264 = math.tanh %263 : vector<2x128xf32>
    %cst_74 = arith.constant 1.000000e+00 : f32
    %265 = vector.broadcast %cst_74 : f32 to vector<2x128xf32>
    %266 = arith.addf %264, %265 : vector<2x128xf32>
    %cst_75 = arith.constant 5.000000e-01 : f32
    %267 = vector.broadcast %cst_75 : f32 to vector<2x128xf32>
    %268 = arith.mulf %267, %266 : vector<2x128xf32>
    %269 = vector.extract_strided_slice %252 {offsets = [0, 256], sizes = [2, 128], strides = [1, 1]} : vector<2x512xf32> to vector<2x128xf32>
    %270 = math.tanh %269 : vector<2x128xf32>
    %271 = vector.extract_strided_slice %252 {offsets = [0, 384], sizes = [2, 128], strides = [1, 1]} : vector<2x512xf32> to vector<2x128xf32>
    %cst_76 = arith.constant 5.000000e-01 : f32
    %272 = vector.broadcast %cst_76 : f32 to vector<2x128xf32>
    %273 = arith.mulf %272, %271 : vector<2x128xf32>
    %274 = math.tanh %273 : vector<2x128xf32>
    %cst_77 = arith.constant 1.000000e+00 : f32
    %275 = vector.broadcast %cst_77 : f32 to vector<2x128xf32>
    %276 = arith.addf %274, %275 : vector<2x128xf32>
    %cst_78 = arith.constant 5.000000e-01 : f32
    %277 = vector.broadcast %cst_78 : f32 to vector<2x128xf32>
    %278 = arith.mulf %277, %276 : vector<2x128xf32>
    %279 = arith.mulf %268, %242 : vector<2x128xf32>
    %280 = arith.mulf %260, %270 : vector<2x128xf32>
    %281 = arith.addf %279, %280 : vector<2x128xf32>
    %282 = math.tanh %281 : vector<2x128xf32>
    %283 = arith.mulf %278, %282 : vector<2x128xf32>
    %284 = vector.extract_strided_slice %283 {offsets = [0, 0], sizes = [1, 128], strides = [1, 1]} : vector<2x128xf32> to vector<1x128xf32>
    %285 = vector.extract_strided_slice %283 {offsets = [1, 0], sizes = [1, 128], strides = [1, 1]} : vector<2x128xf32> to vector<1x128xf32>
    %286 = vector.extract_strided_slice %9 {offsets = [7, 0], sizes = [1, 512], strides = [1, 1]} : vector<16x512xf32> to vector<1x512xf32>
    %287 = vector.extract_strided_slice %9 {offsets = [15, 0], sizes = [1, 512], strides = [1, 1]} : vector<16x512xf32> to vector<1x512xf32>
    %288 = tpu.concatenate %286, %287 in 0 : vector<1x512xf32>, vector<1x512xf32> -> vector<2x512xf32>
    %289 = arith.truncf %283 : vector<2x128xf32> to vector<2x128xbf16>
    %cst_79 = arith.constant dense<0.000000e+00> : vector<2x512xf32>
    %290 = tpu.matmul %289, %10, %cst_79 {dimension_numbers = #tpu.dot_dimension_numbers<[1], [0], [0], [1], [0, 0, 1, 1], [], []>} : vector<2x128xbf16>, vector<128x512xbf16>, vector<2x512xf32> -> vector<2x512xf32>
    %291 = arith.addf %288, %290 : vector<2x512xf32>
    %292 = vector.extract_strided_slice %291 {offsets = [0, 0], sizes = [2, 128], strides = [1, 1]} : vector<2x512xf32> to vector<2x128xf32>
    %cst_80 = arith.constant 5.000000e-01 : f32
    %293 = vector.broadcast %cst_80 : f32 to vector<2x128xf32>
    %294 = arith.mulf %293, %292 : vector<2x128xf32>
    %295 = math.tanh %294 : vector<2x128xf32>
    %cst_81 = arith.constant 1.000000e+00 : f32
    %296 = vector.broadcast %cst_81 : f32 to vector<2x128xf32>
    %297 = arith.addf %295, %296 : vector<2x128xf32>
    %cst_82 = arith.constant 5.000000e-01 : f32
    %298 = vector.broadcast %cst_82 : f32 to vector<2x128xf32>
    %299 = arith.mulf %298, %297 : vector<2x128xf32>
    %300 = vector.extract_strided_slice %291 {offsets = [0, 128], sizes = [2, 128], strides = [1, 1]} : vector<2x512xf32> to vector<2x128xf32>
    %cst_83 = arith.constant 5.000000e-01 : f32
    %301 = vector.broadcast %cst_83 : f32 to vector<2x128xf32>
    %302 = arith.mulf %301, %300 : vector<2x128xf32>
    %303 = math.tanh %302 : vector<2x128xf32>
    %cst_84 = arith.constant 1.000000e+00 : f32
    %304 = vector.broadcast %cst_84 : f32 to vector<2x128xf32>
    %305 = arith.addf %303, %304 : vector<2x128xf32>
    %cst_85 = arith.constant 5.000000e-01 : f32
    %306 = vector.broadcast %cst_85 : f32 to vector<2x128xf32>
    %307 = arith.mulf %306, %305 : vector<2x128xf32>
    %308 = vector.extract_strided_slice %291 {offsets = [0, 256], sizes = [2, 128], strides = [1, 1]} : vector<2x512xf32> to vector<2x128xf32>
    %309 = math.tanh %308 : vector<2x128xf32>
    %310 = vector.extract_strided_slice %291 {offsets = [0, 384], sizes = [2, 128], strides = [1, 1]} : vector<2x512xf32> to vector<2x128xf32>
    %cst_86 = arith.constant 5.000000e-01 : f32
    %311 = vector.broadcast %cst_86 : f32 to vector<2x128xf32>
    %312 = arith.mulf %311, %310 : vector<2x128xf32>
    %313 = math.tanh %312 : vector<2x128xf32>
    %cst_87 = arith.constant 1.000000e+00 : f32
    %314 = vector.broadcast %cst_87 : f32 to vector<2x128xf32>
    %315 = arith.addf %313, %314 : vector<2x128xf32>
    %cst_88 = arith.constant 5.000000e-01 : f32
    %316 = vector.broadcast %cst_88 : f32 to vector<2x128xf32>
    %317 = arith.mulf %316, %315 : vector<2x128xf32>
    %318 = arith.mulf %307, %281 : vector<2x128xf32>
    %319 = arith.mulf %299, %309 : vector<2x128xf32>
    %320 = arith.addf %318, %319 : vector<2x128xf32>
    %321 = math.tanh %320 : vector<2x128xf32>
    %322 = arith.mulf %317, %321 : vector<2x128xf32>
    %323 = vector.extract_strided_slice %322 {offsets = [0, 0], sizes = [1, 128], strides = [1, 1]} : vector<2x128xf32> to vector<1x128xf32>
    %324 = vector.extract_strided_slice %322 {offsets = [1, 0], sizes = [1, 128], strides = [1, 1]} : vector<2x128xf32> to vector<1x128xf32>
    %c0_89 = arith.constant 0 : index
    %c0_90 = arith.constant 0 : index
    %325 = vector.load %arg4[%c0_89, %c0_90] : memref<128x1152xbf16, #tpu.memory_space<vmem>>, vector<128x1152xbf16>
    %326 = tpu.concatenate %50, %89, %128, %167, %206, %245, %284, %323 in 0 : vector<1x128xf32>, vector<1x128xf32>, vector<1x128xf32>, vector<1x128xf32>, vector<1x128xf32>, vector<1x128xf32>, vector<1x128xf32>, vector<1x128xf32> -> vector<8x128xf32>
    %327 = arith.truncf %326 : vector<8x128xf32> to vector<8x128xbf16>
    %cst_91 = arith.constant dense<0.000000e+00> : vector<8x1152xf32>
    %328 = tpu.matmul %327, %325, %cst_91 {dimension_numbers = #tpu.dot_dimension_numbers<[1], [0], [0], [1], [0, 0, 1, 1], [], []>} : vector<8x128xbf16>, vector<128x1152xbf16>, vector<8x1152xf32> -> vector<8x1152xf32>
    %c0_92 = arith.constant 0 : index
    %c0_93 = arith.constant 0 : index
    %329 = vector.load %arg5[%c0_92, %c0_93] : memref<1x1152xf32, #tpu.memory_space<vmem>>, vector<1x1152xf32>
    %330 = vector.broadcast %329 : vector<1x1152xf32> to vector<8x1152xf32>
    %331 = arith.addf %328, %330 : vector<8x1152xf32>
    %332 = tpu.concatenate %51, %90, %129, %168, %207, %246, %285, %324 in 0 : vector<1x128xf32>, vector<1x128xf32>, vector<1x128xf32>, vector<1x128xf32>, vector<1x128xf32>, vector<1x128xf32>, vector<1x128xf32>, vector<1x128xf32> -> vector<8x128xf32>
    %333 = arith.truncf %332 : vector<8x128xf32> to vector<8x128xbf16>
    %cst_94 = arith.constant dense<0.000000e+00> : vector<8x1152xf32>
    %334 = tpu.matmul %333, %325, %cst_94 {dimension_numbers = #tpu.dot_dimension_numbers<[1], [0], [0], [1], [0, 0, 1, 1], [], []>} : vector<8x128xbf16>, vector<128x1152xbf16>, vector<8x1152xf32> -> vector<8x1152xf32>
    %c0_95 = arith.constant 0 : index
    %c0_96 = arith.constant 0 : index
    %335 = vector.load %arg5[%c0_95, %c0_96] : memref<1x1152xf32, #tpu.memory_space<vmem>>, vector<1x1152xf32>
    %336 = vector.broadcast %335 : vector<1x1152xf32> to vector<8x1152xf32>
    %337 = arith.addf %334, %336 : vector<8x1152xf32>
    %338 = vector.extract_strided_slice %331 {offsets = [0, 0], sizes = [8, 128], strides = [1, 1]} : vector<8x1152xf32> to vector<8x128xf32>
    %339 = vector.extract_strided_slice %337 {offsets = [0, 0], sizes = [8, 128], strides = [1, 1]} : vector<8x1152xf32> to vector<8x128xf32>
    %340 = tpu.concatenate %338, %339 in 1 : vector<8x128xf32>, vector<8x128xf32> -> vector<8x256xf32>
    %341 = vector.extract_strided_slice %331 {offsets = [0, 128], sizes = [8, 128], strides = [1, 1]} : vector<8x1152xf32> to vector<8x128xf32>
    %342 = vector.extract_strided_slice %337 {offsets = [0, 128], sizes = [8, 128], strides = [1, 1]} : vector<8x1152xf32> to vector<8x128xf32>
    %343 = tpu.concatenate %341, %342 in 1 : vector<8x128xf32>, vector<8x128xf32> -> vector<8x256xf32>
    %344 = vector.extract_strided_slice %331 {offsets = [0, 256], sizes = [8, 128], strides = [1, 1]} : vector<8x1152xf32> to vector<8x128xf32>
    %345 = vector.extract_strided_slice %337 {offsets = [0, 256], sizes = [8, 128], strides = [1, 1]} : vector<8x1152xf32> to vector<8x128xf32>
    %346 = tpu.concatenate %344, %345 in 1 : vector<8x128xf32>, vector<8x128xf32> -> vector<8x256xf32>
    %347 = vector.extract_strided_slice %331 {offsets = [0, 384], sizes = [8, 128], strides = [1, 1]} : vector<8x1152xf32> to vector<8x128xf32>
    %348 = vector.extract_strided_slice %337 {offsets = [0, 384], sizes = [8, 128], strides = [1, 1]} : vector<8x1152xf32> to vector<8x128xf32>
    %349 = tpu.concatenate %347, %348 in 1 : vector<8x128xf32>, vector<8x128xf32> -> vector<8x256xf32>
    %350 = vector.extract_strided_slice %331 {offsets = [0, 512], sizes = [8, 128], strides = [1, 1]} : vector<8x1152xf32> to vector<8x128xf32>
    %351 = vector.extract_strided_slice %337 {offsets = [0, 512], sizes = [8, 128], strides = [1, 1]} : vector<8x1152xf32> to vector<8x128xf32>
    %352 = tpu.concatenate %350, %351 in 1 : vector<8x128xf32>, vector<8x128xf32> -> vector<8x256xf32>
    %353 = vector.extract_strided_slice %331 {offsets = [0, 640], sizes = [8, 128], strides = [1, 1]} : vector<8x1152xf32> to vector<8x128xf32>
    %354 = vector.extract_strided_slice %337 {offsets = [0, 640], sizes = [8, 128], strides = [1, 1]} : vector<8x1152xf32> to vector<8x128xf32>
    %355 = tpu.concatenate %353, %354 in 1 : vector<8x128xf32>, vector<8x128xf32> -> vector<8x256xf32>
    %356 = vector.extract_strided_slice %331 {offsets = [0, 768], sizes = [8, 128], strides = [1, 1]} : vector<8x1152xf32> to vector<8x128xf32>
    %357 = vector.extract_strided_slice %337 {offsets = [0, 768], sizes = [8, 128], strides = [1, 1]} : vector<8x1152xf32> to vector<8x128xf32>
    %358 = tpu.concatenate %356, %357 in 1 : vector<8x128xf32>, vector<8x128xf32> -> vector<8x256xf32>
    %359 = vector.extract_strided_slice %331 {offsets = [0, 896], sizes = [8, 128], strides = [1, 1]} : vector<8x1152xf32> to vector<8x128xf32>
    %360 = vector.extract_strided_slice %337 {offsets = [0, 896], sizes = [8, 128], strides = [1, 1]} : vector<8x1152xf32> to vector<8x128xf32>
    %361 = tpu.concatenate %359, %360 in 1 : vector<8x128xf32>, vector<8x128xf32> -> vector<8x256xf32>
    %362 = vector.extract_strided_slice %331 {offsets = [0, 1024], sizes = [8, 128], strides = [1, 1]} : vector<8x1152xf32> to vector<8x128xf32>
    %363 = vector.extract_strided_slice %337 {offsets = [0, 1024], sizes = [8, 128], strides = [1, 1]} : vector<8x1152xf32> to vector<8x128xf32>
    %364 = tpu.concatenate %362, %363 in 1 : vector<8x128xf32>, vector<8x128xf32> -> vector<8x256xf32>
    %365 = arith.maximumf %340, %343 : vector<8x256xf32>
    %366 = arith.maximumf %365, %346 : vector<8x256xf32>
    %367 = arith.subf %340, %366 : vector<8x256xf32>
    %368 = math.exp %367 : vector<8x256xf32>
    %369 = arith.subf %343, %366 : vector<8x256xf32>
    %370 = math.exp %369 : vector<8x256xf32>
    %371 = arith.subf %346, %366 : vector<8x256xf32>
    %372 = math.exp %371 : vector<8x256xf32>
    %373 = arith.addf %368, %370 : vector<8x256xf32>
    %374 = arith.addf %373, %372 : vector<8x256xf32>
    %375 = tpu.reciprocal %374 {approx = true} : vector<8x256xf32> -> vector<8x256xf32>
    %376 = arith.mulf %368, %375 : vector<8x256xf32>
    %377 = arith.mulf %370, %375 : vector<8x256xf32>
    %378 = arith.mulf %372, %375 : vector<8x256xf32>
    %379 = arith.maximumf %349, %352 : vector<8x256xf32>
    %380 = arith.maximumf %379, %355 : vector<8x256xf32>
    %381 = arith.subf %349, %380 : vector<8x256xf32>
    %382 = math.exp %381 : vector<8x256xf32>
    %383 = arith.subf %352, %380 : vector<8x256xf32>
    %384 = math.exp %383 : vector<8x256xf32>
    %385 = arith.subf %355, %380 : vector<8x256xf32>
    %386 = math.exp %385 : vector<8x256xf32>
    %387 = arith.addf %382, %384 : vector<8x256xf32>
    %388 = arith.addf %387, %386 : vector<8x256xf32>
    %389 = tpu.reciprocal %388 {approx = true} : vector<8x256xf32> -> vector<8x256xf32>
    %390 = arith.mulf %382, %389 : vector<8x256xf32>
    %391 = arith.mulf %384, %389 : vector<8x256xf32>
    %392 = arith.mulf %386, %389 : vector<8x256xf32>
    %cst_97 = arith.constant 5.000000e-01 : f32
    %393 = vector.broadcast %cst_97 : f32 to vector<8x256xf32>
    %394 = arith.mulf %393, %358 : vector<8x256xf32>
    %395 = math.tanh %394 : vector<8x256xf32>
    %cst_98 = arith.constant 1.000000e+00 : f32
    %396 = vector.broadcast %cst_98 : f32 to vector<8x256xf32>
    %397 = arith.addf %395, %396 : vector<8x256xf32>
    %cst_99 = arith.constant 5.000000e-01 : f32
    %398 = vector.broadcast %cst_99 : f32 to vector<8x256xf32>
    %399 = arith.mulf %398, %397 : vector<8x256xf32>
    %cst_100 = arith.constant 5.000000e-01 : f32
    %400 = vector.broadcast %cst_100 : f32 to vector<8x256xf32>
    %401 = arith.mulf %400, %361 : vector<8x256xf32>
    %402 = math.tanh %401 : vector<8x256xf32>
    %cst_101 = arith.constant 1.000000e+00 : f32
    %403 = vector.broadcast %cst_101 : f32 to vector<8x256xf32>
    %404 = arith.addf %402, %403 : vector<8x256xf32>
    %cst_102 = arith.constant 5.000000e-01 : f32
    %405 = vector.broadcast %cst_102 : f32 to vector<8x256xf32>
    %406 = arith.mulf %405, %404 : vector<8x256xf32>
    %cst_103 = arith.constant 5.000000e-01 : f32
    %407 = vector.broadcast %cst_103 : f32 to vector<8x256xf32>
    %408 = arith.mulf %407, %364 : vector<8x256xf32>
    %409 = math.tanh %408 : vector<8x256xf32>
    %cst_104 = arith.constant 1.000000e+00 : f32
    %410 = vector.broadcast %cst_104 : f32 to vector<8x256xf32>
    %411 = arith.addf %409, %410 : vector<8x256xf32>
    %cst_105 = arith.constant 5.000000e-01 : f32
    %412 = vector.broadcast %cst_105 : f32 to vector<8x256xf32>
    %413 = arith.mulf %412, %411 : vector<8x256xf32>
    %414 = tpu.iota {dimensions = array<i32: 0>} : vector<8x256xi32>
    %c0_i32 = arith.constant 0 : i32
    %415 = vector.broadcast %c0_i32 : i32 to vector<8x256xi32>
    %416 = arith.cmpi eq, %414, %415 : vector<8x256xi32>
    %417 = arith.extui %416 : vector<8x256xi1> to vector<8x256xi32>
    %418 = arith.sitofp %417 : vector<8x256xi32> to vector<8x256xf32>
    %cst_106 = arith.constant 0.000000e+00 : f32
    %419 = vector.broadcast %cst_106 : f32 to vector<8x256xf32>
    %420 = vector.extract_strided_slice %8 {offsets = [0, 0], sizes = [1, 256], strides = [1, 1]} : vector<8x256xf32> to vector<1x256xf32>
    %421 = arith.mulf %419, %418 : vector<8x256xf32>
    %cst_107 = arith.constant dense<0.000000e+00> : vector<256xf32>
    %422 = vector.multi_reduction <add>, %421, %cst_107 [0] : vector<8x256xf32> to vector<256xf32>
    %423 = vector.shape_cast %422 : vector<256xf32> to vector<1x256xf32>
    %424 = vector.extract_strided_slice %406 {offsets = [0, 0], sizes = [1, 256], strides = [1, 1]} : vector<8x256xf32> to vector<1x256xf32>
    %425 = arith.mulf %420, %424 : vector<1x256xf32>
    %426 = vector.extract_strided_slice %413 {offsets = [0, 0], sizes = [1, 256], strides = [1, 1]} : vector<8x256xf32> to vector<1x256xf32>
    %427 = arith.mulf %423, %426 : vector<1x256xf32>
    %428 = arith.subf %425, %427 : vector<1x256xf32>
    %429 = vector.broadcast %428 : vector<1x256xf32> to vector<8x256xf32>
    %430 = arith.mulf %418, %429 : vector<8x256xf32>
    %431 = arith.addf %419, %430 : vector<8x256xf32>
    %c1_i32 = arith.constant 1 : i32
    %432 = tpu.dynamic_rotate %418 by %c1_i32 dim 0 : vector<8x256xf32>, i32 -> vector<8x256xf32>
    %c7_i32 = arith.constant 7 : i32
    %433 = tpu.dynamic_rotate %418 by %c7_i32 dim 0 : vector<8x256xf32>, i32 -> vector<8x256xf32>
    %434 = vector.extract_strided_slice %390 {offsets = [0, 0], sizes = [1, 256], strides = [1, 1]} : vector<8x256xf32> to vector<1x256xf32>
    %435 = vector.broadcast %434 : vector<1x256xf32> to vector<8x256xf32>
    %436 = arith.mulf %433, %435 : vector<8x256xf32>
    %437 = vector.extract_strided_slice %391 {offsets = [0, 0], sizes = [1, 256], strides = [1, 1]} : vector<8x256xf32> to vector<1x256xf32>
    %438 = vector.broadcast %437 : vector<1x256xf32> to vector<8x256xf32>
    %439 = arith.mulf %418, %438 : vector<8x256xf32>
    %440 = arith.addf %436, %439 : vector<8x256xf32>
    %441 = vector.extract_strided_slice %392 {offsets = [0, 0], sizes = [1, 256], strides = [1, 1]} : vector<8x256xf32> to vector<1x256xf32>
    %442 = vector.broadcast %441 : vector<1x256xf32> to vector<8x256xf32>
    %443 = arith.mulf %432, %442 : vector<8x256xf32>
    %444 = arith.addf %440, %443 : vector<8x256xf32>
    %445 = arith.mulf %431, %418 : vector<8x256xf32>
    %cst_108 = arith.constant dense<0.000000e+00> : vector<256xf32>
    %446 = vector.multi_reduction <add>, %445, %cst_108 [0] : vector<8x256xf32> to vector<256xf32>
    %447 = vector.shape_cast %446 : vector<256xf32> to vector<1x256xf32>
    %448 = vector.extract_strided_slice %399 {offsets = [0, 0], sizes = [1, 256], strides = [1, 1]} : vector<8x256xf32> to vector<1x256xf32>
    %449 = arith.mulf %447, %448 : vector<1x256xf32>
    %c0_109 = arith.constant 0 : index
    %c0_110 = arith.constant 0 : index
    %450 = vector.load %arg10[%c0_109, %c0_110] : memref<8x256xf32, #tpu.memory_space<vmem>>, vector<1x256xf32>
    tpu.vector_store %arg10[%c0_109, %c0_110], %449 {strides = array<i32>} : memref<8x256xf32, #tpu.memory_space<vmem>>, vector<1x256xf32>,
    %c1_i32_111 = arith.constant 1 : i32
    %451 = tpu.dynamic_rotate %418 by %c1_i32_111 dim 0 : vector<8x256xf32>, i32 -> vector<8x256xf32>
    %c7_i32_112 = arith.constant 7 : i32
    %452 = tpu.dynamic_rotate %418 by %c7_i32_112 dim 0 : vector<8x256xf32>, i32 -> vector<8x256xf32>
    %453 = vector.extract_strided_slice %376 {offsets = [0, 0], sizes = [1, 256], strides = [1, 1]} : vector<8x256xf32> to vector<1x256xf32>
    %454 = vector.broadcast %453 : vector<1x256xf32> to vector<8x256xf32>
    %455 = arith.mulf %452, %454 : vector<8x256xf32>
    %456 = vector.extract_strided_slice %377 {offsets = [0, 0], sizes = [1, 256], strides = [1, 1]} : vector<8x256xf32> to vector<1x256xf32>
    %457 = vector.broadcast %456 : vector<1x256xf32> to vector<8x256xf32>
    %458 = arith.mulf %418, %457 : vector<8x256xf32>
    %459 = arith.addf %455, %458 : vector<8x256xf32>
    %460 = vector.extract_strided_slice %378 {offsets = [0, 0], sizes = [1, 256], strides = [1, 1]} : vector<8x256xf32> to vector<1x256xf32>
    %461 = vector.broadcast %460 : vector<1x256xf32> to vector<8x256xf32>
    %462 = arith.mulf %451, %461 : vector<8x256xf32>
    %463 = arith.addf %459, %462 : vector<8x256xf32>
    %464 = vector.extract_strided_slice %8 {offsets = [1, 0], sizes = [1, 256], strides = [1, 1]} : vector<8x256xf32> to vector<1x256xf32>
    %465 = arith.mulf %431, %444 : vector<8x256xf32>
    %cst_113 = arith.constant dense<0.000000e+00> : vector<256xf32>
    %466 = vector.multi_reduction <add>, %465, %cst_113 [0] : vector<8x256xf32> to vector<256xf32>
    %467 = vector.shape_cast %466 : vector<256xf32> to vector<1x256xf32>
    %468 = vector.extract_strided_slice %406 {offsets = [1, 0], sizes = [1, 256], strides = [1, 1]} : vector<8x256xf32> to vector<1x256xf32>
    %469 = arith.mulf %464, %468 : vector<1x256xf32>
    %470 = vector.extract_strided_slice %413 {offsets = [1, 0], sizes = [1, 256], strides = [1, 1]} : vector<8x256xf32> to vector<1x256xf32>
    %471 = arith.mulf %467, %470 : vector<1x256xf32>
    %472 = arith.subf %469, %471 : vector<1x256xf32>
    %473 = vector.broadcast %472 : vector<1x256xf32> to vector<8x256xf32>
    %474 = arith.mulf %444, %473 : vector<8x256xf32>
    %475 = arith.addf %431, %474 : vector<8x256xf32>
    %c1_i32_114 = arith.constant 1 : i32
    %476 = tpu.dynamic_rotate %444 by %c1_i32_114 dim 0 : vector<8x256xf32>, i32 -> vector<8x256xf32>
    %c7_i32_115 = arith.constant 7 : i32
    %477 = tpu.dynamic_rotate %444 by %c7_i32_115 dim 0 : vector<8x256xf32>, i32 -> vector<8x256xf32>
    %478 = vector.extract_strided_slice %390 {offsets = [1, 0], sizes = [1, 256], strides = [1, 1]} : vector<8x256xf32> to vector<1x256xf32>
    %479 = vector.broadcast %478 : vector<1x256xf32> to vector<8x256xf32>
    %480 = arith.mulf %477, %479 : vector<8x256xf32>
    %481 = vector.extract_strided_slice %391 {offsets = [1, 0], sizes = [1, 256], strides = [1, 1]} : vector<8x256xf32> to vector<1x256xf32>
    %482 = vector.broadcast %481 : vector<1x256xf32> to vector<8x256xf32>
    %483 = arith.mulf %444, %482 : vector<8x256xf32>
    %484 = arith.addf %480, %483 : vector<8x256xf32>
    %485 = vector.extract_strided_slice %392 {offsets = [1, 0], sizes = [1, 256], strides = [1, 1]} : vector<8x256xf32> to vector<1x256xf32>
    %486 = vector.broadcast %485 : vector<1x256xf32> to vector<8x256xf32>
    %487 = arith.mulf %476, %486 : vector<8x256xf32>
    %488 = arith.addf %484, %487 : vector<8x256xf32>
    %489 = arith.mulf %475, %463 : vector<8x256xf32>
    %cst_116 = arith.constant dense<0.000000e+00> : vector<256xf32>
    %490 = vector.multi_reduction <add>, %489, %cst_116 [0] : vector<8x256xf32> to vector<256xf32>
    %491 = vector.shape_cast %490 : vector<256xf32> to vector<1x256xf32>
    %492 = vector.extract_strided_slice %399 {offsets = [1, 0], sizes = [1, 256], strides = [1, 1]} : vector<8x256xf32> to vector<1x256xf32>
    %493 = arith.mulf %491, %492 : vector<1x256xf32>
    %c1 = arith.constant 1 : index
    %c0_117 = arith.constant 0 : index
    %494 = vector.load %arg10[%c1, %c0_117] : memref<8x256xf32, #tpu.memory_space<vmem>>, vector<1x256xf32>
    tpu.vector_store %arg10[%c1, %c0_117], %493 {strides = array<i32>} : memref<8x256xf32, #tpu.memory_space<vmem>>, vector<1x256xf32>,
    %c1_i32_118 = arith.constant 1 : i32
    %495 = tpu.dynamic_rotate %463 by %c1_i32_118 dim 0 : vector<8x256xf32>, i32 -> vector<8x256xf32>
    %c7_i32_119 = arith.constant 7 : i32
    %496 = tpu.dynamic_rotate %463 by %c7_i32_119 dim 0 : vector<8x256xf32>, i32 -> vector<8x256xf32>
    %497 = vector.extract_strided_slice %376 {offsets = [1, 0], sizes = [1, 256], strides = [1, 1]} : vector<8x256xf32> to vector<1x256xf32>
    %498 = vector.broadcast %497 : vector<1x256xf32> to vector<8x256xf32>
    %499 = arith.mulf %496, %498 : vector<8x256xf32>
    %500 = vector.extract_strided_slice %377 {offsets = [1, 0], sizes = [1, 256], strides = [1, 1]} : vector<8x256xf32> to vector<1x256xf32>
    %501 = vector.broadcast %500 : vector<1x256xf32> to vector<8x256xf32>
    %502 = arith.mulf %463, %501 : vector<8x256xf32>
    %503 = arith.addf %499, %502 : vector<8x256xf32>
    %504 = vector.extract_strided_slice %378 {offsets = [1, 0], sizes = [1, 256], strides = [1, 1]} : vector<8x256xf32> to vector<1x256xf32>
    %505 = vector.broadcast %504 : vector<1x256xf32> to vector<8x256xf32>
    %506 = arith.mulf %495, %505 : vector<8x256xf32>
    %507 = arith.addf %503, %506 : vector<8x256xf32>
    %508 = vector.extract_strided_slice %8 {offsets = [2, 0], sizes = [1, 256], strides = [1, 1]} : vector<8x256xf32> to vector<1x256xf32>
    %509 = arith.mulf %475, %488 : vector<8x256xf32>
    %cst_120 = arith.constant dense<0.000000e+00> : vector<256xf32>
    %510 = vector.multi_reduction <add>, %509, %cst_120 [0] : vector<8x256xf32> to vector<256xf32>
    %511 = vector.shape_cast %510 : vector<256xf32> to vector<1x256xf32>
    %512 = vector.extract_strided_slice %406 {offsets = [2, 0], sizes = [1, 256], strides = [1, 1]} : vector<8x256xf32> to vector<1x256xf32>
    %513 = arith.mulf %508, %512 : vector<1x256xf32>
    %514 = vector.extract_strided_slice %413 {offsets = [2, 0], sizes = [1, 256], strides = [1, 1]} : vector<8x256xf32> to vector<1x256xf32>
    %515 = arith.mulf %511, %514 : vector<1x256xf32>
    %516 = arith.subf %513, %515 : vector<1x256xf32>
    %517 = vector.broadcast %516 : vector<1x256xf32> to vector<8x256xf32>
    %518 = arith.mulf %488, %517 : vector<8x256xf32>
    %519 = arith.addf %475, %518 : vector<8x256xf32>
    %c1_i32_121 = arith.constant 1 : i32
    %520 = tpu.dynamic_rotate %488 by %c1_i32_121 dim 0 : vector<8x256xf32>, i32 -> vector<8x256xf32>
    %c7_i32_122 = arith.constant 7 : i32
    %521 = tpu.dynamic_rotate %488 by %c7_i32_122 dim 0 : vector<8x256xf32>, i32 -> vector<8x256xf32>
    %522 = vector.extract_strided_slice %390 {offsets = [2, 0], sizes = [1, 256], strides = [1, 1]} : vector<8x256xf32> to vector<1x256xf32>
    %523 = vector.broadcast %522 : vector<1x256xf32> to vector<8x256xf32>
    %524 = arith.mulf %521, %523 : vector<8x256xf32>
    %525 = vector.extract_strided_slice %391 {offsets = [2, 0], sizes = [1, 256], strides = [1, 1]} : vector<8x256xf32> to vector<1x256xf32>
    %526 = vector.broadcast %525 : vector<1x256xf32> to vector<8x256xf32>
    %527 = arith.mulf %488, %526 : vector<8x256xf32>
    %528 = arith.addf %524, %527 : vector<8x256xf32>
    %529 = vector.extract_strided_slice %392 {offsets = [2, 0], sizes = [1, 256], strides = [1, 1]} : vector<8x256xf32> to vector<1x256xf32>
    %530 = vector.broadcast %529 : vector<1x256xf32> to vector<8x256xf32>
    %531 = arith.mulf %520, %530 : vector<8x256xf32>
    %532 = arith.addf %528, %531 : vector<8x256xf32>
    %533 = arith.mulf %519, %507 : vector<8x256xf32>
    %cst_123 = arith.constant dense<0.000000e+00> : vector<256xf32>
    %534 = vector.multi_reduction <add>, %533, %cst_123 [0] : vector<8x256xf32> to vector<256xf32>
    %535 = vector.shape_cast %534 : vector<256xf32> to vector<1x256xf32>
    %536 = vector.extract_strided_slice %399 {offsets = [2, 0], sizes = [1, 256], strides = [1, 1]} : vector<8x256xf32> to vector<1x256xf32>
    %537 = arith.mulf %535, %536 : vector<1x256xf32>
    %c2 = arith.constant 2 : index
    %c0_124 = arith.constant 0 : index
    %538 = vector.load %arg10[%c2, %c0_124] : memref<8x256xf32, #tpu.memory_space<vmem>>, vector<1x256xf32>
    tpu.vector_store %arg10[%c2, %c0_124], %537 {strides = array<i32>} : memref<8x256xf32, #tpu.memory_space<vmem>>, vector<1x256xf32>,
    %c1_i32_125 = arith.constant 1 : i32
    %539 = tpu.dynamic_rotate %507 by %c1_i32_125 dim 0 : vector<8x256xf32>, i32 -> vector<8x256xf32>
    %c7_i32_126 = arith.constant 7 : i32
    %540 = tpu.dynamic_rotate %507 by %c7_i32_126 dim 0 : vector<8x256xf32>, i32 -> vector<8x256xf32>
    %541 = vector.extract_strided_slice %376 {offsets = [2, 0], sizes = [1, 256], strides = [1, 1]} : vector<8x256xf32> to vector<1x256xf32>
    %542 = vector.broadcast %541 : vector<1x256xf32> to vector<8x256xf32>
    %543 = arith.mulf %540, %542 : vector<8x256xf32>
    %544 = vector.extract_strided_slice %377 {offsets = [2, 0], sizes = [1, 256], strides = [1, 1]} : vector<8x256xf32> to vector<1x256xf32>
    %545 = vector.broadcast %544 : vector<1x256xf32> to vector<8x256xf32>
    %546 = arith.mulf %507, %545 : vector<8x256xf32>
    %547 = arith.addf %543, %546 : vector<8x256xf32>
    %548 = vector.extract_strided_slice %378 {offsets = [2, 0], sizes = [1, 256], strides = [1, 1]} : vector<8x256xf32> to vector<1x256xf32>
    %549 = vector.broadcast %548 : vector<1x256xf32> to vector<8x256xf32>
    %550 = arith.mulf %539, %549 : vector<8x256xf32>
    %551 = arith.addf %547, %550 : vector<8x256xf32>
    %552 = vector.extract_strided_slice %8 {offsets = [3, 0], sizes = [1, 256], strides = [1, 1]} : vector<8x256xf32> to vector<1x256xf32>
    %553 = arith.mulf %519, %532 : vector<8x256xf32>
    %cst_127 = arith.constant dense<0.000000e+00> : vector<256xf32>
    %554 = vector.multi_reduction <add>, %553, %cst_127 [0] : vector<8x256xf32> to vector<256xf32>
    %555 = vector.shape_cast %554 : vector<256xf32> to vector<1x256xf32>
    %556 = vector.extract_strided_slice %406 {offsets = [3, 0], sizes = [1, 256], strides = [1, 1]} : vector<8x256xf32> to vector<1x256xf32>
    %557 = arith.mulf %552, %556 : vector<1x256xf32>
    %558 = vector.extract_strided_slice %413 {offsets = [3, 0], sizes = [1, 256], strides = [1, 1]} : vector<8x256xf32> to vector<1x256xf32>
    %559 = arith.mulf %555, %558 : vector<1x256xf32>
    %560 = arith.subf %557, %559 : vector<1x256xf32>
    %561 = vector.broadcast %560 : vector<1x256xf32> to vector<8x256xf32>
    %562 = arith.mulf %532, %561 : vector<8x256xf32>
    %563 = arith.addf %519, %562 : vector<8x256xf32>
    %c1_i32_128 = arith.constant 1 : i32
    %564 = tpu.dynamic_rotate %532 by %c1_i32_128 dim 0 : vector<8x256xf32>, i32 -> vector<8x256xf32>
    %c7_i32_129 = arith.constant 7 : i32
    %565 = tpu.dynamic_rotate %532 by %c7_i32_129 dim 0 : vector<8x256xf32>, i32 -> vector<8x256xf32>
    %566 = vector.extract_strided_slice %390 {offsets = [3, 0], sizes = [1, 256], strides = [1, 1]} : vector<8x256xf32> to vector<1x256xf32>
    %567 = vector.broadcast %566 : vector<1x256xf32> to vector<8x256xf32>
    %568 = arith.mulf %565, %567 : vector<8x256xf32>
    %569 = vector.extract_strided_slice %391 {offsets = [3, 0], sizes = [1, 256], strides = [1, 1]} : vector<8x256xf32> to vector<1x256xf32>
    %570 = vector.broadcast %569 : vector<1x256xf32> to vector<8x256xf32>
    %571 = arith.mulf %532, %570 : vector<8x256xf32>
    %572 = arith.addf %568, %571 : vector<8x256xf32>
    %573 = vector.extract_strided_slice %392 {offsets = [3, 0], sizes = [1, 256], strides = [1, 1]} : vector<8x256xf32> to vector<1x256xf32>
    %574 = vector.broadcast %573 : vector<1x256xf32> to vector<8x256xf32>
    %575 = arith.mulf %564, %574 : vector<8x256xf32>
    %576 = arith.addf %572, %575 : vector<8x256xf32>
    %577 = arith.mulf %563, %551 : vector<8x256xf32>
    %cst_130 = arith.constant dense<0.000000e+00> : vector<256xf32>
    %578 = vector.multi_reduction <add>, %577, %cst_130 [0] : vector<8x256xf32> to vector<256xf32>
    %579 = vector.shape_cast %578 : vector<256xf32> to vector<1x256xf32>
    %580 = vector.extract_strided_slice %399 {offsets = [3, 0], sizes = [1, 256], strides = [1, 1]} : vector<8x256xf32> to vector<1x256xf32>
    %581 = arith.mulf %579, %580 : vector<1x256xf32>
    %c3 = arith.constant 3 : index
    %c0_131 = arith.constant 0 : index
    %582 = vector.load %arg10[%c3, %c0_131] : memref<8x256xf32, #tpu.memory_space<vmem>>, vector<1x256xf32>
    tpu.vector_store %arg10[%c3, %c0_131], %581 {strides = array<i32>} : memref<8x256xf32, #tpu.memory_space<vmem>>, vector<1x256xf32>,
    %c1_i32_132 = arith.constant 1 : i32
    %583 = tpu.dynamic_rotate %551 by %c1_i32_132 dim 0 : vector<8x256xf32>, i32 -> vector<8x256xf32>
    %c7_i32_133 = arith.constant 7 : i32
    %584 = tpu.dynamic_rotate %551 by %c7_i32_133 dim 0 : vector<8x256xf32>, i32 -> vector<8x256xf32>
    %585 = vector.extract_strided_slice %376 {offsets = [3, 0], sizes = [1, 256], strides = [1, 1]} : vector<8x256xf32> to vector<1x256xf32>
    %586 = vector.broadcast %585 : vector<1x256xf32> to vector<8x256xf32>
    %587 = arith.mulf %584, %586 : vector<8x256xf32>
    %588 = vector.extract_strided_slice %377 {offsets = [3, 0], sizes = [1, 256], strides = [1, 1]} : vector<8x256xf32> to vector<1x256xf32>
    %589 = vector.broadcast %588 : vector<1x256xf32> to vector<8x256xf32>
    %590 = arith.mulf %551, %589 : vector<8x256xf32>
    %591 = arith.addf %587, %590 : vector<8x256xf32>
    %592 = vector.extract_strided_slice %378 {offsets = [3, 0], sizes = [1, 256], strides = [1, 1]} : vector<8x256xf32> to vector<1x256xf32>
    %593 = vector.broadcast %592 : vector<1x256xf32> to vector<8x256xf32>
    %594 = arith.mulf %583, %593 : vector<8x256xf32>
    %595 = arith.addf %591, %594 : vector<8x256xf32>
    %596 = vector.extract_strided_slice %8 {offsets = [4, 0], sizes = [1, 256], strides = [1, 1]} : vector<8x256xf32> to vector<1x256xf32>
    %597 = arith.mulf %563, %576 : vector<8x256xf32>
    %cst_134 = arith.constant dense<0.000000e+00> : vector<256xf32>
    %598 = vector.multi_reduction <add>, %597, %cst_134 [0] : vector<8x256xf32> to vector<256xf32>
    %599 = vector.shape_cast %598 : vector<256xf32> to vector<1x256xf32>
    %600 = vector.extract_strided_slice %406 {offsets = [4, 0], sizes = [1, 256], strides = [1, 1]} : vector<8x256xf32> to vector<1x256xf32>
    %601 = arith.mulf %596, %600 : vector<1x256xf32>
    %602 = vector.extract_strided_slice %413 {offsets = [4, 0], sizes = [1, 256], strides = [1, 1]} : vector<8x256xf32> to vector<1x256xf32>
    %603 = arith.mulf %599, %602 : vector<1x256xf32>
    %604 = arith.subf %601, %603 : vector<1x256xf32>
    %605 = vector.broadcast %604 : vector<1x256xf32> to vector<8x256xf32>
    %606 = arith.mulf %576, %605 : vector<8x256xf32>
    %607 = arith.addf %563, %606 : vector<8x256xf32>
    %c1_i32_135 = arith.constant 1 : i32
    %608 = tpu.dynamic_rotate %576 by %c1_i32_135 dim 0 : vector<8x256xf32>, i32 -> vector<8x256xf32>
    %c7_i32_136 = arith.constant 7 : i32
    %609 = tpu.dynamic_rotate %576 by %c7_i32_136 dim 0 : vector<8x256xf32>, i32 -> vector<8x256xf32>
    %610 = vector.extract_strided_slice %390 {offsets = [4, 0], sizes = [1, 256], strides = [1, 1]} : vector<8x256xf32> to vector<1x256xf32>
    %611 = vector.broadcast %610 : vector<1x256xf32> to vector<8x256xf32>
    %612 = arith.mulf %609, %611 : vector<8x256xf32>
    %613 = vector.extract_strided_slice %391 {offsets = [4, 0], sizes = [1, 256], strides = [1, 1]} : vector<8x256xf32> to vector<1x256xf32>
    %614 = vector.broadcast %613 : vector<1x256xf32> to vector<8x256xf32>
    %615 = arith.mulf %576, %614 : vector<8x256xf32>
    %616 = arith.addf %612, %615 : vector<8x256xf32>
    %617 = vector.extract_strided_slice %392 {offsets = [4, 0], sizes = [1, 256], strides = [1, 1]} : vector<8x256xf32> to vector<1x256xf32>
    %618 = vector.broadcast %617 : vector<1x256xf32> to vector<8x256xf32>
    %619 = arith.mulf %608, %618 : vector<8x256xf32>
    %620 = arith.addf %616, %619 : vector<8x256xf32>
    %621 = arith.mulf %607, %595 : vector<8x256xf32>
    %cst_137 = arith.constant dense<0.000000e+00> : vector<256xf32>
    %622 = vector.multi_reduction <add>, %621, %cst_137 [0] : vector<8x256xf32> to vector<256xf32>
    %623 = vector.shape_cast %622 : vector<256xf32> to vector<1x256xf32>
    %624 = vector.extract_strided_slice %399 {offsets = [4, 0], sizes = [1, 256], strides = [1, 1]} : vector<8x256xf32> to vector<1x256xf32>
    %625 = arith.mulf %623, %624 : vector<1x256xf32>
    %c4 = arith.constant 4 : index
    %c0_138 = arith.constant 0 : index
    %626 = vector.load %arg10[%c4, %c0_138] : memref<8x256xf32, #tpu.memory_space<vmem>>, vector<1x256xf32>
    tpu.vector_store %arg10[%c4, %c0_138], %625 {strides = array<i32>} : memref<8x256xf32, #tpu.memory_space<vmem>>, vector<1x256xf32>,
    %c1_i32_139 = arith.constant 1 : i32
    %627 = tpu.dynamic_rotate %595 by %c1_i32_139 dim 0 : vector<8x256xf32>, i32 -> vector<8x256xf32>
    %c7_i32_140 = arith.constant 7 : i32
    %628 = tpu.dynamic_rotate %595 by %c7_i32_140 dim 0 : vector<8x256xf32>, i32 -> vector<8x256xf32>
    %629 = vector.extract_strided_slice %376 {offsets = [4, 0], sizes = [1, 256], strides = [1, 1]} : vector<8x256xf32> to vector<1x256xf32>
    %630 = vector.broadcast %629 : vector<1x256xf32> to vector<8x256xf32>
    %631 = arith.mulf %628, %630 : vector<8x256xf32>
    %632 = vector.extract_strided_slice %377 {offsets = [4, 0], sizes = [1, 256], strides = [1, 1]} : vector<8x256xf32> to vector<1x256xf32>
    %633 = vector.broadcast %632 : vector<1x256xf32> to vector<8x256xf32>
    %634 = arith.mulf %595, %633 : vector<8x256xf32>
    %635 = arith.addf %631, %634 : vector<8x256xf32>
    %636 = vector.extract_strided_slice %378 {offsets = [4, 0], sizes = [1, 256], strides = [1, 1]} : vector<8x256xf32> to vector<1x256xf32>
    %637 = vector.broadcast %636 : vector<1x256xf32> to vector<8x256xf32>
    %638 = arith.mulf %627, %637 : vector<8x256xf32>
    %639 = arith.addf %635, %638 : vector<8x256xf32>
    %640 = vector.extract_strided_slice %8 {offsets = [5, 0], sizes = [1, 256], strides = [1, 1]} : vector<8x256xf32> to vector<1x256xf32>
    %641 = arith.mulf %607, %620 : vector<8x256xf32>
    %cst_141 = arith.constant dense<0.000000e+00> : vector<256xf32>
    %642 = vector.multi_reduction <add>, %641, %cst_141 [0] : vector<8x256xf32> to vector<256xf32>
    %643 = vector.shape_cast %642 : vector<256xf32> to vector<1x256xf32>
    %644 = vector.extract_strided_slice %406 {offsets = [5, 0], sizes = [1, 256], strides = [1, 1]} : vector<8x256xf32> to vector<1x256xf32>
    %645 = arith.mulf %640, %644 : vector<1x256xf32>
    %646 = vector.extract_strided_slice %413 {offsets = [5, 0], sizes = [1, 256], strides = [1, 1]} : vector<8x256xf32> to vector<1x256xf32>
    %647 = arith.mulf %643, %646 : vector<1x256xf32>
    %648 = arith.subf %645, %647 : vector<1x256xf32>
    %649 = vector.broadcast %648 : vector<1x256xf32> to vector<8x256xf32>
    %650 = arith.mulf %620, %649 : vector<8x256xf32>
    %651 = arith.addf %607, %650 : vector<8x256xf32>
    %c1_i32_142 = arith.constant 1 : i32
    %652 = tpu.dynamic_rotate %620 by %c1_i32_142 dim 0 : vector<8x256xf32>, i32 -> vector<8x256xf32>
    %c7_i32_143 = arith.constant 7 : i32
    %653 = tpu.dynamic_rotate %620 by %c7_i32_143 dim 0 : vector<8x256xf32>, i32 -> vector<8x256xf32>
    %654 = vector.extract_strided_slice %390 {offsets = [5, 0], sizes = [1, 256], strides = [1, 1]} : vector<8x256xf32> to vector<1x256xf32>
    %655 = vector.broadcast %654 : vector<1x256xf32> to vector<8x256xf32>
    %656 = arith.mulf %653, %655 : vector<8x256xf32>
    %657 = vector.extract_strided_slice %391 {offsets = [5, 0], sizes = [1, 256], strides = [1, 1]} : vector<8x256xf32> to vector<1x256xf32>
    %658 = vector.broadcast %657 : vector<1x256xf32> to vector<8x256xf32>
    %659 = arith.mulf %620, %658 : vector<8x256xf32>
    %660 = arith.addf %656, %659 : vector<8x256xf32>
    %661 = vector.extract_strided_slice %392 {offsets = [5, 0], sizes = [1, 256], strides = [1, 1]} : vector<8x256xf32> to vector<1x256xf32>
    %662 = vector.broadcast %661 : vector<1x256xf32> to vector<8x256xf32>
    %663 = arith.mulf %652, %662 : vector<8x256xf32>
    %664 = arith.addf %660, %663 : vector<8x256xf32>
    %665 = arith.mulf %651, %639 : vector<8x256xf32>
    %cst_144 = arith.constant dense<0.000000e+00> : vector<256xf32>
    %666 = vector.multi_reduction <add>, %665, %cst_144 [0] : vector<8x256xf32> to vector<256xf32>
    %667 = vector.shape_cast %666 : vector<256xf32> to vector<1x256xf32>
    %668 = vector.extract_strided_slice %399 {offsets = [5, 0], sizes = [1, 256], strides = [1, 1]} : vector<8x256xf32> to vector<1x256xf32>
    %669 = arith.mulf %667, %668 : vector<1x256xf32>
    %c5 = arith.constant 5 : index
    %c0_145 = arith.constant 0 : index
    %670 = vector.load %arg10[%c5, %c0_145] : memref<8x256xf32, #tpu.memory_space<vmem>>, vector<1x256xf32>
    tpu.vector_store %arg10[%c5, %c0_145], %669 {strides = array<i32>} : memref<8x256xf32, #tpu.memory_space<vmem>>, vector<1x256xf32>,
    %c1_i32_146 = arith.constant 1 : i32
    %671 = tpu.dynamic_rotate %639 by %c1_i32_146 dim 0 : vector<8x256xf32>, i32 -> vector<8x256xf32>
    %c7_i32_147 = arith.constant 7 : i32
    %672 = tpu.dynamic_rotate %639 by %c7_i32_147 dim 0 : vector<8x256xf32>, i32 -> vector<8x256xf32>
    %673 = vector.extract_strided_slice %376 {offsets = [5, 0], sizes = [1, 256], strides = [1, 1]} : vector<8x256xf32> to vector<1x256xf32>
    %674 = vector.broadcast %673 : vector<1x256xf32> to vector<8x256xf32>
    %675 = arith.mulf %672, %674 : vector<8x256xf32>
    %676 = vector.extract_strided_slice %377 {offsets = [5, 0], sizes = [1, 256], strides = [1, 1]} : vector<8x256xf32> to vector<1x256xf32>
    %677 = vector.broadcast %676 : vector<1x256xf32> to vector<8x256xf32>
    %678 = arith.mulf %639, %677 : vector<8x256xf32>
    %679 = arith.addf %675, %678 : vector<8x256xf32>
    %680 = vector.extract_strided_slice %378 {offsets = [5, 0], sizes = [1, 256], strides = [1, 1]} : vector<8x256xf32> to vector<1x256xf32>
    %681 = vector.broadcast %680 : vector<1x256xf32> to vector<8x256xf32>
    %682 = arith.mulf %671, %681 : vector<8x256xf32>
    %683 = arith.addf %679, %682 : vector<8x256xf32>
    %684 = vector.extract_strided_slice %8 {offsets = [6, 0], sizes = [1, 256], strides = [1, 1]} : vector<8x256xf32> to vector<1x256xf32>
    %685 = arith.mulf %651, %664 : vector<8x256xf32>
    %cst_148 = arith.constant dense<0.000000e+00> : vector<256xf32>
    %686 = vector.multi_reduction <add>, %685, %cst_148 [0] : vector<8x256xf32> to vector<256xf32>
    %687 = vector.shape_cast %686 : vector<256xf32> to vector<1x256xf32>
    %688 = vector.extract_strided_slice %406 {offsets = [6, 0], sizes = [1, 256], strides = [1, 1]} : vector<8x256xf32> to vector<1x256xf32>
    %689 = arith.mulf %684, %688 : vector<1x256xf32>
    %690 = vector.extract_strided_slice %413 {offsets = [6, 0], sizes = [1, 256], strides = [1, 1]} : vector<8x256xf32> to vector<1x256xf32>
    %691 = arith.mulf %687, %690 : vector<1x256xf32>
    %692 = arith.subf %689, %691 : vector<1x256xf32>
    %693 = vector.broadcast %692 : vector<1x256xf32> to vector<8x256xf32>
    %694 = arith.mulf %664, %693 : vector<8x256xf32>
    %695 = arith.addf %651, %694 : vector<8x256xf32>
    %c1_i32_149 = arith.constant 1 : i32
    %696 = tpu.dynamic_rotate %664 by %c1_i32_149 dim 0 : vector<8x256xf32>, i32 -> vector<8x256xf32>
    %c7_i32_150 = arith.constant 7 : i32
    %697 = tpu.dynamic_rotate %664 by %c7_i32_150 dim 0 : vector<8x256xf32>, i32 -> vector<8x256xf32>
    %698 = vector.extract_strided_slice %390 {offsets = [6, 0], sizes = [1, 256], strides = [1, 1]} : vector<8x256xf32> to vector<1x256xf32>
    %699 = vector.broadcast %698 : vector<1x256xf32> to vector<8x256xf32>
    %700 = arith.mulf %697, %699 : vector<8x256xf32>
    %701 = vector.extract_strided_slice %391 {offsets = [6, 0], sizes = [1, 256], strides = [1, 1]} : vector<8x256xf32> to vector<1x256xf32>
    %702 = vector.broadcast %701 : vector<1x256xf32> to vector<8x256xf32>
    %703 = arith.mulf %664, %702 : vector<8x256xf32>
    %704 = arith.addf %700, %703 : vector<8x256xf32>
    %705 = vector.extract_strided_slice %392 {offsets = [6, 0], sizes = [1, 256], strides = [1, 1]} : vector<8x256xf32> to vector<1x256xf32>
    %706 = vector.broadcast %705 : vector<1x256xf32> to vector<8x256xf32>
    %707 = arith.mulf %696, %706 : vector<8x256xf32>
    %708 = arith.addf %704, %707 : vector<8x256xf32>
    %709 = arith.mulf %695, %683 : vector<8x256xf32>
    %cst_151 = arith.constant dense<0.000000e+00> : vector<256xf32>
    %710 = vector.multi_reduction <add>, %709, %cst_151 [0] : vector<8x256xf32> to vector<256xf32>
    %711 = vector.shape_cast %710 : vector<256xf32> to vector<1x256xf32>
    %712 = vector.extract_strided_slice %399 {offsets = [6, 0], sizes = [1, 256], strides = [1, 1]} : vector<8x256xf32> to vector<1x256xf32>
    %713 = arith.mulf %711, %712 : vector<1x256xf32>
    %c6 = arith.constant 6 : index
    %c0_152 = arith.constant 0 : index
    %714 = vector.load %arg10[%c6, %c0_152] : memref<8x256xf32, #tpu.memory_space<vmem>>, vector<1x256xf32>
    tpu.vector_store %arg10[%c6, %c0_152], %713 {strides = array<i32>} : memref<8x256xf32, #tpu.memory_space<vmem>>, vector<1x256xf32>,
    %c1_i32_153 = arith.constant 1 : i32
    %715 = tpu.dynamic_rotate %683 by %c1_i32_153 dim 0 : vector<8x256xf32>, i32 -> vector<8x256xf32>
    %c7_i32_154 = arith.constant 7 : i32
    %716 = tpu.dynamic_rotate %683 by %c7_i32_154 dim 0 : vector<8x256xf32>, i32 -> vector<8x256xf32>
    %717 = vector.extract_strided_slice %376 {offsets = [6, 0], sizes = [1, 256], strides = [1, 1]} : vector<8x256xf32> to vector<1x256xf32>
    %718 = vector.broadcast %717 : vector<1x256xf32> to vector<8x256xf32>
    %719 = arith.mulf %716, %718 : vector<8x256xf32>
    %720 = vector.extract_strided_slice %377 {offsets = [6, 0], sizes = [1, 256], strides = [1, 1]} : vector<8x256xf32> to vector<1x256xf32>
    %721 = vector.broadcast %720 : vector<1x256xf32> to vector<8x256xf32>
    %722 = arith.mulf %683, %721 : vector<8x256xf32>
    %723 = arith.addf %719, %722 : vector<8x256xf32>
    %724 = vector.extract_strided_slice %378 {offsets = [6, 0], sizes = [1, 256], strides = [1, 1]} : vector<8x256xf32> to vector<1x256xf32>
    %725 = vector.broadcast %724 : vector<1x256xf32> to vector<8x256xf32>
    %726 = arith.mulf %715, %725 : vector<8x256xf32>
    %727 = arith.addf %723, %726 : vector<8x256xf32>
    %728 = vector.extract_strided_slice %8 {offsets = [7, 0], sizes = [1, 256], strides = [1, 1]} : vector<8x256xf32> to vector<1x256xf32>
    %729 = arith.mulf %695, %708 : vector<8x256xf32>
    %cst_155 = arith.constant dense<0.000000e+00> : vector<256xf32>
    %730 = vector.multi_reduction <add>, %729, %cst_155 [0] : vector<8x256xf32> to vector<256xf32>
    %731 = vector.shape_cast %730 : vector<256xf32> to vector<1x256xf32>
    %732 = vector.extract_strided_slice %406 {offsets = [7, 0], sizes = [1, 256], strides = [1, 1]} : vector<8x256xf32> to vector<1x256xf32>
    %733 = arith.mulf %728, %732 : vector<1x256xf32>
    %734 = vector.extract_strided_slice %413 {offsets = [7, 0], sizes = [1, 256], strides = [1, 1]} : vector<8x256xf32> to vector<1x256xf32>
    %735 = arith.mulf %731, %734 : vector<1x256xf32>
    %736 = arith.subf %733, %735 : vector<1x256xf32>
    %737 = vector.broadcast %736 : vector<1x256xf32> to vector<8x256xf32>
    %738 = arith.mulf %708, %737 : vector<8x256xf32>
    %739 = arith.addf %695, %738 : vector<8x256xf32>
    %740 = arith.mulf %739, %727 : vector<8x256xf32>
    %cst_156 = arith.constant dense<0.000000e+00> : vector<256xf32>
    %741 = vector.multi_reduction <add>, %740, %cst_156 [0] : vector<8x256xf32> to vector<256xf32>
    %742 = vector.shape_cast %741 : vector<256xf32> to vector<1x256xf32>
    %743 = vector.extract_strided_slice %399 {offsets = [7, 0], sizes = [1, 256], strides = [1, 1]} : vector<8x256xf32> to vector<1x256xf32>
    %744 = arith.mulf %742, %743 : vector<1x256xf32>
    %c7 = arith.constant 7 : index
    %c0_157 = arith.constant 0 : index
    %745 = vector.load %arg10[%c7, %c0_157] : memref<8x256xf32, #tpu.memory_space<vmem>>, vector<1x256xf32>
    tpu.vector_store %arg10[%c7, %c0_157], %744 {strides = array<i32>} : memref<8x256xf32, #tpu.memory_space<vmem>>, vector<1x256xf32>,
    %c0_158 = arith.constant 0 : index
    %c0_159 = arith.constant 0 : index
    %746 = vector.load %arg9[%c0_158, %c0_159] : memref<8x256xf32, #tpu.memory_space<vmem>>, vector<8x256xf32>
    tpu.vector_store %arg9[%c0_158, %c0_159], %739 {strides = array<i32>} : memref<8x256xf32, #tpu.memory_space<vmem>>, vector<8x256xf32>,
    %c0_160 = arith.constant 0 : index
    %c0_161 = arith.constant 0 : index
    %747 = vector.load %arg6[%c0_160, %c0_161] : memref<128x128xbf16, #tpu.memory_space<vmem>>, vector<128x128xbf16>
    %c0_162 = arith.constant 0 : index
    %c0_163 = arith.constant 0 : index
    %748 = vector.load %arg10[%c0_162, %c0_163] : memref<8x256xf32, #tpu.memory_space<vmem>>, vector<8x256xf32>
    %749 = vector.extract_strided_slice %748 {offsets = [0, 0], sizes = [8, 128], strides = [1, 1]} : vector<8x256xf32> to vector<8x128xf32>
    %750 = arith.truncf %749 : vector<8x128xf32> to vector<8x128xbf16>
    %cst_164 = arith.constant dense<0.000000e+00> : vector<8x128xf32>
    %751 = tpu.matmul %750, %747, %cst_164 {dimension_numbers = #tpu.dot_dimension_numbers<[1], [0], [0], [1], [0, 0, 1, 1], [], []>} : vector<8x128xbf16>, vector<128x128xbf16>, vector<8x128xf32> -> vector<8x128xf32>
    %c0_165 = arith.constant 0 : index
    %c0_166 = arith.constant 0 : index
    %752 = vector.load %arg7[%c0_165, %c0_166] : memref<1x128xf32, #tpu.memory_space<vmem>>, vector<1x128xf32>
    %753 = vector.broadcast %752 : vector<1x128xf32> to vector<8x128xf32>
    %754 = arith.addf %751, %753 : vector<8x128xf32>
    %c0_167 = arith.constant 0 : index
    %c0_168 = arith.constant 0 : index
    %755 = vector.load %arg8[%c0_167, %c0_168] : memref<16x128xf32, #tpu.memory_space<vmem>>, vector<8x128xf32>
    tpu.vector_store %arg8[%c0_167, %c0_168], %754 {strides = array<i32>} : memref<16x128xf32, #tpu.memory_space<vmem>>, vector<8x128xf32>,
    %756 = vector.extract_strided_slice %748 {offsets = [0, 128], sizes = [8, 128], strides = [1, 1]} : vector<8x256xf32> to vector<8x128xf32>
    %757 = arith.truncf %756 : vector<8x128xf32> to vector<8x128xbf16>
    %cst_169 = arith.constant dense<0.000000e+00> : vector<8x128xf32>
    %758 = tpu.matmul %757, %747, %cst_169 {dimension_numbers = #tpu.dot_dimension_numbers<[1], [0], [0], [1], [0, 0, 1, 1], [], []>} : vector<8x128xbf16>, vector<128x128xbf16>, vector<8x128xf32> -> vector<8x128xf32>
    %c0_170 = arith.constant 0 : index
    %c0_171 = arith.constant 0 : index
    %759 = vector.load %arg7[%c0_170, %c0_171] : memref<1x128xf32, #tpu.memory_space<vmem>>, vector<1x128xf32>
    %760 = vector.broadcast %759 : vector<1x128xf32> to vector<8x128xf32>
    %761 = arith.addf %758, %760 : vector<8x128xf32>
    %c8 = arith.constant 8 : index
    %c0_172 = arith.constant 0 : index
    %762 = vector.load %arg8[%c8, %c0_172] : memref<16x128xf32, #tpu.memory_space<vmem>>, vector<8x128xf32>
    tpu.vector_store %arg8[%c8, %c0_172], %761 {strides = array<i32>} : memref<16x128xf32, #tpu.memory_space<vmem>>, vector<8x128xf32>,
    return
  }
}

</mosaic_0001>

<llo_original>
// kernel: nam_turing_forward.1
$region0: #{nam_turing_forward.1}
  #allocation0 [shape = 'u32[]', space=smem, size = 0x4, offset = 0x4, fixed_abs, tag = 'smem constant byte address 0x4 - core index']
  #allocation1 [shape = 'u32[72,128]{1,0:T(1,128)}', space=vmem, size = 0x9000, scoped, tag = 'internal scratch']
  #allocation2 [shape = 'f32[8,256]{1,0:T(8,128)}', space=vmem, size = 0x2000, scoped, tag = 'scratch operand']
  %s0 = inlined_call_operand.vmem [shape: bf16[16,128], index: 0, kind: input, shape index: {}]
  %s1 = inlined_call_operand.vmem [shape: bf16[128,640], index: 1, kind: input, shape index: {}]
  %s2 = inlined_call_operand.vmem [shape: f32[1,640], index: 2, kind: input, shape index: {}]
  %s3 = inlined_call_operand.vmem [shape: bf16[128,512], index: 3, kind: input, shape index: {}]
  %s4 = inlined_call_operand.vmem [shape: bf16[128,1152], index: 4, kind: input, shape index: {}]
  %s5 = inlined_call_operand.vmem [shape: f32[1,1152], index: 5, kind: input, shape index: {}]
  %s6 = inlined_call_operand.vmem [shape: bf16[128,128], index: 6, kind: input, shape index: {}]
  %s7 = inlined_call_operand.vmem [shape: f32[1,128], index: 7, kind: input, shape index: {}]
  %s8 = inlined_call_operand.vmem [shape: f32[16,128], index: 8, kind: output, shape index: {0}]
  %s9 = inlined_call_operand.vmem [shape: f32[8,256], index: 9, kind: output, shape index: {1}]
  %10 = xla_tuple %s8, %s9
  %s11 = sld [smem:[#allocation0]]
  $region50: #{nam_turing_forward.1} parent=0
    _
  %s13 = ssub.s32 1, %s11
  %s14 = scalar_select 0, %s13, %s11
  // Predicated region
  $region2: #{nam_turing_forward.1} parent=0 // pred_check
    _
  $region3: #{nam_turing_forward.1} parent=0 // pred_check_branch
    %16 = sbr.rel (0) target = $region5
  $region4: #{nam_turing_forward.1} parent=0 // pred_region
    _
  $region5: #{nam_turing_forward.1} parent=0 // pred_fallthru
    _
  // Predicated region
  $region6: #{nam_turing_forward.1} parent=0 // pred_check
    _
  $region7: #{nam_turing_forward.1} parent=0 // pred_check_branch
    %18 = sbr.rel (0) target = $region9
  $region8: #{nam_turing_forward.1} parent=0 // pred_region
    _
  $region9: #{nam_turing_forward.1} parent=0 // pred_fallthru
    _
  // Predicated region
  $region10: #{nam_turing_forward.1} parent=0 // pred_check
    _
  $region11: #{nam_turing_forward.1} parent=0 // pred_check_branch
    %20 = sbr.rel (0) target = $region13
  $region12: #{nam_turing_forward.1} parent=0 // pred_region
    _
  $region13: #{nam_turing_forward.1} parent=0 // pred_fallthru
    _
  // Predicated region
  $region14: #{nam_turing_forward.1} parent=0 // pred_check
    _
  $region15: #{nam_turing_forward.1} parent=0 // pred_check_branch
    %22 = sbr.rel (0) target = $region17
  $region16: #{nam_turing_forward.1} parent=0 // pred_region
    _
  $region17: #{nam_turing_forward.1} parent=0 // pred_fallthru
    _
  // Predicated region
  $region18: #{nam_turing_forward.1} parent=0 // pred_check
    _
  $region19: #{nam_turing_forward.1} parent=0 // pred_check_branch
    %24 = sbr.rel (0) target = $region21
  $region20: #{nam_turing_forward.1} parent=0 // pred_region
    _
  $region21: #{nam_turing_forward.1} parent=0 // pred_fallthru
    _
  // Predicated region
  $region22: #{nam_turing_forward.1} parent=0 // pred_check
    _
  $region23: #{nam_turing_forward.1} parent=0 // pred_check_branch
    %26 = sbr.rel (0) target = $region25
  $region24: #{nam_turing_forward.1} parent=0 // pred_region
    _
  $region25: #{nam_turing_forward.1} parent=0 // pred_fallthru
    _
  // Predicated region
  $region26: #{nam_turing_forward.1} parent=0 // pred_check
    _
  $region27: #{nam_turing_forward.1} parent=0 // pred_check_branch
    %28 = sbr.rel (0) target = $region29
  $region28: #{nam_turing_forward.1} parent=0 // pred_region
    _
  $region29: #{nam_turing_forward.1} parent=0 // pred_fallthru
    _
  // Predicated region
  $region30: #{nam_turing_forward.1} parent=0 // pred_check
    _
  $region31: #{nam_turing_forward.1} parent=0 // pred_check_branch
    %30 = sbr.rel (0) target = $region33
  $region32: #{nam_turing_forward.1} parent=0 // pred_region
    _
  $region33: #{nam_turing_forward.1} parent=0 // pred_fallthru
    _
  %v32 = vld [vmem:[%s0] sm:$0xf]
  %v33 = vld [vmem:[%s0 + $0x4] sm:$0xf]
  %v34 = vld [vmem:[%s1] sm:$0xff]
  %v35 = vld [vmem:[%s1 + $0x8] sm:$0xff]
  %v36 = vld [vmem:[%s1 + $0x10] sm:$0xf]
  %v37 = vld [vmem:[%s1 + $0x14] sm:$0xff]
  %v38 = vld [vmem:[%s1 + $0x1c] sm:$0xff]
  %v39 = vld [vmem:[%s1 + $0x24] sm:$0xf]
  %v40 = vld [vmem:[%s1 + $0x28] sm:$0xff]
  %v41 = vld [vmem:[%s1 + $0x30] sm:$0xff]
  %v42 = vld [vmem:[%s1 + $0x38] sm:$0xf]
  %v43 = vld [vmem:[%s1 + $0x3c] sm:$0xff]
  %v44 = vld [vmem:[%s1 + $0x44] sm:$0xff]
  %v45 = vld [vmem:[%s1 + $0x4c] sm:$0xf]
  %v46 = vld [vmem:[%s1 + $0x50] sm:$0xff]
  %v47 = vld [vmem:[%s1 + $0x58] sm:$0xff]
  %v48 = vld [vmem:[%s1 + $0x60] sm:$0xf]
  %v49 = vld [vmem:[%s1 + $0x64] sm:$0xff]
  %v50 = vld [vmem:[%s1 + $0x6c] sm:$0xff]
  %v51 = vld [vmem:[%s1 + $0x74] sm:$0xf]
  %v52 = vld [vmem:[%s1 + $0x78] sm:$0xff]
  %v53 = vld [vmem:[%s1 + $0x80] sm:$0xff]
  %v54 = vld [vmem:[%s1 + $0x88] sm:$0xf]
  %v55 = vld [vmem:[%s1 + $0x8c] sm:$0xff]
  %v56 = vld [vmem:[%s1 + $0x94] sm:$0xff]
  %v57 = vld [vmem:[%s1 + $0x9c] sm:$0xf]
  %v58 = vld [vmem:[%s1 + $0xa0] sm:$0xff]
  %v59 = vld [vmem:[%s1 + $0xa8] sm:$0xff]
  %v60 = vld [vmem:[%s1 + $0xb0] sm:$0xf]
  %v61 = vld [vmem:[%s1 + $0xb4] sm:$0xff]
  %v62 = vld [vmem:[%s1 + $0xbc] sm:$0xff]
  %v63 = vld [vmem:[%s1 + $0xc4] sm:$0xf]
  %v64 = vld [vmem:[%s1 + $0xc8] sm:$0xff]
  %v65 = vld [vmem:[%s1 + $0xd0] sm:$0xff]
  %v66 = vld [vmem:[%s1 + $0xd8] sm:$0xf]
  %v67 = vld [vmem:[%s1 + $0xdc] sm:$0xff]
  %v68 = vld [vmem:[%s1 + $0xe4] sm:$0xff]
  %v69 = vld [vmem:[%s1 + $0xec] sm:$0xf]
  %v70 = vld [vmem:[%s1 + $0xf0] sm:$0xff]
  %v71 = vld [vmem:[%s1 + $0xf8] sm:$0xff]
  %v72 = vld [vmem:[%s1 + $0x100] sm:$0xf]
  %v73 = vld [vmem:[%s1 + $0x104] sm:$0xff]
  %v74 = vld [vmem:[%s1 + $0x10c] sm:$0xff]
  %v75 = vld [vmem:[%s1 + $0x114] sm:$0xf]
  %v76 = vld [vmem:[%s1 + $0x118] sm:$0xff]
  %v77 = vld [vmem:[%s1 + $0x120] sm:$0xff]
  %v78 = vld [vmem:[%s1 + $0x128] sm:$0xf]
  %v79 = vld [vmem:[%s1 + $0x12c] sm:$0xff]
  %v80 = vld [vmem:[%s1 + $0x134] sm:$0xff]
  %v81 = vld [vmem:[%s1 + $0x13c] sm:$0xf]
  %v82 = vld [vmem:[%s2] sm:$0x1f]
  %v84 = vperm.slane %v82, 0
  %v85 = vperm.slane %v82, 1
  %v86 = vperm.slane %v82, 2
  %v87 = vperm.slane %v82, 3
  %v88 = vperm.slane %v82, 4
  %v96 = vunpack.c.l.b16 %v32
  %v97 = vunpack.c.l.b16 %v33
  %v98 = vpack.c.b16 %v97, %v96
  %v148 = vunpack.c.l.b16 %v34
  %v149 = vunpack.c.h.b16 %v34
  %v150 = vunpack.c.l.b16 %v35
  %v151 = vunpack.c.h.b16 %v35
  %v152 = vunpack.c.l.b16 %v36
  %v153 = vunpack.c.l.b16 %v37
  %v154 = vunpack.c.h.b16 %v37
  %v155 = vunpack.c.l.b16 %v38
  %v156 = vunpack.c.h.b16 %v38
  %v157 = vunpack.c.l.b16 %v39
  %v158 = vunpack.c.l.b16 %v40
  %v159 = vunpack.c.h.b16 %v40
  %v160 = vunpack.c.l.b16 %v41
  %v161 = vunpack.c.h.b16 %v41
  %v162 = vunpack.c.l.b16 %v42
  %v163 = vunpack.c.l.b16 %v43
  %v164 = vunpack.c.h.b16 %v43
  %v165 = vunpack.c.l.b16 %v44
  %v166 = vunpack.c.h.b16 %v44
  %v167 = vunpack.c.l.b16 %v45
  %v168 = vunpack.c.l.b16 %v46
  %v169 = vunpack.c.h.b16 %v46
  %v170 = vunpack.c.l.b16 %v47
  %v171 = vunpack.c.h.b16 %v47
  %v172 = vunpack.c.l.b16 %v48
  %v173 = vunpack.c.l.b16 %v49
  %v174 = vunpack.c.h.b16 %v49
  %v175 = vunpack.c.l.b16 %v50
  %v176 = vunpack.c.h.b16 %v50
  %v177 = vunpack.c.l.b16 %v51
  %v178 = vunpack.c.l.b16 %v52
  %v179 = vunpack.c.h.b16 %v52
  %v180 = vunpack.c.l.b16 %v53
  %v181 = vunpack.c.h.b16 %v53
  %v182 = vunpack.c.l.b16 %v54
  %v183 = vunpack.c.l.b16 %v55
  %v184 = vunpack.c.h.b16 %v55
  %v185 = vunpack.c.l.b16 %v56
  %v186 = vunpack.c.h.b16 %v56
  %v187 = vunpack.c.l.b16 %v57
  %v188 = vunpack.c.l.b16 %v58
  %v189 = vunpack.c.h.b16 %v58
  %v190 = vunpack.c.l.b16 %v59
  %v191 = vunpack.c.h.b16 %v59
  %v192 = vunpack.c.l.b16 %v60
  %v193 = vunpack.c.l.b16 %v61
  %v194 = vunpack.c.h.b16 %v61
  %v195 = vunpack.c.l.b16 %v62
  %v196 = vunpack.c.h.b16 %v62
  %v197 = vunpack.c.l.b16 %v63
  %v198 = vunpack.c.l.b16 %v64
  %v199 = vunpack.c.h.b16 %v64
  %v200 = vunpack.c.l.b16 %v65
  %v201 = vunpack.c.h.b16 %v65
  %v202 = vunpack.c.l.b16 %v66
  %v203 = vunpack.c.l.b16 %v67
  %v204 = vunpack.c.h.b16 %v67
  %v205 = vunpack.c.l.b16 %v68
  %v206 = vunpack.c.h.b16 %v68
  %v207 = vunpack.c.l.b16 %v69
  %v208 = vunpack.c.l.b16 %v70
  %v209 = vunpack.c.h.b16 %v70
  %v210 = vunpack.c.l.b16 %v71
  %v211 = vunpack.c.h.b16 %v71
  %v212 = vunpack.c.l.b16 %v72
  %v213 = vunpack.c.l.b16 %v73
  %v214 = vunpack.c.h.b16 %v73
  %v215 = vunpack.c.l.b16 %v74
  %v216 = vunpack.c.h.b16 %v74
  %v217 = vunpack.c.l.b16 %v75
  %v218 = vunpack.c.l.b16 %v76
  %v219 = vunpack.c.h.b16 %v76
  %v220 = vunpack.c.l.b16 %v77
  %v221 = vunpack.c.h.b16 %v77
  %v222 = vunpack.c.l.b16 %v78
  %v223 = vunpack.c.l.b16 %v79
  %v224 = vunpack.c.h.b16 %v79
  %v225 = vunpack.c.l.b16 %v80
  %v226 = vunpack.c.h.b16 %v80
  %v227 = vunpack.c.l.b16 %v81
  %v228 = vpack.c.b16 %v153, %v148
  %v229 = vpack.c.b16 %v154, %v149
  %v230 = vpack.c.b16 %v155, %v150
  %v231 = vpack.c.b16 %v156, %v151
  %v232 = vpack.c.b16 %v157, %v152
  %v233 = vpack.c.b16 %v163, %v158
  %v234 = vpack.c.b16 %v164, %v159
  %v235 = vpack.c.b16 %v165, %v160
  %v236 = vpack.c.b16 %v166, %v161
  %v237 = vpack.c.b16 %v167, %v162
  %v238 = vpack.c.b16 %v173, %v168
  %v239 = vpack.c.b16 %v174, %v169
  %v240 = vpack.c.b16 %v175, %v170
  %v241 = vpack.c.b16 %v176, %v171
  %v242 = vpack.c.b16 %v177, %v172
  %v243 = vpack.c.b16 %v183, %v178
  %v244 = vpack.c.b16 %v184, %v179
  %v245 = vpack.c.b16 %v185, %v180
  %v246 = vpack.c.b16 %v186, %v181
  %v247 = vpack.c.b16 %v187, %v182
  %v248 = vpack.c.b16 %v193, %v188
  %v249 = vpack.c.b16 %v194, %v189
  %v250 = vpack.c.b16 %v195, %v190
  %v251 = vpack.c.b16 %v196, %v191
  %v252 = vpack.c.b16 %v197, %v192
  %v253 = vpack.c.b16 %v203, %v198
  %v254 = vpack.c.b16 %v204, %v199
  %v255 = vpack.c.b16 %v205, %v200
  %v256 = vpack.c.b16 %v206, %v201
  %v257 = vpack.c.b16 %v207, %v202
  %v258 = vpack.c.b16 %v213, %v208
  %v259 = vpack.c.b16 %v214, %v209
  %v260 = vpack.c.b16 %v215, %v210
  %v261 = vpack.c.b16 %v216, %v211
  %v262 = vpack.c.b16 %v217, %v212
  %v263 = vpack.c.b16 %v223, %v218
  %v264 = vpack.c.b16 %v224, %v219
  %v265 = vpack.c.b16 %v225, %v220
  %v266 = vpack.c.b16 %v226, %v221
  %v267 = vpack.c.b16 %v227, %v222
  %308 = vmatpush.bf16.msra.mxu0 %v263
  %309 = vmatpush.bf16.msra.mxu0 %v258
  %310 = vmatpush.bf16.msra.mxu0 %v253
  %311 = vmatpush.bf16.msra.mxu0 %v248
  %312 = vmatpush.bf16.msra.mxu0 %v243
  %313 = vmatpush.bf16.msra.mxu0 %v238
  %314 = vmatpush.bf16.msra.mxu0 %v233
  %315 = vmatpush.bf16.msra.mxu0 %v228
  %316 = vmatmul.bf16.gmra.mxu0 %v98
  %v317 = vpop.f32.mrf.mxu0
  %v318 = vadd.f32 %v84, %v317
  %v319 = vpop.f32.mrf.mxu0
  %v320 = vadd.f32 %v84, %v319
  %321 = vdwg.mxu0
  %322 = vmatpush.bf16.msra.mxu0 %v264
  %323 = vmatpush.bf16.msra.mxu0 %v259
  %324 = vmatpush.bf16.msra.mxu0 %v254
  %325 = vmatpush.bf16.msra.mxu0 %v249
  %326 = vmatpush.bf16.msra.mxu0 %v244
  %327 = vmatpush.bf16.msra.mxu0 %v239
  %328 = vmatpush.bf16.msra.mxu0 %v234
  %329 = vmatpush.bf16.msra.mxu0 %v229
  %330 = vmatmul.bf16.gmra.mxu0 %v98
  %v331 = vpop.f32.mrf.mxu0
  %v332 = vadd.f32 %v85, %v331
  %v333 = vpop.f32.mrf.mxu0
  %v334 = vadd.f32 %v85, %v333
  %335 = vdwg.mxu0
  %336 = vmatpush.bf16.msra.mxu0 %v265
  %337 = vmatpush.bf16.msra.mxu0 %v260
  %338 = vmatpush.bf16.msra.mxu0 %v255
  %339 = vmatpush.bf16.msra.mxu0 %v250
  %340 = vmatpush.bf16.msra.mxu0 %v245
  %341 = vmatpush.bf16.msra.mxu0 %v240
  %342 = vmatpush.bf16.msra.mxu0 %v235
  %343 = vmatpush.bf16.msra.mxu0 %v230
  %344 = vmatmul.bf16.gmra.mxu0 %v98
  %v345 = vpop.f32.mrf.mxu0
  %v346 = vadd.f32 %v86, %v345
  %v347 = vpop.f32.mrf.mxu0
  %v348 = vadd.f32 %v86, %v347
  %349 = vdwg.mxu0
  %350 = vmatpush.bf16.msra.mxu0 %v266
  %351 = vmatpush.bf16.msra.mxu0 %v261
  %352 = vmatpush.bf16.msra.mxu0 %v256
  %353 = vmatpush.bf16.msra.mxu0 %v251
  %354 = vmatpush.bf16.msra.mxu0 %v246
  %355 = vmatpush.bf16.msra.mxu0 %v241
  %356 = vmatpush.bf16.msra.mxu0 %v236
  %357 = vmatpush.bf16.msra.mxu0 %v231
  %358 = vmatmul.bf16.gmra.mxu0 %v98
  %v359 = vpop.f32.mrf.mxu0
  %v360 = vadd.f32 %v87, %v359
  %v361 = vpop.f32.mrf.mxu0
  %v362 = vadd.f32 %v87, %v361
  %363 = vdwg.mxu0
  %364 = vmatpush.bf16.msra.mxu0 %v267
  %365 = vmatpush.bf16.msra.mxu0 %v262
  %366 = vmatpush.bf16.msra.mxu0 %v257
  %367 = vmatpush.bf16.msra.mxu0 %v252
  %368 = vmatpush.bf16.msra.mxu0 %v247
  %369 = vmatpush.bf16.msra.mxu0 %v242
  %370 = vmatpush.bf16.msra.mxu0 %v237
  %371 = vmatpush.bf16.msra.mxu0 %v232
  %372 = vmatmul.bf16.gmra.mxu0 %v98
  %v373 = vpop.f32.mrf.mxu0
  %v374 = vadd.f32 %v88, %v373
  %v375 = vpop.f32.mrf.mxu0
  %v376 = vadd.f32 %v88, %v375
  %377 = vdwg.mxu0
  %v378 = vld [vmem:[%s3] sm:$0xff]
  %v379 = vld [vmem:[%s3 + $0x8] sm:$0xff]
  %v380 = vld [vmem:[%s3 + $0x10] sm:$0xff]
  %v381 = vld [vmem:[%s3 + $0x18] sm:$0xff]
  %v382 = vld [vmem:[%s3 + $0x20] sm:$0xff]
  %v383 = vld [vmem:[%s3 + $0x28] sm:$0xff]
  %v384 = vld [vmem:[%s3 + $0x30] sm:$0xff]
  %v385 = vld [vmem:[%s3 + $0x38] sm:$0xff]
  %v386 = vld [vmem:[%s3 + $0x40] sm:$0xff]
  %v387 = vld [vmem:[%s3 + $0x48] sm:$0xff]
  %v388 = vld [vmem:[%s3 + $0x50] sm:$0xff]
  %v389 = vld [vmem:[%s3 + $0x58] sm:$0xff]
  %v390 = vld [vmem:[%s3 + $0x60] sm:$0xff]
  %v391 = vld [vmem:[%s3 + $0x68] sm:$0xff]
  %v392 = vld [vmem:[%s3 + $0x70] sm:$0xff]
  %v393 = vld [vmem:[%s3 + $0x78] sm:$0xff]
  %v394 = vld [vmem:[%s3 + $0x80] sm:$0xff]
  %v395 = vld [vmem:[%s3 + $0x88] sm:$0xff]
  %v396 = vld [vmem:[%s3 + $0x90] sm:$0xff]
  %v397 = vld [vmem:[%s3 + $0x98] sm:$0xff]
  %v398 = vld [vmem:[%s3 + $0xa0] sm:$0xff]
  %v399 = vld [vmem:[%s3 + $0xa8] sm:$0xff]
  %v400 = vld [vmem:[%s3 + $0xb0] sm:$0xff]
  %v401 = vld [vmem:[%s3 + $0xb8] sm:$0xff]
  %v402 = vld [vmem:[%s3 + $0xc0] sm:$0xff]
  %v403 = vld [vmem:[%s3 + $0xc8] sm:$0xff]
  %v404 = vld [vmem:[%s3 + $0xd0] sm:$0xff]
  %v405 = vld [vmem:[%s3 + $0xd8] sm:$0xff]
  %v406 = vld [vmem:[%s3 + $0xe0] sm:$0xff]
  %v407 = vld [vmem:[%s3 + $0xe8] sm:$0xff]
  %v408 = vld [vmem:[%s3 + $0xf0] sm:$0xff]
  %v409 = vld [vmem:[%s3 + $0xf8] sm:$0xff]
  %v414 = vrot.slane %v334, 7
  %v415 = vrot.slane %v348, 7
  %v416 = vrot.slane %v362, 7
  %v417 = vrot.slane %v376, 7
  %vm422 = vcmask 1040384
  %v423 = vsel %vm422, %v332, %v414
  %v424 = vsel %vm422, %v346, %v415
  %v425 = vsel %vm422, %v360, %v416
  %v426 = vsel %vm422, %v374, %v417
  %v459 = vunpack.c.l.b16 %v378
  %v460 = vunpack.c.h.b16 %v378
  %v461 = vunpack.c.l.b16 %v379
  %v462 = vunpack.c.h.b16 %v379
  %v463 = vunpack.c.l.b16 %v380
  %v464 = vunpack.c.h.b16 %v380
  %v465 = vunpack.c.l.b16 %v381
  %v466 = vunpack.c.h.b16 %v381
  %v467 = vunpack.c.l.b16 %v382
  %v468 = vunpack.c.h.b16 %v382
  %v469 = vunpack.c.l.b16 %v383
  %v470 = vunpack.c.h.b16 %v383
  %v471 = vunpack.c.l.b16 %v384
  %v472 = vunpack.c.h.b16 %v384
  %v473 = vunpack.c.l.b16 %v385
  %v474 = vunpack.c.h.b16 %v385
  %v475 = vunpack.c.l.b16 %v386
  %v476 = vunpack.c.h.b16 %v386
  %v477 = vunpack.c.l.b16 %v387
  %v478 = vunpack.c.h.b16 %v387
  %v479 = vunpack.c.l.b16 %v388
  %v480 = vunpack.c.h.b16 %v388
  %v481 = vunpack.c.l.b16 %v389
  %v482 = vunpack.c.h.b16 %v389
  %v483 = vunpack.c.l.b16 %v390
  %v484 = vunpack.c.h.b16 %v390
  %v485 = vunpack.c.l.b16 %v391
  %v486 = vunpack.c.h.b16 %v391
  %v487 = vunpack.c.l.b16 %v392
  %v488 = vunpack.c.h.b16 %v392
  %v489 = vunpack.c.l.b16 %v393
  %v490 = vunpack.c.h.b16 %v393
  %v491 = vunpack.c.l.b16 %v394
  %v492 = vunpack.c.h.b16 %v394
  %v493 = vunpack.c.l.b16 %v395
  %v494 = vunpack.c.h.b16 %v395
  %v495 = vunpack.c.l.b16 %v396
  %v496 = vunpack.c.h.b16 %v396
  %v497 = vunpack.c.l.b16 %v397
  %v498 = vunpack.c.h.b16 %v397
  %v499 = vunpack.c.l.b16 %v398
  %v500 = vunpack.c.h.b16 %v398
  %v501 = vunpack.c.l.b16 %v399
  %v502 = vunpack.c.h.b16 %v399
  %v503 = vunpack.c.l.b16 %v400
  %v504 = vunpack.c.h.b16 %v400
  %v505 = vunpack.c.l.b16 %v401
  %v506 = vunpack.c.h.b16 %v401
  %v507 = vunpack.c.l.b16 %v402
  %v508 = vunpack.c.h.b16 %v402
  %v509 = vunpack.c.l.b16 %v403
  %v510 = vunpack.c.h.b16 %v403
  %v511 = vunpack.c.l.b16 %v404
  %v512 = vunpack.c.h.b16 %v404
  %v513 = vunpack.c.l.b16 %v405
  %v514 = vunpack.c.h.b16 %v405
  %v515 = vunpack.c.l.b16 %v406
  %v516 = vunpack.c.h.b16 %v406
  %v517 = vunpack.c.l.b16 %v407
  %v518 = vunpack.c.h.b16 %v407
  %v519 = vunpack.c.l.b16 %v408
  %v520 = vunpack.c.h.b16 %v408
  %v521 = vunpack.c.l.b16 %v409
  %v522 = vunpack.c.h.b16 %v409
  %v523 = vpack.c.b16 %v463, %v459
  %v524 = vpack.c.b16 %v464, %v460
  %v525 = vpack.c.b16 %v465, %v461
  %v526 = vpack.c.b16 %v466, %v462
  %v527 = vpack.c.b16 %v471, %v467
  %v528 = vpack.c.b16 %v472, %v468
  %v529 = vpack.c.b16 %v473, %v469
  %v530 = vpack.c.b16 %v474, %v470
  %v531 = vpack.c.b16 %v479, %v475
  %v532 = vpack.c.b16 %v480, %v476
  %v533 = vpack.c.b16 %v481, %v477
  %v534 = vpack.c.b16 %v482, %v478
  %v535 = vpack.c.b16 %v487, %v483
  %v536 = vpack.c.b16 %v488, %v484
  %v537 = vpack.c.b16 %v489, %v485
  %v538 = vpack.c.b16 %v490, %v486
  %v539 = vpack.c.b16 %v495, %v491
  %v540 = vpack.c.b16 %v496, %v492
  %v541 = vpack.c.b16 %v497, %v493
  %v542 = vpack.c.b16 %v498, %v494
  %v543 = vpack.c.b16 %v503, %v499
  %v544 = vpack.c.b16 %v504, %v500
  %v545 = vpack.c.b16 %v505, %v501
  %v546 = vpack.c.b16 %v506, %v502
  %v547 = vpack.c.b16 %v511, %v507
  %v548 = vpack.c.b16 %v512, %v508
  %v549 = vpack.c.b16 %v513, %v509
  %v550 = vpack.c.b16 %v514, %v510
  %v551 = vpack.c.b16 %v519, %v515
  %v552 = vpack.c.b16 %v520, %v516
  %v553 = vpack.c.b16 %v521, %v517
  %v554 = vpack.c.b16 %v522, %v518
  %587 = vmatpush.bf16.msra.mxu0 %v551
  %588 = vmatpush.bf16.msra.mxu0 %v547
  %589 = vmatpush.bf16.msra.mxu0 %v543
  %590 = vmatpush.bf16.msra.mxu0 %v539
  %591 = vmatpush.bf16.msra.mxu0 %v535
  %592 = vmatpush.bf16.msra.mxu0 %v531
  %593 = vmatpush.bf16.msra.mxu0 %v527
  %594 = vmatpush.bf16.msra.mxu0 %v523
  %595 = vmatmul.bf16.gmra.mxu0 0
  %v596 = vpop.f32.mrf.mxu0
  %v597 = vadd.f32 0.0, %v596
  %v598 = vpop.f32.mrf.mxu0
  %599 = vdwg.mxu0
  %600 = vmatpush.bf16.msra.mxu0 %v552
  %601 = vmatpush.bf16.msra.mxu0 %v548
  %602 = vmatpush.bf16.msra.mxu0 %v544
  %603 = vmatpush.bf16.msra.mxu0 %v540
  %604 = vmatpush.bf16.msra.mxu0 %v536
  %605 = vmatpush.bf16.msra.mxu0 %v532
  %606 = vmatpush.bf16.msra.mxu0 %v528
  %607 = vmatpush.bf16.msra.mxu0 %v524
  %608 = vmatmul.bf16.gmra.mxu0 0
  %v609 = vpop.f32.mrf.mxu0
  %v610 = vadd.f32 0.0, %v609
  %v611 = vpop.f32.mrf.mxu0
  %612 = vdwg.mxu0
  %613 = vmatpush.bf16.msra.mxu0 %v553
  %614 = vmatpush.bf16.msra.mxu0 %v549
  %615 = vmatpush.bf16.msra.mxu0 %v545
  %616 = vmatpush.bf16.msra.mxu0 %v541
  %617 = vmatpush.bf16.msra.mxu0 %v537
  %618 = vmatpush.bf16.msra.mxu0 %v533
  %619 = vmatpush.bf16.msra.mxu0 %v529
  %620 = vmatpush.bf16.msra.mxu0 %v525
  %621 = vmatmul.bf16.gmra.mxu0 0
  %v622 = vpop.f32.mrf.mxu0
  %v623 = vadd.f32 0.0, %v622
  %v624 = vpop.f32.mrf.mxu0
  %625 = vdwg.mxu0
  %626 = vmatpush.bf16.msra.mxu0 %v554
  %627 = vmatpush.bf16.msra.mxu0 %v550
  %628 = vmatpush.bf16.msra.mxu0 %v546
  %629 = vmatpush.bf16.msra.mxu0 %v542
  %630 = vmatpush.bf16.msra.mxu0 %v538
  %631 = vmatpush.bf16.msra.mxu0 %v534
  %632 = vmatpush.bf16.msra.mxu0 %v530
  %633 = vmatpush.bf16.msra.mxu0 %v526
  %634 = vmatmul.bf16.gmra.mxu0 0
  %v635 = vpop.f32.mrf.mxu0
  %v636 = vadd.f32 0.0, %v635
  %v637 = vpop.f32.mrf.mxu0
  %638 = vdwg.mxu0
  %v639 = vadd.f32 %v423, %v597
  %v640 = vadd.f32 %v424, %v610
  %v641 = vadd.f32 %v425, %v623
  %v642 = vadd.f32 %v426, %v636
  %v643 = vmul.f32 %v639, 0.5
  %v644 = vtanh.pop %v643
  %v645 = vadd.f32 %v644, 1.0
  %v646 = vmul.f32 %v645, 0.5
  %v647 = vmul.f32 %v640, 0.5
  %v648 = vtanh.pop %v647
  %v649 = vadd.f32 %v648, 1.0
  %v650 = vmul.f32 %v649, 0.5
  %v651 = vtanh.pop %v641
  %v652 = vmul.f32 %v642, 0.5
  %v653 = vtanh.pop %v652
  %v654 = vadd.f32 %v653, 1.0
  %v655 = vmul.f32 %v654, 0.5
  %v656 = vmul.f32 %v650, 0.0
  %v657 = vmul.f32 %v646, %v651
  %v658 = vadd.f32 %v656, %v657
  %v659 = vtanh.pop %v658
  %v660 = vmul.f32 %v655, %v659
  %v665 = vrot.slane %v332, 1
  %v666 = vrot.slane %v346, 1
  %v667 = vrot.slane %v360, 1
  %v668 = vrot.slane %v374, 1
  %v673 = vsel %vm422, %v665, %v334
  %v674 = vsel %vm422, %v666, %v348
  %v675 = vsel %vm422, %v667, %v362
  %v676 = vsel %vm422, %v668, %v376
  %v677 = vpack.c.bf16 %v660, %v660
  %678 = vmatpush.bf16.msra.mxu0 %v551
  %679 = vmatpush.bf16.msra.mxu0 %v547
  %680 = vmatpush.bf16.msra.mxu0 %v543
  %681 = vmatpush.bf16.msra.mxu0 %v539
  %682 = vmatpush.bf16.msra.mxu0 %v535
  %683 = vmatpush.bf16.msra.mxu0 %v531
  %684 = vmatpush.bf16.msra.mxu0 %v527
  %685 = vmatpush.bf16.msra.mxu0 %v523
  %686 = vmatmul.bf16.gmra.mxu0 %v677
  %v687 = vpop.f32.mrf.mxu0
  %v688 = vadd.f32 0.0, %v687
  %v689 = vpop.f32.mrf.mxu0
  %690 = vdwg.mxu0
  %691 = vmatpush.bf16.msra.mxu0 %v552
  %692 = vmatpush.bf16.msra.mxu0 %v548
  %693 = vmatpush.bf16.msra.mxu0 %v544
  %694 = vmatpush.bf16.msra.mxu0 %v540
  %695 = vmatpush.bf16.msra.mxu0 %v536
  %696 = vmatpush.bf16.msra.mxu0 %v532
  %697 = vmatpush.bf16.msra.mxu0 %v528
  %698 = vmatpush.bf16.msra.mxu0 %v524
  %699 = vmatmul.bf16.gmra.mxu0 %v677
  %v700 = vpop.f32.mrf.mxu0
  %v701 = vadd.f32 0.0, %v700
  %v702 = vpop.f32.mrf.mxu0
  %703 = vdwg.mxu0
  %704 = vmatpush.bf16.msra.mxu0 %v553
  %705 = vmatpush.bf16.msra.mxu0 %v549
  %706 = vmatpush.bf16.msra.mxu0 %v545
  %707 = vmatpush.bf16.msra.mxu0 %v541
  %708 = vmatpush.bf16.msra.mxu0 %v537
  %709 = vmatpush.bf16.msra.mxu0 %v533
  %710 = vmatpush.bf16.msra.mxu0 %v529
  %711 = vmatpush.bf16.msra.mxu0 %v525
  %712 = vmatmul.bf16.gmra.mxu0 %v677
  %v713 = vpop.f32.mrf.mxu0
  %v714 = vadd.f32 0.0, %v713
  %v715 = vpop.f32.mrf.mxu0
  %716 = vdwg.mxu0
  %717 = vmatpush.bf16.msra.mxu0 %v554
  %718 = vmatpush.bf16.msra.mxu0 %v550
  %719 = vmatpush.bf16.msra.mxu0 %v546
  %720 = vmatpush.bf16.msra.mxu0 %v542
  %721 = vmatpush.bf16.msra.mxu0 %v538
  %722 = vmatpush.bf16.msra.mxu0 %v534
  %723 = vmatpush.bf16.msra.mxu0 %v530
  %724 = vmatpush.bf16.msra.mxu0 %v526
  %725 = vmatmul.bf16.gmra.mxu0 %v677
  %v726 = vpop.f32.mrf.mxu0
  %v727 = vadd.f32 0.0, %v726
  %v728 = vpop.f32.mrf.mxu0
  %729 = vdwg.mxu0
  %v730 = vadd.f32 %v673, %v688
  %v731 = vadd.f32 %v674, %v701
  %v732 = vadd.f32 %v675, %v714
  %v733 = vadd.f32 %v676, %v727
  %v734 = vmul.f32 %v730, 0.5
  %v735 = vtanh.pop %v734
  %v736 = vadd.f32 %v735, 1.0
  %v737 = vmul.f32 %v736, 0.5
  %v738 = vmul.f32 %v731, 0.5
  %v739 = vtanh.pop %v738
  %v740 = vadd.f32 %v739, 1.0
  %v741 = vmul.f32 %v740, 0.5
  %v742 = vtanh.pop %v732
  %v743 = vmul.f32 %v733, 0.5
  %v744 = vtanh.pop %v743
  %v745 = vadd.f32 %v744, 1.0
  %v746 = vmul.f32 %v745, 0.5
  %v747 = vmul.f32 %v741, %v658
  %v748 = vmul.f32 %v737, %v742
  %v749 = vadd.f32 %v747, %v748
  %v750 = vtanh.pop %v749
  %v751 = vmul.f32 %v746, %v750
  %v752 = vrot.slane %v332, 2
  %v753 = vrot.slane %v346, 2
  %v754 = vrot.slane %v360, 2
  %v755 = vrot.slane %v374, 2
  %v760 = vrot.slane %v334, 1
  %v761 = vrot.slane %v348, 1
  %v762 = vrot.slane %v362, 1
  %v763 = vrot.slane %v376, 1
  %v768 = vsel %vm422, %v752, %v760
  %v769 = vsel %vm422, %v753, %v761
  %v770 = vsel %vm422, %v754, %v762
  %v771 = vsel %vm422, %v755, %v763
  %v772 = vpack.c.bf16 %v751, %v751
  %773 = vmatpush.bf16.msra.mxu0 %v551
  %774 = vmatpush.bf16.msra.mxu0 %v547
  %775 = vmatpush.bf16.msra.mxu0 %v543
  %776 = vmatpush.bf16.msra.mxu0 %v539
  %777 = vmatpush.bf16.msra.mxu0 %v535
  %778 = vmatpush.bf16.msra.mxu0 %v531
  %779 = vmatpush.bf16.msra.mxu0 %v527
  %780 = vmatpush.bf16.msra.mxu0 %v523
  %781 = vmatmul.bf16.gmra.mxu0 %v772
  %v782 = vpop.f32.mrf.mxu0
  %v783 = vadd.f32 0.0, %v782
  %v784 = vpop.f32.mrf.mxu0
  %785 = vdwg.mxu0
  %786 = vmatpush.bf16.msra.mxu0 %v552
  %787 = vmatpush.bf16.msra.mxu0 %v548
  %788 = vmatpush.bf16.msra.mxu0 %v544
  %789 = vmatpush.bf16.msra.mxu0 %v540
  %790 = vmatpush.bf16.msra.mxu0 %v536
  %791 = vmatpush.bf16.msra.mxu0 %v532
  %792 = vmatpush.bf16.msra.mxu0 %v528
  %793 = vmatpush.bf16.msra.mxu0 %v524
  %794 = vmatmul.bf16.gmra.mxu0 %v772
  %v795 = vpop.f32.mrf.mxu0
  %v796 = vadd.f32 0.0, %v795
  %v797 = vpop.f32.mrf.mxu0
  %798 = vdwg.mxu0
  %799 = vmatpush.bf16.msra.mxu0 %v553
  %800 = vmatpush.bf16.msra.mxu0 %v549
  %801 = vmatpush.bf16.msra.mxu0 %v545
  %802 = vmatpush.bf16.msra.mxu0 %v541
  %803 = vmatpush.bf16.msra.mxu0 %v537
  %804 = vmatpush.bf16.msra.mxu0 %v533
  %805 = vmatpush.bf16.msra.mxu0 %v529
  %806 = vmatpush.bf16.msra.mxu0 %v525
  %807 = vmatmul.bf16.gmra.mxu0 %v772
  %v808 = vpop.f32.mrf.mxu0
  %v809 = vadd.f32 0.0, %v808
  %v810 = vpop.f32.mrf.mxu0
  %811 = vdwg.mxu0
  %812 = vmatpush.bf16.msra.mxu0 %v554
  %813 = vmatpush.bf16.msra.mxu0 %v550
  %814 = vmatpush.bf16.msra.mxu0 %v546
  %815 = vmatpush.bf16.msra.mxu0 %v542
  %816 = vmatpush.bf16.msra.mxu0 %v538
  %817 = vmatpush.bf16.msra.mxu0 %v534
  %818 = vmatpush.bf16.msra.mxu0 %v530
  %819 = vmatpush.bf16.msra.mxu0 %v526
  %820 = vmatmul.bf16.gmra.mxu0 %v772
  %v821 = vpop.f32.mrf.mxu0
  %v822 = vadd.f32 0.0, %v821
  %v823 = vpop.f32.mrf.mxu0
  %824 = vdwg.mxu0
  %v825 = vadd.f32 %v768, %v783
  %v826 = vadd.f32 %v769, %v796
  %v827 = vadd.f32 %v770, %v809
  %v828 = vadd.f32 %v771, %v822
  %v829 = vmul.f32 %v825, 0.5
  %v830 = vtanh.pop %v829
  %v831 = vadd.f32 %v830, 1.0
  %v832 = vmul.f32 %v831, 0.5
  %v833 = vmul.f32 %v826, 0.5
  %v834 = vtanh.pop %v833
  %v835 = vadd.f32 %v834, 1.0
  %v836 = vmul.f32 %v835, 0.5
  %v837 = vtanh.pop %v827
  %v838 = vmul.f32 %v828, 0.5
  %v839 = vtanh.pop %v838
  %v840 = vadd.f32 %v839, 1.0
  %v841 = vmul.f32 %v840, 0.5
  %v842 = vmul.f32 %v836, %v749
  %v843 = vmul.f32 %v832, %v837
  %v844 = vadd.f32 %v842, %v843
  %v845 = vtanh.pop %v844
  %v846 = vmul.f32 %v841, %v845
  %v847 = vrot.slane %v332, 3
  %v848 = vrot.slane %v346, 3
  %v849 = vrot.slane %v360, 3
  %v850 = vrot.slane %v374, 3
  %v855 = vrot.slane %v334, 2
  %v856 = vrot.slane %v348, 2
  %v857 = vrot.slane %v362, 2
  %v858 = vrot.slane %v376, 2
  %v863 = vsel %vm422, %v847, %v855
  %v864 = vsel %vm422, %v848, %v856
  %v865 = vsel %vm422, %v849, %v857
  %v866 = vsel %vm422, %v850, %v858
  %v867 = vpack.c.bf16 %v846, %v846
  %868 = vmatpush.bf16.msra.mxu0 %v551
  %869 = vmatpush.bf16.msra.mxu0 %v547
  %870 = vmatpush.bf16.msra.mxu0 %v543
  %871 = vmatpush.bf16.msra.mxu0 %v539
  %872 = vmatpush.bf16.msra.mxu0 %v535
  %873 = vmatpush.bf16.msra.mxu0 %v531
  %874 = vmatpush.bf16.msra.mxu0 %v527
  %875 = vmatpush.bf16.msra.mxu0 %v523
  %876 = vmatmul.bf16.gmra.mxu0 %v867
  %v877 = vpop.f32.mrf.mxu0
  %v878 = vadd.f32 0.0, %v877
  %v879 = vpop.f32.mrf.mxu0
  %880 = vdwg.mxu0
  %881 = vmatpush.bf16.msra.mxu0 %v552
  %882 = vmatpush.bf16.msra.mxu0 %v548
  %883 = vmatpush.bf16.msra.mxu0 %v544
  %884 = vmatpush.bf16.msra.mxu0 %v540
  %885 = vmatpush.bf16.msra.mxu0 %v536
  %886 = vmatpush.bf16.msra.mxu0 %v532
  %887 = vmatpush.bf16.msra.mxu0 %v528
  %888 = vmatpush.bf16.msra.mxu0 %v524
  %889 = vmatmul.bf16.gmra.mxu0 %v867
  %v890 = vpop.f32.mrf.mxu0
  %v891 = vadd.f32 0.0, %v890
  %v892 = vpop.f32.mrf.mxu0
  %893 = vdwg.mxu0
  %894 = vmatpush.bf16.msra.mxu0 %v553
  %895 = vmatpush.bf16.msra.mxu0 %v549
  %896 = vmatpush.bf16.msra.mxu0 %v545
  %897 = vmatpush.bf16.msra.mxu0 %v541
  %898 = vmatpush.bf16.msra.mxu0 %v537
  %899 = vmatpush.bf16.msra.mxu0 %v533
  %900 = vmatpush.bf16.msra.mxu0 %v529
  %901 = vmatpush.bf16.msra.mxu0 %v525
  %902 = vmatmul.bf16.gmra.mxu0 %v867
  %v903 = vpop.f32.mrf.mxu0
  %v904 = vadd.f32 0.0, %v903
  %v905 = vpop.f32.mrf.mxu0
  %906 = vdwg.mxu0
  %907 = vmatpush.bf16.msra.mxu0 %v554
  %908 = vmatpush.bf16.msra.mxu0 %v550
  %909 = vmatpush.bf16.msra.mxu0 %v546
  %910 = vmatpush.bf16.msra.mxu0 %v542
  %911 = vmatpush.bf16.msra.mxu0 %v538
  %912 = vmatpush.bf16.msra.mxu0 %v534
  %913 = vmatpush.bf16.msra.mxu0 %v530
  %914 = vmatpush.bf16.msra.mxu0 %v526
  %915 = vmatmul.bf16.gmra.mxu0 %v867
  %v916 = vpop.f32.mrf.mxu0
  %v917 = vadd.f32 0.0, %v916
  %v918 = vpop.f32.mrf.mxu0
  %919 = vdwg.mxu0
  %v920 = vadd.f32 %v863, %v878
  %v921 = vadd.f32 %v864, %v891
  %v922 = vadd.f32 %v865, %v904
  %v923 = vadd.f32 %v866, %v917
  %v924 = vmul.f32 %v920, 0.5
  %v925 = vtanh.pop %v924
  %v926 = vadd.f32 %v925, 1.0
  %v927 = vmul.f32 %v926, 0.5
  %v928 = vmul.f32 %v921, 0.5
  %v929 = vtanh.pop %v928
  %v930 = vadd.f32 %v929, 1.0
  %v931 = vmul.f32 %v930, 0.5
  %v932 = vtanh.pop %v922
  %v933 = vmul.f32 %v923, 0.5
  %v934 = vtanh.pop %v933
  %v935 = vadd.f32 %v934, 1.0
  %v936 = vmul.f32 %v935, 0.5
  %v937 = vmul.f32 %v931, %v844
  %v938 = vmul.f32 %v927, %v932
  %v939 = vadd.f32 %v937, %v938
  %v940 = vtanh.pop %v939
  %v941 = vmul.f32 %v936, %v940
  %v942 = vrot.slane %v332, 4
  %v943 = vrot.slane %v346, 4
  %v944 = vrot.slane %v360, 4
  %v945 = vrot.slane %v374, 4
  %v950 = vrot.slane %v334, 3
  %v951 = vrot.slane %v348, 3
  %v952 = vrot.slane %v362, 3
  %v953 = vrot.slane %v376, 3
  %v958 = vsel %vm422, %v942, %v950
  %v959 = vsel %vm422, %v943, %v951
  %v960 = vsel %vm422, %v944, %v952
  %v961 = vsel %vm422, %v945, %v953
  %v962 = vpack.c.bf16 %v941, %v941
  %963 = vmatpush.bf16.msra.mxu0 %v551
  %964 = vmatpush.bf16.msra.mxu0 %v547
  %965 = vmatpush.bf16.msra.mxu0 %v543
  %966 = vmatpush.bf16.msra.mxu0 %v539
  %967 = vmatpush.bf16.msra.mxu0 %v535
  %968 = vmatpush.bf16.msra.mxu0 %v531
  %969 = vmatpush.bf16.msra.mxu0 %v527
  %970 = vmatpush.bf16.msra.mxu0 %v523
  %971 = vmatmul.bf16.gmra.mxu0 %v962
  %v972 = vpop.f32.mrf.mxu0
  %v973 = vadd.f32 0.0, %v972
  %v974 = vpop.f32.mrf.mxu0
  %975 = vdwg.mxu0
  %976 = vmatpush.bf16.msra.mxu0 %v552
  %977 = vmatpush.bf16.msra.mxu0 %v548
  %978 = vmatpush.bf16.msra.mxu0 %v544
  %979 = vmatpush.bf16.msra.mxu0 %v540
  %980 = vmatpush.bf16.msra.mxu0 %v536
  %981 = vmatpush.bf16.msra.mxu0 %v532
  %982 = vmatpush.bf16.msra.mxu0 %v528
  %983 = vmatpush.bf16.msra.mxu0 %v524
  %984 = vmatmul.bf16.gmra.mxu0 %v962
  %v985 = vpop.f32.mrf.mxu0
  %v986 = vadd.f32 0.0, %v985
  %v987 = vpop.f32.mrf.mxu0
  %988 = vdwg.mxu0
  %989 = vmatpush.bf16.msra.mxu0 %v553
  %990 = vmatpush.bf16.msra.mxu0 %v549
  %991 = vmatpush.bf16.msra.mxu0 %v545
  %992 = vmatpush.bf16.msra.mxu0 %v541
  %993 = vmatpush.bf16.msra.mxu0 %v537
  %994 = vmatpush.bf16.msra.mxu0 %v533
  %995 = vmatpush.bf16.msra.mxu0 %v529
  %996 = vmatpush.bf16.msra.mxu0 %v525
  %997 = vmatmul.bf16.gmra.mxu0 %v962
  %v998 = vpop.f32.mrf.mxu0
  %v999 = vadd.f32 0.0, %v998
  %v1000 = vpop.f32.mrf.mxu0
  %1001 = vdwg.mxu0
  %1002 = vmatpush.bf16.msra.mxu0 %v554
  %1003 = vmatpush.bf16.msra.mxu0 %v550
  %1004 = vmatpush.bf16.msra.mxu0 %v546
  %1005 = vmatpush.bf16.msra.mxu0 %v542
  %1006 = vmatpush.bf16.msra.mxu0 %v538
  %1007 = vmatpush.bf16.msra.mxu0 %v534
  %1008 = vmatpush.bf16.msra.mxu0 %v530
  %1009 = vmatpush.bf16.msra.mxu0 %v526
  %1010 = vmatmul.bf16.gmra.mxu0 %v962
  %v1011 = vpop.f32.mrf.mxu0
  %v1012 = vadd.f32 0.0, %v1011
  %v1013 = vpop.f32.mrf.mxu0
  %1014 = vdwg.mxu0
  %v1015 = vadd.f32 %v958, %v973
  %v1016 = vadd.f32 %v959, %v986
  %v1017 = vadd.f32 %v960, %v999
  %v1018 = vadd.f32 %v961, %v1012
  %v1019 = vmul.f32 %v1015, 0.5
  %v1020 = vtanh.pop %v1019
  %v1021 = vadd.f32 %v1020, 1.0
  %v1022 = vmul.f32 %v1021, 0.5
  %v1023 = vmul.f32 %v1016, 0.5
  %v1024 = vtanh.pop %v1023
  %v1025 = vadd.f32 %v1024, 1.0
  %v1026 = vmul.f32 %v1025, 0.5
  %v1027 = vtanh.pop %v1017
  %v1028 = vmul.f32 %v1018, 0.5
  %v1029 = vtanh.pop %v1028
  %v1030 = vadd.f32 %v1029, 1.0
  %v1031 = vmul.f32 %v1030, 0.5
  %v1032 = vmul.f32 %v1026, %v939
  %v1033 = vmul.f32 %v1022, %v1027
  %v1034 = vadd.f32 %v1032, %v1033
  %v1035 = vtanh.pop %v1034
  %v1036 = vmul.f32 %v1031, %v1035
  %v1037 = vrot.slane %v332, 5
  %v1038 = vrot.slane %v346, 5
  %v1039 = vrot.slane %v360, 5
  %v1040 = vrot.slane %v374, 5
  %v1045 = vrot.slane %v334, 4
  %v1046 = vrot.slane %v348, 4
  %v1047 = vrot.slane %v362, 4
  %v1048 = vrot.slane %v376, 4
  %v1053 = vsel %vm422, %v1037, %v1045
  %v1054 = vsel %vm422, %v1038, %v1046
  %v1055 = vsel %vm422, %v1039, %v1047
  %v1056 = vsel %vm422, %v1040, %v1048
  %v1057 = vpack.c.bf16 %v1036, %v1036
  %1058 = vmatpush.bf16.msra.mxu0 %v551
  %1059 = vmatpush.bf16.msra.mxu0 %v547
  %1060 = vmatpush.bf16.msra.mxu0 %v543
  %1061 = vmatpush.bf16.msra.mxu0 %v539
  %1062 = vmatpush.bf16.msra.mxu0 %v535
  %1063 = vmatpush.bf16.msra.mxu0 %v531
  %1064 = vmatpush.bf16.msra.mxu0 %v527
  %1065 = vmatpush.bf16.msra.mxu0 %v523
  %1066 = vmatmul.bf16.gmra.mxu0 %v1057
  %v1067 = vpop.f32.mrf.mxu0
  %v1068 = vadd.f32 0.0, %v1067
  %v1069 = vpop.f32.mrf.mxu0
  %1070 = vdwg.mxu0
  %1071 = vmatpush.bf16.msra.mxu0 %v552
  %1072 = vmatpush.bf16.msra.mxu0 %v548
  %1073 = vmatpush.bf16.msra.mxu0 %v544
  %1074 = vmatpush.bf16.msra.mxu0 %v540
  %1075 = vmatpush.bf16.msra.mxu0 %v536
  %1076 = vmatpush.bf16.msra.mxu0 %v532
  %1077 = vmatpush.bf16.msra.mxu0 %v528
  %1078 = vmatpush.bf16.msra.mxu0 %v524
  %1079 = vmatmul.bf16.gmra.mxu0 %v1057
  %v1080 = vpop.f32.mrf.mxu0
  %v1081 = vadd.f32 0.0, %v1080
  %v1082 = vpop.f32.mrf.mxu0
  %1083 = vdwg.mxu0
  %1084 = vmatpush.bf16.msra.mxu0 %v553
  %1085 = vmatpush.bf16.msra.mxu0 %v549
  %1086 = vmatpush.bf16.msra.mxu0 %v545
  %1087 = vmatpush.bf16.msra.mxu0 %v541
  %1088 = vmatpush.bf16.msra.mxu0 %v537
  %1089 = vmatpush.bf16.msra.mxu0 %v533
  %1090 = vmatpush.bf16.msra.mxu0 %v529
  %1091 = vmatpush.bf16.msra.mxu0 %v525
  %1092 = vmatmul.bf16.gmra.mxu0 %v1057
  %v1093 = vpop.f32.mrf.mxu0
  %v1094 = vadd.f32 0.0, %v1093
  %v1095 = vpop.f32.mrf.mxu0
  %1096 = vdwg.mxu0
  %1097 = vmatpush.bf16.msra.mxu0 %v554
  %1098 = vmatpush.bf16.msra.mxu0 %v550
  %1099 = vmatpush.bf16.msra.mxu0 %v546
  %1100 = vmatpush.bf16.msra.mxu0 %v542
  %1101 = vmatpush.bf16.msra.mxu0 %v538
  %1102 = vmatpush.bf16.msra.mxu0 %v534
  %1103 = vmatpush.bf16.msra.mxu0 %v530
  %1104 = vmatpush.bf16.msra.mxu0 %v526
  %1105 = vmatmul.bf16.gmra.mxu0 %v1057
  %v1106 = vpop.f32.mrf.mxu0
  %v1107 = vadd.f32 0.0, %v1106
  %v1108 = vpop.f32.mrf.mxu0
  %1109 = vdwg.mxu0
  %v1110 = vadd.f32 %v1053, %v1068
  %v1111 = vadd.f32 %v1054, %v1081
  %v1112 = vadd.f32 %v1055, %v1094
  %v1113 = vadd.f32 %v1056, %v1107
  %v1114 = vmul.f32 %v1110, 0.5
  %v1115 = vtanh.pop %v1114
  %v1116 = vadd.f32 %v1115, 1.0
  %v1117 = vmul.f32 %v1116, 0.5
  %v1118 = vmul.f32 %v1111, 0.5
  %v1119 = vtanh.pop %v1118
  %v1120 = vadd.f32 %v1119, 1.0
  %v1121 = vmul.f32 %v1120, 0.5
  %v1122 = vtanh.pop %v1112
  %v1123 = vmul.f32 %v1113, 0.5
  %v1124 = vtanh.pop %v1123
  %v1125 = vadd.f32 %v1124, 1.0
  %v1126 = vmul.f32 %v1125, 0.5
  %v1127 = vmul.f32 %v1121, %v1034
  %v1128 = vmul.f32 %v1117, %v1122
  %v1129 = vadd.f32 %v1127, %v1128
  %v1130 = vtanh.pop %v1129
  %v1131 = vmul.f32 %v1126, %v1130
  %v1132 = vrot.slane %v332, 6
  %v1133 = vrot.slane %v346, 6
  %v1134 = vrot.slane %v360, 6
  %v1135 = vrot.slane %v374, 6
  %v1140 = vrot.slane %v334, 5
  %v1141 = vrot.slane %v348, 5
  %v1142 = vrot.slane %v362, 5
  %v1143 = vrot.slane %v376, 5
  %v1148 = vsel %vm422, %v1132, %v1140
  %v1149 = vsel %vm422, %v1133, %v1141
  %v1150 = vsel %vm422, %v1134, %v1142
  %v1151 = vsel %vm422, %v1135, %v1143
  %v1152 = vpack.c.bf16 %v1131, %v1131
  %1153 = vmatpush.bf16.msra.mxu0 %v551
  %1154 = vmatpush.bf16.msra.mxu0 %v547
  %1155 = vmatpush.bf16.msra.mxu0 %v543
  %1156 = vmatpush.bf16.msra.mxu0 %v539
  %1157 = vmatpush.bf16.msra.mxu0 %v535
  %1158 = vmatpush.bf16.msra.mxu0 %v531
  %1159 = vmatpush.bf16.msra.mxu0 %v527
  %1160 = vmatpush.bf16.msra.mxu0 %v523
  %1161 = vmatmul.bf16.gmra.mxu0 %v1152
  %v1162 = vpop.f32.mrf.mxu0
  %v1163 = vadd.f32 0.0, %v1162
  %v1164 = vpop.f32.mrf.mxu0
  %1165 = vdwg.mxu0
  %1166 = vmatpush.bf16.msra.mxu0 %v552
  %1167 = vmatpush.bf16.msra.mxu0 %v548
  %1168 = vmatpush.bf16.msra.mxu0 %v544
  %1169 = vmatpush.bf16.msra.mxu0 %v540
  %1170 = vmatpush.bf16.msra.mxu0 %v536
  %1171 = vmatpush.bf16.msra.mxu0 %v532
  %1172 = vmatpush.bf16.msra.mxu0 %v528
  %1173 = vmatpush.bf16.msra.mxu0 %v524
  %1174 = vmatmul.bf16.gmra.mxu0 %v1152
  %v1175 = vpop.f32.mrf.mxu0
  %v1176 = vadd.f32 0.0, %v1175
  %v1177 = vpop.f32.mrf.mxu0
  %1178 = vdwg.mxu0
  %1179 = vmatpush.bf16.msra.mxu0 %v553
  %1180 = vmatpush.bf16.msra.mxu0 %v549
  %1181 = vmatpush.bf16.msra.mxu0 %v545
  %1182 = vmatpush.bf16.msra.mxu0 %v541
  %1183 = vmatpush.bf16.msra.mxu0 %v537
  %1184 = vmatpush.bf16.msra.mxu0 %v533
  %1185 = vmatpush.bf16.msra.mxu0 %v529
  %1186 = vmatpush.bf16.msra.mxu0 %v525
  %1187 = vmatmul.bf16.gmra.mxu0 %v1152
  %v1188 = vpop.f32.mrf.mxu0
  %v1189 = vadd.f32 0.0, %v1188
  %v1190 = vpop.f32.mrf.mxu0
  %1191 = vdwg.mxu0
  %1192 = vmatpush.bf16.msra.mxu0 %v554
  %1193 = vmatpush.bf16.msra.mxu0 %v550
  %1194 = vmatpush.bf16.msra.mxu0 %v546
  %1195 = vmatpush.bf16.msra.mxu0 %v542
  %1196 = vmatpush.bf16.msra.mxu0 %v538
  %1197 = vmatpush.bf16.msra.mxu0 %v534
  %1198 = vmatpush.bf16.msra.mxu0 %v530
  %1199 = vmatpush.bf16.msra.mxu0 %v526
  %1200 = vmatmul.bf16.gmra.mxu0 %v1152
  %v1201 = vpop.f32.mrf.mxu0
  %v1202 = vadd.f32 0.0, %v1201
  %v1203 = vpop.f32.mrf.mxu0
  %1204 = vdwg.mxu0
  %v1205 = vadd.f32 %v1148, %v1163
  %v1206 = vadd.f32 %v1149, %v1176
  %v1207 = vadd.f32 %v1150, %v1189
  %v1208 = vadd.f32 %v1151, %v1202
  %v1209 = vmul.f32 %v1205, 0.5
  %v1210 = vtanh.pop %v1209
  %v1211 = vadd.f32 %v1210, 1.0
  %v1212 = vmul.f32 %v1211, 0.5
  %v1213 = vmul.f32 %v1206, 0.5
  %v1214 = vtanh.pop %v1213
  %v1215 = vadd.f32 %v1214, 1.0
  %v1216 = vmul.f32 %v1215, 0.5
  %v1217 = vtanh.pop %v1207
  %v1218 = vmul.f32 %v1208, 0.5
  %v1219 = vtanh.pop %v1218
  %v1220 = vadd.f32 %v1219, 1.0
  %v1221 = vmul.f32 %v1220, 0.5
  %v1222 = vmul.f32 %v1216, %v1129
  %v1223 = vmul.f32 %v1212, %v1217
  %v1224 = vadd.f32 %v1222, %v1223
  %v1225 = vtanh.pop %v1224
  %v1226 = vmul.f32 %v1221, %v1225
  %v1227 = vrot.slane %v332, 7
  %v1228 = vrot.slane %v346, 7
  %v1229 = vrot.slane %v360, 7
  %v1230 = vrot.slane %v374, 7
  %v1235 = vrot.slane %v334, 6
  %v1236 = vrot.slane %v348, 6
  %v1237 = vrot.slane %v362, 6
  %v1238 = vrot.slane %v376, 6
  %v1243 = vsel %vm422, %v1227, %v1235
  %v1244 = vsel %vm422, %v1228, %v1236
  %v1245 = vsel %vm422, %v1229, %v1237
  %v1246 = vsel %vm422, %v1230, %v1238
  %v1247 = vpack.c.bf16 %v1226, %v1226
  %1248 = vmatpush.bf16.msra.mxu0 %v551
  %1249 = vmatpush.bf16.msra.mxu0 %v547
  %1250 = vmatpush.bf16.msra.mxu0 %v543
  %1251 = vmatpush.bf16.msra.mxu0 %v539
  %1252 = vmatpush.bf16.msra.mxu0 %v535
  %1253 = vmatpush.bf16.msra.mxu0 %v531
  %1254 = vmatpush.bf16.msra.mxu0 %v527
  %1255 = vmatpush.bf16.msra.mxu0 %v523
  %1256 = vmatmul.bf16.gmra.mxu0 %v1247
  %v1257 = vpop.f32.mrf.mxu0
  %v1258 = vadd.f32 0.0, %v1257
  %v1259 = vpop.f32.mrf.mxu0
  %1260 = vdwg.mxu0
  %1261 = vmatpush.bf16.msra.mxu0 %v552
  %1262 = vmatpush.bf16.msra.mxu0 %v548
  %1263 = vmatpush.bf16.msra.mxu0 %v544
  %1264 = vmatpush.bf16.msra.mxu0 %v540
  %1265 = vmatpush.bf16.msra.mxu0 %v536
  %1266 = vmatpush.bf16.msra.mxu0 %v532
  %1267 = vmatpush.bf16.msra.mxu0 %v528
  %1268 = vmatpush.bf16.msra.mxu0 %v524
  %1269 = vmatmul.bf16.gmra.mxu0 %v1247
  %v1270 = vpop.f32.mrf.mxu0
  %v1271 = vadd.f32 0.0, %v1270
  %v1272 = vpop.f32.mrf.mxu0
  %1273 = vdwg.mxu0
  %1274 = vmatpush.bf16.msra.mxu0 %v553
  %1275 = vmatpush.bf16.msra.mxu0 %v549
  %1276 = vmatpush.bf16.msra.mxu0 %v545
  %1277 = vmatpush.bf16.msra.mxu0 %v541
  %1278 = vmatpush.bf16.msra.mxu0 %v537
  %1279 = vmatpush.bf16.msra.mxu0 %v533
  %1280 = vmatpush.bf16.msra.mxu0 %v529
  %1281 = vmatpush.bf16.msra.mxu0 %v525
  %1282 = vmatmul.bf16.gmra.mxu0 %v1247
  %v1283 = vpop.f32.mrf.mxu0
  %v1284 = vadd.f32 0.0, %v1283
  %v1285 = vpop.f32.mrf.mxu0
  %1286 = vdwg.mxu0
  %1287 = vmatpush.bf16.msra.mxu0 %v554
  %1288 = vmatpush.bf16.msra.mxu0 %v550
  %1289 = vmatpush.bf16.msra.mxu0 %v546
  %1290 = vmatpush.bf16.msra.mxu0 %v542
  %1291 = vmatpush.bf16.msra.mxu0 %v538
  %1292 = vmatpush.bf16.msra.mxu0 %v534
  %1293 = vmatpush.bf16.msra.mxu0 %v530
  %1294 = vmatpush.bf16.msra.mxu0 %v526
  %1295 = vmatmul.bf16.gmra.mxu0 %v1247
  %v1296 = vpop.f32.mrf.mxu0
  %v1297 = vadd.f32 0.0, %v1296
  %v1298 = vpop.f32.mrf.mxu0
  %1299 = vdwg.mxu0
  %v1300 = vadd.f32 %v1243, %v1258
  %v1301 = vadd.f32 %v1244, %v1271
  %v1302 = vadd.f32 %v1245, %v1284
  %v1303 = vadd.f32 %v1246, %v1297
  %v1304 = vmul.f32 %v1300, 0.5
  %v1305 = vtanh.pop %v1304
  %v1306 = vadd.f32 %v1305, 1.0
  %v1307 = vmul.f32 %v1306, 0.5
  %v1308 = vmul.f32 %v1301, 0.5
  %v1309 = vtanh.pop %v1308
  %v1310 = vadd.f32 %v1309, 1.0
  %v1311 = vmul.f32 %v1310, 0.5
  %v1312 = vtanh.pop %v1302
  %v1313 = vmul.f32 %v1303, 0.5
  %v1314 = vtanh.pop %v1313
  %v1315 = vadd.f32 %v1314, 1.0
  %v1316 = vmul.f32 %v1315, 0.5
  %v1317 = vmul.f32 %v1311, %v1224
  %v1318 = vmul.f32 %v1307, %v1312
  %v1319 = vadd.f32 %v1317, %v1318
  %v1320 = vtanh.pop %v1319
  %v1321 = vmul.f32 %v1316, %v1320
  %v1322 = vld [vmem:[%s4] sm:$0xff]
  %v1323 = vld [vmem:[%s4 + $0x8] sm:$0xff]
  %v1324 = vld [vmem:[%s4 + $0x10] sm:$0xff]
  %v1325 = vld [vmem:[%s4 + $0x18] sm:$0xff]
  %v1326 = vld [vmem:[%s4 + $0x20] sm:$0xf]
  %v1327 = vld [vmem:[%s4 + $0x24] sm:$0xff]
  %v1328 = vld [vmem:[%s4 + $0x2c] sm:$0xff]
  %v1329 = vld [vmem:[%s4 + $0x34] sm:$0xff]
  %v1330 = vld [vmem:[%s4 + $0x3c] sm:$0xff]
  %v1331 = vld [vmem:[%s4 + $0x44] sm:$0xf]
  %v1332 = vld [vmem:[%s4 + $0x48] sm:$0xff]
  %v1333 = vld [vmem:[%s4 + $0x50] sm:$0xff]
  %v1334 = vld [vmem:[%s4 + $0x58] sm:$0xff]
  %v1335 = vld [vmem:[%s4 + $0x60] sm:$0xff]
  %v1336 = vld [vmem:[%s4 + $0x68] sm:$0xf]
  %v1337 = vld [vmem:[%s4 + $0x6c] sm:$0xff]
  %v1338 = vld [vmem:[%s4 + $0x74] sm:$0xff]
  %v1339 = vld [vmem:[%s4 + $0x7c] sm:$0xff]
  %v1340 = vld [vmem:[%s4 + $0x84] sm:$0xff]
  %v1341 = vld [vmem:[%s4 + $0x8c] sm:$0xf]
  %v1342 = vld [vmem:[%s4 + $0x90] sm:$0xff]
  %v1343 = vld [vmem:[%s4 + $0x98] sm:$0xff]
  %v1344 = vld [vmem:[%s4 + $0xa0] sm:$0xff]
  %v1345 = vld [vmem:[%s4 + $0xa8] sm:$0xff]
  %v1346 = vld [vmem:[%s4 + $0xb0] sm:$0xf]
  %v1347 = vld [vmem:[%s4 + $0xb4] sm:$0xff]
  %v1348 = vld [vmem:[%s4 + $0xbc] sm:$0xff]
  %v1349 = vld [vmem:[%s4 + $0xc4] sm:$0xff]
  %v1350 = vld [vmem:[%s4 + $0xcc] sm:$0xff]
  %v1351 = vld [vmem:[%s4 + $0xd4] sm:$0xf]
  %v1352 = vld [vmem:[%s4 + $0xd8] sm:$0xff]
  %v1353 = vld [vmem:[%s4 + $0xe0] sm:$0xff]
  %v1354 = vld [vmem:[%s4 + $0xe8] sm:$0xff]
  %v1355 = vld [vmem:[%s4 + $0xf0] sm:$0xff]
  %v1356 = vld [vmem:[%s4 + $0xf8] sm:$0xf]
  %v1357 = vld [vmem:[%s4 + $0xfc] sm:$0xff]
  %v1358 = vld [vmem:[%s4 + $0x104] sm:$0xff]
  %v1359 = vld [vmem:[%s4 + $0x10c] sm:$0xff]
  %v1360 = vld [vmem:[%s4 + $0x114] sm:$0xff]
  %v1361 = vld [vmem:[%s4 + $0x11c] sm:$0xf]
  %v1362 = vld [vmem:[%s4 + $0x120] sm:$0xff]
  %v1363 = vld [vmem:[%s4 + $0x128] sm:$0xff]
  %v1364 = vld [vmem:[%s4 + $0x130] sm:$0xff]
  %v1365 = vld [vmem:[%s4 + $0x138] sm:$0xff]
  %v1366 = vld [vmem:[%s4 + $0x140] sm:$0xf]
  %v1367 = vld [vmem:[%s4 + $0x144] sm:$0xff]
  %v1368 = vld [vmem:[%s4 + $0x14c] sm:$0xff]
  %v1369 = vld [vmem:[%s4 + $0x154] sm:$0xff]
  %v1370 = vld [vmem:[%s4 + $0x15c] sm:$0xff]
  %v1371 = vld [vmem:[%s4 + $0x164] sm:$0xf]
  %v1372 = vld [vmem:[%s4 + $0x168] sm:$0xff]
  %v1373 = vld [vmem:[%s4 + $0x170] sm:$0xff]
  %v1374 = vld [vmem:[%s4 + $0x178] sm:$0xff]
  %v1375 = vld [vmem:[%s4 + $0x180] sm:$0xff]
  %v1376 = vld [vmem:[%s4 + $0x188] sm:$0xf]
  %v1377 = vld [vmem:[%s4 + $0x18c] sm:$0xff]
  %v1378 = vld [vmem:[%s4 + $0x194] sm:$0xff]
  %v1379 = vld [vmem:[%s4 + $0x19c] sm:$0xff]
  %v1380 = vld [vmem:[%s4 + $0x1a4] sm:$0xff]
  %v1381 = vld [vmem:[%s4 + $0x1ac] sm:$0xf]
  %v1382 = vld [vmem:[%s4 + $0x1b0] sm:$0xff]
  %v1383 = vld [vmem:[%s4 + $0x1b8] sm:$0xff]
  %v1384 = vld [vmem:[%s4 + $0x1c0] sm:$0xff]
  %v1385 = vld [vmem:[%s4 + $0x1c8] sm:$0xff]
  %v1386 = vld [vmem:[%s4 + $0x1d0] sm:$0xf]
  %v1387 = vld [vmem:[%s4 + $0x1d4] sm:$0xff]
  %v1388 = vld [vmem:[%s4 + $0x1dc] sm:$0xff]
  %v1389 = vld [vmem:[%s4 + $0x1e4] sm:$0xff]
  %v1390 = vld [vmem:[%s4 + $0x1ec] sm:$0xff]
  %v1391 = vld [vmem:[%s4 + $0x1f4] sm:$0xf]
  %v1392 = vld [vmem:[%s4 + $0x1f8] sm:$0xff]
  %v1393 = vld [vmem:[%s4 + $0x200] sm:$0xff]
  %v1394 = vld [vmem:[%s4 + $0x208] sm:$0xff]
  %v1395 = vld [vmem:[%s4 + $0x210] sm:$0xff]
  %v1396 = vld [vmem:[%s4 + $0x218] sm:$0xf]
  %v1397 = vld [vmem:[%s4 + $0x21c] sm:$0xff]
  %v1398 = vld [vmem:[%s4 + $0x224] sm:$0xff]
  %v1399 = vld [vmem:[%s4 + $0x22c] sm:$0xff]
  %v1400 = vld [vmem:[%s4 + $0x234] sm:$0xff]
  %v1401 = vld [vmem:[%s4 + $0x23c] sm:$0xf]
  %v1403 = vrot.slane %v751, 7
  %v1406 = vrot.slane %v846, 6
  %v1409 = vrot.slane %v941, 5
  %v1412 = vrot.slane %v1036, 4
  %v1415 = vrot.slane %v1131, 3
  %v1418 = vrot.slane %v1226, 2
  %v1421 = vrot.slane %v1321, 1
  %v1423 = vsel %vm422, %v660, %v1403
  %vm1424 = vcmask 1041408
  %v1425 = vsel %vm1424, %v1423, %v1406
  %vm1426 = vcmask 1042432
  %v1427 = vsel %vm1426, %v1425, %v1409
  %vm1428 = vcmask 1043456
  %v1429 = vsel %vm1428, %v1427, %v1412
  %vm1430 = vcmask 1044480
  %v1431 = vsel %vm1430, %v1429, %v1415
  %vm1432 = vcmask 1045504
  %v1433 = vsel %vm1432, %v1431, %v1418
  %vm1434 = vcmask 1046528
  %v1435 = vsel %vm1434, %v1433, %v1421
  %v1436 = vpack.c.bf16 %v1435, %v1435
  %v1437 = vld [vmem:[%s5] sm:$0xff]
  %v1438 = vld [vmem:[%s5 + $0x8] sm:$0x1]
  %v1441 = vperm.slane %v1437, 0
  %v1442 = vperm.slane %v1437, 1
  %v1443 = vperm.slane %v1437, 2
  %v1444 = vperm.slane %v1437, 3
  %v1445 = vperm.slane %v1437, 4
  %v1446 = vperm.slane %v1437, 5
  %v1447 = vperm.slane %v1437, 6
  %v1448 = vperm.slane %v1437, 7
  %v1449 = vperm.slane %v1438, 0
  %v1539 = vunpack.c.l.b16 %v1322
  %v1540 = vunpack.c.h.b16 %v1322
  %v1541 = vunpack.c.l.b16 %v1323
  %v1542 = vunpack.c.h.b16 %v1323
  %v1543 = vunpack.c.l.b16 %v1324
  %v1544 = vunpack.c.h.b16 %v1324
  %v1545 = vunpack.c.l.b16 %v1325
  %v1546 = vunpack.c.h.b16 %v1325
  %v1547 = vunpack.c.l.b16 %v1326
  %v1548 = vunpack.c.l.b16 %v1327
  %v1549 = vunpack.c.h.b16 %v1327
  %v1550 = vunpack.c.l.b16 %v1328
  %v1551 = vunpack.c.h.b16 %v1328
  %v1552 = vunpack.c.l.b16 %v1329
  %v1553 = vunpack.c.h.b16 %v1329
  %v1554 = vunpack.c.l.b16 %v1330
  %v1555 = vunpack.c.h.b16 %v1330
  %v1556 = vunpack.c.l.b16 %v1331
  %v1557 = vunpack.c.l.b16 %v1332
  %v1558 = vunpack.c.h.b16 %v1332
  %v1559 = vunpack.c.l.b16 %v1333
  %v1560 = vunpack.c.h.b16 %v1333
  %v1561 = vunpack.c.l.b16 %v1334
  %v1562 = vunpack.c.h.b16 %v1334
  %v1563 = vunpack.c.l.b16 %v1335
  %v1564 = vunpack.c.h.b16 %v1335
  %v1565 = vunpack.c.l.b16 %v1336
  %v1566 = vunpack.c.l.b16 %v1337
  %v1567 = vunpack.c.h.b16 %v1337
  %v1568 = vunpack.c.l.b16 %v1338
  %v1569 = vunpack.c.h.b16 %v1338
  %v1570 = vunpack.c.l.b16 %v1339
  %v1571 = vunpack.c.h.b16 %v1339
  %v1572 = vunpack.c.l.b16 %v1340
  %v1573 = vunpack.c.h.b16 %v1340
  %v1574 = vunpack.c.l.b16 %v1341
  %v1575 = vunpack.c.l.b16 %v1342
  %v1576 = vunpack.c.h.b16 %v1342
  %v1577 = vunpack.c.l.b16 %v1343
  %v1578 = vunpack.c.h.b16 %v1343
  %v1579 = vunpack.c.l.b16 %v1344
  %v1580 = vunpack.c.h.b16 %v1344
  %v1581 = vunpack.c.l.b16 %v1345
  %v1582 = vunpack.c.h.b16 %v1345
  %v1583 = vunpack.c.l.b16 %v1346
  %v1584 = vunpack.c.l.b16 %v1347
  %v1585 = vunpack.c.h.b16 %v1347
  %v1586 = vunpack.c.l.b16 %v1348
  %v1587 = vunpack.c.h.b16 %v1348
  %v1588 = vunpack.c.l.b16 %v1349
  %v1589 = vunpack.c.h.b16 %v1349
  %v1590 = vunpack.c.l.b16 %v1350
  %v1591 = vunpack.c.h.b16 %v1350
  %v1592 = vunpack.c.l.b16 %v1351
  %v1593 = vunpack.c.l.b16 %v1352
  %v1594 = vunpack.c.h.b16 %v1352
  %v1595 = vunpack.c.l.b16 %v1353
  %v1596 = vunpack.c.h.b16 %v1353
  %v1597 = vunpack.c.l.b16 %v1354
  %v1598 = vunpack.c.h.b16 %v1354
  %v1599 = vunpack.c.l.b16 %v1355
  %v1600 = vunpack.c.h.b16 %v1355
  %v1601 = vunpack.c.l.b16 %v1356
  %v1602 = vunpack.c.l.b16 %v1357
  %v1603 = vunpack.c.h.b16 %v1357
  %v1604 = vunpack.c.l.b16 %v1358
  %v1605 = vunpack.c.h.b16 %v1358
  %v1606 = vunpack.c.l.b16 %v1359
  %v1607 = vunpack.c.h.b16 %v1359
  %v1608 = vunpack.c.l.b16 %v1360
  %v1609 = vunpack.c.h.b16 %v1360
  %v1610 = vunpack.c.l.b16 %v1361
  %v1611 = vunpack.c.l.b16 %v1362
  %v1612 = vunpack.c.h.b16 %v1362
  %v1613 = vunpack.c.l.b16 %v1363
  %v1614 = vunpack.c.h.b16 %v1363
  %v1615 = vunpack.c.l.b16 %v1364
  %v1616 = vunpack.c.h.b16 %v1364
  %v1617 = vunpack.c.l.b16 %v1365
  %v1618 = vunpack.c.h.b16 %v1365
  %v1619 = vunpack.c.l.b16 %v1366
  %v1620 = vunpack.c.l.b16 %v1367
  %v1621 = vunpack.c.h.b16 %v1367
  %v1622 = vunpack.c.l.b16 %v1368
  %v1623 = vunpack.c.h.b16 %v1368
  %v1624 = vunpack.c.l.b16 %v1369
  %v1625 = vunpack.c.h.b16 %v1369
  %v1626 = vunpack.c.l.b16 %v1370
  %v1627 = vunpack.c.h.b16 %v1370
  %v1628 = vunpack.c.l.b16 %v1371
  %v1629 = vunpack.c.l.b16 %v1372
  %v1630 = vunpack.c.h.b16 %v1372
  %v1631 = vunpack.c.l.b16 %v1373
  %v1632 = vunpack.c.h.b16 %v1373
  %v1633 = vunpack.c.l.b16 %v1374
  %v1634 = vunpack.c.h.b16 %v1374
  %v1635 = vunpack.c.l.b16 %v1375
  %v1636 = vunpack.c.h.b16 %v1375
  %v1637 = vunpack.c.l.b16 %v1376
  %v1638 = vunpack.c.l.b16 %v1377
  %v1639 = vunpack.c.h.b16 %v1377
  %v1640 = vunpack.c.l.b16 %v1378
  %v1641 = vunpack.c.h.b16 %v1378
  %v1642 = vunpack.c.l.b16 %v1379
  %v1643 = vunpack.c.h.b16 %v1379
  %v1644 = vunpack.c.l.b16 %v1380
  %v1645 = vunpack.c.h.b16 %v1380
  %v1646 = vunpack.c.l.b16 %v1381
  %v1647 = vunpack.c.l.b16 %v1382
  %v1648 = vunpack.c.h.b16 %v1382
  %v1649 = vunpack.c.l.b16 %v1383
  %v1650 = vunpack.c.h.b16 %v1383
  %v1651 = vunpack.c.l.b16 %v1384
  %v1652 = vunpack.c.h.b16 %v1384
  %v1653 = vunpack.c.l.b16 %v1385
  %v1654 = vunpack.c.h.b16 %v1385
  %v1655 = vunpack.c.l.b16 %v1386
  %v1656 = vunpack.c.l.b16 %v1387
  %v1657 = vunpack.c.h.b16 %v1387
  %v1658 = vunpack.c.l.b16 %v1388
  %v1659 = vunpack.c.h.b16 %v1388
  %v1660 = vunpack.c.l.b16 %v1389
  %v1661 = vunpack.c.h.b16 %v1389
  %v1662 = vunpack.c.l.b16 %v1390
  %v1663 = vunpack.c.h.b16 %v1390
  %v1664 = vunpack.c.l.b16 %v1391
  %v1665 = vunpack.c.l.b16 %v1392
  %v1666 = vunpack.c.h.b16 %v1392
  %v1667 = vunpack.c.l.b16 %v1393
  %v1668 = vunpack.c.h.b16 %v1393
  %v1669 = vunpack.c.l.b16 %v1394
  %v1670 = vunpack.c.h.b16 %v1394
  %v1671 = vunpack.c.l.b16 %v1395
  %v1672 = vunpack.c.h.b16 %v1395
  %v1673 = vunpack.c.l.b16 %v1396
  %v1674 = vunpack.c.l.b16 %v1397
  %v1675 = vunpack.c.h.b16 %v1397
  %v1676 = vunpack.c.l.b16 %v1398
  %v1677 = vunpack.c.h.b16 %v1398
  %v1678 = vunpack.c.l.b16 %v1399
  %v1679 = vunpack.c.h.b16 %v1399
  %v1680 = vunpack.c.l.b16 %v1400
  %v1681 = vunpack.c.h.b16 %v1400
  %v1682 = vunpack.c.l.b16 %v1401
  %v1683 = vpack.c.b16 %v1548, %v1539
  %v1684 = vpack.c.b16 %v1549, %v1540
  %v1685 = vpack.c.b16 %v1550, %v1541
  %v1686 = vpack.c.b16 %v1551, %v1542
  %v1687 = vpack.c.b16 %v1552, %v1543
  %v1688 = vpack.c.b16 %v1553, %v1544
  %v1689 = vpack.c.b16 %v1554, %v1545
  %v1690 = vpack.c.b16 %v1555, %v1546
  %v1691 = vpack.c.b16 %v1556, %v1547
  %v1692 = vpack.c.b16 %v1566, %v1557
  %v1693 = vpack.c.b16 %v1567, %v1558
  %v1694 = vpack.c.b16 %v1568, %v1559
  %v1695 = vpack.c.b16 %v1569, %v1560
  %v1696 = vpack.c.b16 %v1570, %v1561
  %v1697 = vpack.c.b16 %v1571, %v1562
  %v1698 = vpack.c.b16 %v1572, %v1563
  %v1699 = vpack.c.b16 %v1573, %v1564
  %v1700 = vpack.c.b16 %v1574, %v1565
  %v1701 = vpack.c.b16 %v1584, %v1575
  %v1702 = vpack.c.b16 %v1585, %v1576
  %v1703 = vpack.c.b16 %v1586, %v1577
  %v1704 = vpack.c.b16 %v1587, %v1578
  %v1705 = vpack.c.b16 %v1588, %v1579
  %v1706 = vpack.c.b16 %v1589, %v1580
  %v1707 = vpack.c.b16 %v1590, %v1581
  %v1708 = vpack.c.b16 %v1591, %v1582
  %v1709 = vpack.c.b16 %v1592, %v1583
  %v1710 = vpack.c.b16 %v1602, %v1593
  %v1711 = vpack.c.b16 %v1603, %v1594
  %v1712 = vpack.c.b16 %v1604, %v1595
  %v1713 = vpack.c.b16 %v1605, %v1596
  %v1714 = vpack.c.b16 %v1606, %v1597
  %v1715 = vpack.c.b16 %v1607, %v1598
  %v1716 = vpack.c.b16 %v1608, %v1599
  %v1717 = vpack.c.b16 %v1609, %v1600
  %v1718 = vpack.c.b16 %v1610, %v1601
  %v1719 = vpack.c.b16 %v1620, %v1611
  %v1720 = vpack.c.b16 %v1621, %v1612
  %v1721 = vpack.c.b16 %v1622, %v1613
  %v1722 = vpack.c.b16 %v1623, %v1614
  %v1723 = vpack.c.b16 %v1624, %v1615
  %v1724 = vpack.c.b16 %v1625, %v1616
  %v1725 = vpack.c.b16 %v1626, %v1617
  %v1726 = vpack.c.b16 %v1627, %v1618
  %v1727 = vpack.c.b16 %v1628, %v1619
  %v1728 = vpack.c.b16 %v1638, %v1629
  %v1729 = vpack.c.b16 %v1639, %v1630
  %v1730 = vpack.c.b16 %v1640, %v1631
  %v1731 = vpack.c.b16 %v1641, %v1632
  %v1732 = vpack.c.b16 %v1642, %v1633
  %v1733 = vpack.c.b16 %v1643, %v1634
  %v1734 = vpack.c.b16 %v1644, %v1635
  %v1735 = vpack.c.b16 %v1645, %v1636
  %v1736 = vpack.c.b16 %v1646, %v1637
  %v1737 = vpack.c.b16 %v1656, %v1647
  %v1738 = vpack.c.b16 %v1657, %v1648
  %v1739 = vpack.c.b16 %v1658, %v1649
  %v1740 = vpack.c.b16 %v1659, %v1650
  %v1741 = vpack.c.b16 %v1660, %v1651
  %v1742 = vpack.c.b16 %v1661, %v1652
  %v1743 = vpack.c.b16 %v1662, %v1653
  %v1744 = vpack.c.b16 %v1663, %v1654
  %v1745 = vpack.c.b16 %v1664, %v1655
  %v1746 = vpack.c.b16 %v1674, %v1665
  %v1747 = vpack.c.b16 %v1675, %v1666
  %v1748 = vpack.c.b16 %v1676, %v1667
  %v1749 = vpack.c.b16 %v1677, %v1668
  %v1750 = vpack.c.b16 %v1678, %v1669
  %v1751 = vpack.c.b16 %v1679, %v1670
  %v1752 = vpack.c.b16 %v1680, %v1671
  %v1753 = vpack.c.b16 %v1681, %v1672
  %v1754 = vpack.c.b16 %v1682, %v1673
  %1827 = vmatpush.bf16.msra.mxu0 %v1746
  %1828 = vmatpush.bf16.msra.mxu0 %v1737
  %1829 = vmatpush.bf16.msra.mxu0 %v1728
  %1830 = vmatpush.bf16.msra.mxu0 %v1719
  %1831 = vmatpush.bf16.msra.mxu0 %v1710
  %1832 = vmatpush.bf16.msra.mxu0 %v1701
  %1833 = vmatpush.bf16.msra.mxu0 %v1692
  %1834 = vmatpush.bf16.msra.mxu0 %v1683
  %1835 = vmatmul.bf16.gmra.mxu0 %v1436
  %v1836 = vpop.f32.mrf.mxu0
  %v1837 = vadd.f32 %v1441, %v1836
  %v1838 = vpop.f32.mrf.mxu0
  %1839 = vdwg.mxu0
  %1840 = vmatpush.bf16.msra.mxu0 %v1747
  %1841 = vmatpush.bf16.msra.mxu0 %v1738
  %1842 = vmatpush.bf16.msra.mxu0 %v1729
  %1843 = vmatpush.bf16.msra.mxu0 %v1720
  %1844 = vmatpush.bf16.msra.mxu0 %v1711
  %1845 = vmatpush.bf16.msra.mxu0 %v1702
  %1846 = vmatpush.bf16.msra.mxu0 %v1693
  %1847 = vmatpush.bf16.msra.mxu0 %v1684
  %1848 = vmatmul.bf16.gmra.mxu0 %v1436
  %v1849 = vpop.f32.mrf.mxu0
  %v1850 = vadd.f32 %v1442, %v1849
  %v1851 = vpop.f32.mrf.mxu0
  %1852 = vdwg.mxu0
  %1853 = vmatpush.bf16.msra.mxu0 %v1748
  %1854 = vmatpush.bf16.msra.mxu0 %v1739
  %1855 = vmatpush.bf16.msra.mxu0 %v1730
  %1856 = vmatpush.bf16.msra.mxu0 %v1721
  %1857 = vmatpush.bf16.msra.mxu0 %v1712
  %1858 = vmatpush.bf16.msra.mxu0 %v1703
  %1859 = vmatpush.bf16.msra.mxu0 %v1694
  %1860 = vmatpush.bf16.msra.mxu0 %v1685
  %1861 = vmatmul.bf16.gmra.mxu0 %v1436
  %v1862 = vpop.f32.mrf.mxu0
  %v1863 = vadd.f32 %v1443, %v1862
  %v1864 = vpop.f32.mrf.mxu0
  %1865 = vdwg.mxu0
  %1866 = vmatpush.bf16.msra.mxu0 %v1749
  %1867 = vmatpush.bf16.msra.mxu0 %v1740
  %1868 = vmatpush.bf16.msra.mxu0 %v1731
  %1869 = vmatpush.bf16.msra.mxu0 %v1722
  %1870 = vmatpush.bf16.msra.mxu0 %v1713
  %1871 = vmatpush.bf16.msra.mxu0 %v1704
  %1872 = vmatpush.bf16.msra.mxu0 %v1695
  %1873 = vmatpush.bf16.msra.mxu0 %v1686
  %1874 = vmatmul.bf16.gmra.mxu0 %v1436
  %v1875 = vpop.f32.mrf.mxu0
  %v1876 = vadd.f32 %v1444, %v1875
  %v1877 = vpop.f32.mrf.mxu0
  %1878 = vdwg.mxu0
  %1879 = vmatpush.bf16.msra.mxu0 %v1750
  %1880 = vmatpush.bf16.msra.mxu0 %v1741
  %1881 = vmatpush.bf16.msra.mxu0 %v1732
  %1882 = vmatpush.bf16.msra.mxu0 %v1723
  %1883 = vmatpush.bf16.msra.mxu0 %v1714
  %1884 = vmatpush.bf16.msra.mxu0 %v1705
  %1885 = vmatpush.bf16.msra.mxu0 %v1696
  %1886 = vmatpush.bf16.msra.mxu0 %v1687
  %1887 = vmatmul.bf16.gmra.mxu0 %v1436
  %v1888 = vpop.f32.mrf.mxu0
  %v1889 = vadd.f32 %v1445, %v1888
  %v1890 = vpop.f32.mrf.mxu0
  %1891 = vdwg.mxu0
  %1892 = vmatpush.bf16.msra.mxu0 %v1751
  %1893 = vmatpush.bf16.msra.mxu0 %v1742
  %1894 = vmatpush.bf16.msra.mxu0 %v1733
  %1895 = vmatpush.bf16.msra.mxu0 %v1724
  %1896 = vmatpush.bf16.msra.mxu0 %v1715
  %1897 = vmatpush.bf16.msra.mxu0 %v1706
  %1898 = vmatpush.bf16.msra.mxu0 %v1697
  %1899 = vmatpush.bf16.msra.mxu0 %v1688
  %1900 = vmatmul.bf16.gmra.mxu0 %v1436
  %v1901 = vpop.f32.mrf.mxu0
  %v1902 = vadd.f32 %v1446, %v1901
  %v1903 = vpop.f32.mrf.mxu0
  %1904 = vdwg.mxu0
  %1905 = vmatpush.bf16.msra.mxu0 %v1752
  %1906 = vmatpush.bf16.msra.mxu0 %v1743
  %1907 = vmatpush.bf16.msra.mxu0 %v1734
  %1908 = vmatpush.bf16.msra.mxu0 %v1725
  %1909 = vmatpush.bf16.msra.mxu0 %v1716
  %1910 = vmatpush.bf16.msra.mxu0 %v1707
  %1911 = vmatpush.bf16.msra.mxu0 %v1698
  %1912 = vmatpush.bf16.msra.mxu0 %v1689
  %1913 = vmatmul.bf16.gmra.mxu0 %v1436
  %v1914 = vpop.f32.mrf.mxu0
  %v1915 = vadd.f32 %v1447, %v1914
  %v1916 = vpop.f32.mrf.mxu0
  %1917 = vdwg.mxu0
  %1918 = vmatpush.bf16.msra.mxu0 %v1753
  %1919 = vmatpush.bf16.msra.mxu0 %v1744
  %1920 = vmatpush.bf16.msra.mxu0 %v1735
  %1921 = vmatpush.bf16.msra.mxu0 %v1726
  %1922 = vmatpush.bf16.msra.mxu0 %v1717
  %1923 = vmatpush.bf16.msra.mxu0 %v1708
  %1924 = vmatpush.bf16.msra.mxu0 %v1699
  %1925 = vmatpush.bf16.msra.mxu0 %v1690
  %1926 = vmatmul.bf16.gmra.mxu0 %v1436
  %v1927 = vpop.f32.mrf.mxu0
  %v1928 = vadd.f32 %v1448, %v1927
  %v1929 = vpop.f32.mrf.mxu0
  %1930 = vdwg.mxu0
  %1931 = vmatpush.bf16.msra.mxu0 %v1754
  %1932 = vmatpush.bf16.msra.mxu0 %v1745
  %1933 = vmatpush.bf16.msra.mxu0 %v1736
  %1934 = vmatpush.bf16.msra.mxu0 %v1727
  %1935 = vmatpush.bf16.msra.mxu0 %v1718
  %1936 = vmatpush.bf16.msra.mxu0 %v1709
  %1937 = vmatpush.bf16.msra.mxu0 %v1700
  %1938 = vmatpush.bf16.msra.mxu0 %v1691
  %1939 = vmatmul.bf16.gmra.mxu0 %v1436
  %v1940 = vpop.f32.mrf.mxu0
  %v1941 = vadd.f32 %v1449, %v1940
  %v1942 = vpop.f32.mrf.mxu0
  %1943 = vdwg.mxu0
  %v1945 = vrot.slane %v660, 1
  %v1947 = vrot.slane %v846, 7
  %v1949 = vrot.slane %v941, 6
  %v1951 = vrot.slane %v1036, 5
  %v1953 = vrot.slane %v1131, 4
  %v1955 = vrot.slane %v1226, 3
  %v1957 = vrot.slane %v1321, 2
  %v1959 = vsel %vm422, %v1945, %v751
  %v1960 = vsel %vm1424, %v1959, %v1947
  %v1961 = vsel %vm1426, %v1960, %v1949
  %v1962 = vsel %vm1428, %v1961, %v1951
  %v1963 = vsel %vm1430, %v1962, %v1953
  %v1964 = vsel %vm1432, %v1963, %v1955
  %v1965 = vsel %vm1434, %v1964, %v1957
  %v1966 = vpack.c.bf16 %v1965, %v1965
  %1967 = vmatpush.bf16.msra.mxu0 %v1746
  %1968 = vmatpush.bf16.msra.mxu0 %v1737
  %1969 = vmatpush.bf16.msra.mxu0 %v1728
  %1970 = vmatpush.bf16.msra.mxu0 %v1719
  %1971 = vmatpush.bf16.msra.mxu0 %v1710
  %1972 = vmatpush.bf16.msra.mxu0 %v1701
  %1973 = vmatpush.bf16.msra.mxu0 %v1692
  %1974 = vmatpush.bf16.msra.mxu0 %v1683
  %1975 = vmatmul.bf16.gmra.mxu0 %v1966
  %v1976 = vpop.f32.mrf.mxu0
  %v1977 = vadd.f32 %v1441, %v1976
  %v1978 = vpop.f32.mrf.mxu0
  %1979 = vdwg.mxu0
  %1980 = vmatpush.bf16.msra.mxu0 %v1747
  %1981 = vmatpush.bf16.msra.mxu0 %v1738
  %1982 = vmatpush.bf16.msra.mxu0 %v1729
  %1983 = vmatpush.bf16.msra.mxu0 %v1720
  %1984 = vmatpush.bf16.msra.mxu0 %v1711
  %1985 = vmatpush.bf16.msra.mxu0 %v1702
  %1986 = vmatpush.bf16.msra.mxu0 %v1693
  %1987 = vmatpush.bf16.msra.mxu0 %v1684
  %1988 = vmatmul.bf16.gmra.mxu0 %v1966
  %v1989 = vpop.f32.mrf.mxu0
  %v1990 = vadd.f32 %v1442, %v1989
  %v1991 = vpop.f32.mrf.mxu0
  %1992 = vdwg.mxu0
  %1993 = vmatpush.bf16.msra.mxu0 %v1748
  %1994 = vmatpush.bf16.msra.mxu0 %v1739
  %1995 = vmatpush.bf16.msra.mxu0 %v1730
  %1996 = vmatpush.bf16.msra.mxu0 %v1721
  %1997 = vmatpush.bf16.msra.mxu0 %v1712
  %1998 = vmatpush.bf16.msra.mxu0 %v1703
  %1999 = vmatpush.bf16.msra.mxu0 %v1694
  %2000 = vmatpush.bf16.msra.mxu0 %v1685
  %2001 = vmatmul.bf16.gmra.mxu0 %v1966
  %v2002 = vpop.f32.mrf.mxu0
  %v2003 = vadd.f32 %v1443, %v2002
  %v2004 = vpop.f32.mrf.mxu0
  %2005 = vdwg.mxu0
  %2006 = vmatpush.bf16.msra.mxu0 %v1749
  %2007 = vmatpush.bf16.msra.mxu0 %v1740
  %2008 = vmatpush.bf16.msra.mxu0 %v1731
  %2009 = vmatpush.bf16.msra.mxu0 %v1722
  %2010 = vmatpush.bf16.msra.mxu0 %v1713
  %2011 = vmatpush.bf16.msra.mxu0 %v1704
  %2012 = vmatpush.bf16.msra.mxu0 %v1695
  %2013 = vmatpush.bf16.msra.mxu0 %v1686
  %2014 = vmatmul.bf16.gmra.mxu0 %v1966
  %v2015 = vpop.f32.mrf.mxu0
  %v2016 = vadd.f32 %v1444, %v2015
  %v2017 = vpop.f32.mrf.mxu0
  %2018 = vdwg.mxu0
  %2019 = vmatpush.bf16.msra.mxu0 %v1750
  %2020 = vmatpush.bf16.msra.mxu0 %v1741
  %2021 = vmatpush.bf16.msra.mxu0 %v1732
  %2022 = vmatpush.bf16.msra.mxu0 %v1723
  %2023 = vmatpush.bf16.msra.mxu0 %v1714
  %2024 = vmatpush.bf16.msra.mxu0 %v1705
  %2025 = vmatpush.bf16.msra.mxu0 %v1696
  %2026 = vmatpush.bf16.msra.mxu0 %v1687
  %2027 = vmatmul.bf16.gmra.mxu0 %v1966
  %v2028 = vpop.f32.mrf.mxu0
  %v2029 = vadd.f32 %v1445, %v2028
  %v2030 = vpop.f32.mrf.mxu0
  %2031 = vdwg.mxu0
  %2032 = vmatpush.bf16.msra.mxu0 %v1751
  %2033 = vmatpush.bf16.msra.mxu0 %v1742
  %2034 = vmatpush.bf16.msra.mxu0 %v1733
  %2035 = vmatpush.bf16.msra.mxu0 %v1724
  %2036 = vmatpush.bf16.msra.mxu0 %v1715
  %2037 = vmatpush.bf16.msra.mxu0 %v1706
  %2038 = vmatpush.bf16.msra.mxu0 %v1697
  %2039 = vmatpush.bf16.msra.mxu0 %v1688
  %2040 = vmatmul.bf16.gmra.mxu0 %v1966
  %v2041 = vpop.f32.mrf.mxu0
  %v2042 = vadd.f32 %v1446, %v2041
  %v2043 = vpop.f32.mrf.mxu0
  %2044 = vdwg.mxu0
  %2045 = vmatpush.bf16.msra.mxu0 %v1752
  %2046 = vmatpush.bf16.msra.mxu0 %v1743
  %2047 = vmatpush.bf16.msra.mxu0 %v1734
  %2048 = vmatpush.bf16.msra.mxu0 %v1725
  %2049 = vmatpush.bf16.msra.mxu0 %v1716
  %2050 = vmatpush.bf16.msra.mxu0 %v1707
  %2051 = vmatpush.bf16.msra.mxu0 %v1698
  %2052 = vmatpush.bf16.msra.mxu0 %v1689
  %2053 = vmatmul.bf16.gmra.mxu0 %v1966
  %v2054 = vpop.f32.mrf.mxu0
  %v2055 = vadd.f32 %v1447, %v2054
  %v2056 = vpop.f32.mrf.mxu0
  %2057 = vdwg.mxu0
  %2058 = vmatpush.bf16.msra.mxu0 %v1753
  %2059 = vmatpush.bf16.msra.mxu0 %v1744
  %2060 = vmatpush.bf16.msra.mxu0 %v1735
  %2061 = vmatpush.bf16.msra.mxu0 %v1726
  %2062 = vmatpush.bf16.msra.mxu0 %v1717
  %2063 = vmatpush.bf16.msra.mxu0 %v1708
  %2064 = vmatpush.bf16.msra.mxu0 %v1699
  %2065 = vmatpush.bf16.msra.mxu0 %v1690
  %2066 = vmatmul.bf16.gmra.mxu0 %v1966
  %v2067 = vpop.f32.mrf.mxu0
  %v2068 = vadd.f32 %v1448, %v2067
  %v2069 = vpop.f32.mrf.mxu0
  %2070 = vdwg.mxu0
  %2071 = vmatpush.bf16.msra.mxu0 %v1754
  %2072 = vmatpush.bf16.msra.mxu0 %v1745
  %2073 = vmatpush.bf16.msra.mxu0 %v1736
  %2074 = vmatpush.bf16.msra.mxu0 %v1727
  %2075 = vmatpush.bf16.msra.mxu0 %v1718
  %2076 = vmatpush.bf16.msra.mxu0 %v1709
  %2077 = vmatpush.bf16.msra.mxu0 %v1700
  %2078 = vmatpush.bf16.msra.mxu0 %v1691
  %2079 = vmatmul.bf16.gmra.mxu0 %v1966
  %v2080 = vpop.f32.mrf.mxu0
  %v2081 = vadd.f32 %v1449, %v2080
  %v2082 = vpop.f32.mrf.mxu0
  %2083 = vdwg.mxu0
  %v2084 = vmax.f32 %v1837, %v1850
  %v2085 = vmax.f32 %v1977, %v1990
  %v2086 = vmax.f32 %v2084, %v1863
  %v2087 = vmax.f32 %v2085, %v2003
  %v2088 = vsub.f32 %v1837, %v2086
  %v2089 = vsub.f32 %v1977, %v2087
  %v2090 = vmul.f32 %v2088, 1.442695
  %v2091 = vpow.pop %v2090
  %v2092 = vmul.f32 %v2089, 1.442695
  %v2093 = vpow.pop %v2092
  %v2094 = vsub.f32 %v1850, %v2086
  %v2095 = vsub.f32 %v1990, %v2087
  %v2096 = vmul.f32 %v2094, 1.442695
  %v2097 = vpow.pop %v2096
  %v2098 = vmul.f32 %v2095, 1.442695
  %v2099 = vpow.pop %v2098
  %v2100 = vsub.f32 %v1863, %v2086
  %v2101 = vsub.f32 %v2003, %v2087
  %v2102 = vmul.f32 %v2100, 1.442695
  %v2103 = vpow.pop %v2102
  %v2104 = vmul.f32 %v2101, 1.442695
  %v2105 = vpow.pop %v2104
  %v2106 = vadd.f32 %v2091, %v2097
  %v2107 = vadd.f32 %v2093, %v2099
  %v2108 = vadd.f32 %v2106, %v2103
  %v2109 = vadd.f32 %v2107, %v2105
  %v2110 = vrcp.pop %v2108
  %v2111 = vrcp.pop %v2109
  %v2112 = vmul.f32 %v2091, %v2110
  %v2113 = vmul.f32 %v2093, %v2111
  %v2114 = vmul.f32 %v2097, %v2110
  %v2115 = vmul.f32 %v2099, %v2111
  %v2116 = vmul.f32 %v2103, %v2110
  %v2117 = vmul.f32 %v2105, %v2111
  %v2118 = vmax.f32 %v1876, %v1889
  %v2119 = vmax.f32 %v2016, %v2029
  %v2120 = vmax.f32 %v2118, %v1902
  %v2121 = vmax.f32 %v2119, %v2042
  %v2122 = vsub.f32 %v1876, %v2120
  %v2123 = vsub.f32 %v2016, %v2121
  %v2124 = vmul.f32 %v2122, 1.442695
  %v2125 = vpow.pop %v2124
  %v2126 = vmul.f32 %v2123, 1.442695
  %v2127 = vpow.pop %v2126
  %v2128 = vsub.f32 %v1889, %v2120
  %v2129 = vsub.f32 %v2029, %v2121
  %v2130 = vmul.f32 %v2128, 1.442695
  %v2131 = vpow.pop %v2130
  %v2132 = vmul.f32 %v2129, 1.442695
  %v2133 = vpow.pop %v2132
  %v2134 = vsub.f32 %v1902, %v2120
  %v2135 = vsub.f32 %v2042, %v2121
  %v2136 = vmul.f32 %v2134, 1.442695
  %v2137 = vpow.pop %v2136
  %v2138 = vmul.f32 %v2135, 1.442695
  %v2139 = vpow.pop %v2138
  %v2140 = vadd.f32 %v2125, %v2131
  %v2141 = vadd.f32 %v2127, %v2133
  %v2142 = vadd.f32 %v2140, %v2137
  %v2143 = vadd.f32 %v2141, %v2139
  %v2144 = vrcp.pop %v2142
  %v2145 = vrcp.pop %v2143
  %v2146 = vmul.f32 %v2125, %v2144
  %v2147 = vmul.f32 %v2127, %v2145
  %v2148 = vmul.f32 %v2131, %v2144
  %v2149 = vmul.f32 %v2133, %v2145
  %v2150 = vmul.f32 %v2137, %v2144
  %v2151 = vmul.f32 %v2139, %v2145
  %v2152 = vmul.f32 %v1915, 0.5
  %v2153 = vmul.f32 %v2055, 0.5
  %v2154 = vtanh.pop %v2152
  %v2155 = vtanh.pop %v2153
  %v2156 = vadd.f32 %v2154, 1.0
  %v2157 = vadd.f32 %v2155, 1.0
  %v2158 = vmul.f32 %v2156, 0.5
  %v2159 = vmul.f32 %v2157, 0.5
  %v2160 = vmul.f32 %v1928, 0.5
  %v2161 = vmul.f32 %v2068, 0.5
  %v2162 = vtanh.pop %v2160
  %v2163 = vtanh.pop %v2161
  %v2164 = vadd.f32 %v2162, 1.0
  %v2165 = vadd.f32 %v2163, 1.0
  %v2166 = vmul.f32 %v2164, 0.5
  %v2167 = vmul.f32 %v2165, 0.5
  %v2168 = vmul.f32 %v1941, 0.5
  %v2169 = vmul.f32 %v2081, 0.5
  %v2170 = vtanh.pop %v2168
  %v2171 = vtanh.pop %v2169
  %v2172 = vadd.f32 %v2170, 1.0
  %v2173 = vadd.f32 %v2171, 1.0
  %v2174 = vmul.f32 %v2172, 0.5
  %v2175 = vmul.f32 %v2173, 0.5
  %v2176 = vlaneseq
  %v2177 = vshrl.u32 %v2176, 7
  %vm2178 = vcmp.eq.s32.totalorder %v2177, 0
  %v2179 = vsel %vm2178, 1, 0
  %v2180 = vcvt.s32.f32 %v2179
  %v2181 = vmul.f32 %v2180, 0.0
  %v2182 = vrot.slane %v2181, 4
  %v2183 = vadd.f32 %v2181, %v2182
  %v2184 = vrot.slane %v2183, 2
  %v2185 = vadd.f32 %v2183, %v2184
  %v2186 = vrot.slane %v2185, 1
  %v2187 = vadd.f32 %v2185, %v2186
  %v2188 = vmul.f32 %v318, %v2166
  %v2189 = vmul.f32 %v320, %v2167
  %v2190 = vmul.f32 %v2187, %v2174
  %v2191 = vmul.f32 %v2187, %v2175
  %v2192 = vsub.f32 %v2188, %v2190
  %v2193 = vsub.f32 %v2189, %v2191
  %v2194 = vperm.slane %v2192, 0
  %v2195 = vperm.slane %v2193, 0
  %v2196 = vmul.f32 %v2180, %v2194
  %v2197 = vmul.f32 %v2180, %v2195
  %v2198 = vadd.f32 %v2196, 0.0
  %v2199 = vadd.f32 %v2197, 0.0
  %v2200 = vrot.slane %v2180, 7
  %v2201 = vrot.slane %v2180, 1
  %v2202 = vperm.slane %v2146, 0
  %v2203 = vperm.slane %v2147, 0
  %v2204 = vmul.f32 %v2201, %v2202
  %v2205 = vmul.f32 %v2201, %v2203
  %v2206 = vperm.slane %v2148, 0
  %v2207 = vperm.slane %v2149, 0
  %v2208 = vmul.f32 %v2180, %v2206
  %v2209 = vmul.f32 %v2180, %v2207
  %v2210 = vadd.f32 %v2204, %v2208
  %v2211 = vadd.f32 %v2205, %v2209
  %v2212 = vperm.slane %v2150, 0
  %v2213 = vperm.slane %v2151, 0
  %v2214 = vmul.f32 %v2200, %v2212
  %v2215 = vmul.f32 %v2200, %v2213
  %v2216 = vadd.f32 %v2210, %v2214
  %v2217 = vadd.f32 %v2211, %v2215
  %v2218 = vmul.f32 %v2198, %v2180
  %v2219 = vmul.f32 %v2199, %v2180
  %v2220 = vrot.slane %v2218, 4
  %v2221 = vadd.f32 %v2218, %v2220
  %v2222 = vrot.slane %v2221, 2
  %v2223 = vadd.f32 %v2221, %v2222
  %v2224 = vrot.slane %v2223, 1
  %v2225 = vadd.f32 %v2223, %v2224
  %v2226 = vrot.slane %v2219, 4
  %v2227 = vadd.f32 %v2219, %v2226
  %v2228 = vrot.slane %v2227, 2
  %v2229 = vadd.f32 %v2227, %v2228
  %v2230 = vrot.slane %v2229, 1
  %v2231 = vadd.f32 %v2229, %v2230
  %v2232 = vmul.f32 %v2225, %v2158
  %v2233 = vmul.f32 %v2231, %v2159
  %v2236 = vrot.slane %v2233, 7
  %v2237 = vsel %vm422, %v2232, %v2236
  %v2239 = vlaneseq
  %vm2240 = vcmp.ge.s32.totalorder %v2239, 0
  %vm2241 = vcmp.lt.s32.totalorder %v2239, 256
  %vm2242 = vmand %vm2240, %vm2241
  %2243 = vst.msk [vmem:[#allocation2] ss:$8 sm:$0x3] %vm2242, %v2237
  %2244 = vst.msk [vmem:[#allocation2] ss:$8 sm:$0x0] %vm2242, %v2237
  %v2245 = vperm.slane %v2112, 0
  %v2246 = vperm.slane %v2113, 0
  %v2247 = vmul.f32 %v2201, %v2245
  %v2248 = vmul.f32 %v2201, %v2246
  %v2249 = vperm.slane %v2114, 0
  %v2250 = vperm.slane %v2115, 0
  %v2251 = vmul.f32 %v2180, %v2249
  %v2252 = vmul.f32 %v2180, %v2250
  %v2253 = vadd.f32 %v2247, %v2251
  %v2254 = vadd.f32 %v2248, %v2252
  %v2255 = vperm.slane %v2116, 0
  %v2256 = vperm.slane %v2117, 0
  %v2257 = vmul.f32 %v2200, %v2255
  %v2258 = vmul.f32 %v2200, %v2256
  %v2259 = vadd.f32 %v2253, %v2257
  %v2260 = vadd.f32 %v2254, %v2258
  %v2261 = vmul.f32 %v2198, %v2216
  %v2262 = vmul.f32 %v2199, %v2217
  %v2263 = vrot.slane %v2261, 4
  %v2264 = vadd.f32 %v2261, %v2263
  %v2265 = vrot.slane %v2264, 2
  %v2266 = vadd.f32 %v2264, %v2265
  %v2267 = vrot.slane %v2266, 1
  %v2268 = vadd.f32 %v2266, %v2267
  %v2269 = vrot.slane %v2262, 4
  %v2270 = vadd.f32 %v2262, %v2269
  %v2271 = vrot.slane %v2270, 2
  %v2272 = vadd.f32 %v2270, %v2271
  %v2273 = vrot.slane %v2272, 1
  %v2274 = vadd.f32 %v2272, %v2273
  %v2275 = vmul.f32 %v2268, %v2174
  %v2276 = vmul.f32 %v2274, %v2175
  %v2277 = vsub.f32 %v2188, %v2275
  %v2278 = vsub.f32 %v2189, %v2276
  %v2279 = vperm.slane %v2277, 1
  %v2280 = vperm.slane %v2278, 1
  %v2281 = vmul.f32 %v2216, %v2279
  %v2282 = vmul.f32 %v2217, %v2280
  %v2283 = vadd.f32 %v2198, %v2281
  %v2284 = vadd.f32 %v2199, %v2282
  %v2285 = vrot.slane %v2216, 7
  %v2286 = vrot.slane %v2217, 7
  %v2287 = vrot.slane %v2216, 1
  %v2288 = vrot.slane %v2217, 1
  %v2289 = vperm.slane %v2146, 1
  %v2290 = vperm.slane %v2147, 1
  %v2291 = vmul.f32 %v2287, %v2289
  %v2292 = vmul.f32 %v2288, %v2290
  %v2293 = vperm.slane %v2148, 1
  %v2294 = vperm.slane %v2149, 1
  %v2295 = vmul.f32 %v2216, %v2293
  %v2296 = vmul.f32 %v2217, %v2294
  %v2297 = vadd.f32 %v2291, %v2295
  %v2298 = vadd.f32 %v2292, %v2296
  %v2299 = vperm.slane %v2150, 1
  %v2300 = vperm.slane %v2151, 1
  %v2301 = vmul.f32 %v2285, %v2299
  %v2302 = vmul.f32 %v2286, %v2300
  %v2303 = vadd.f32 %v2297, %v2301
  %v2304 = vadd.f32 %v2298, %v2302
  %v2305 = vmul.f32 %v2283, %v2259
  %v2306 = vmul.f32 %v2284, %v2260
  %v2307 = vrot.slane %v2305, 4
  %v2308 = vadd.f32 %v2305, %v2307
  %v2309 = vrot.slane %v2308, 2
  %v2310 = vadd.f32 %v2308, %v2309
  %v2311 = vrot.slane %v2310, 1
  %v2312 = vadd.f32 %v2310, %v2311
  %v2313 = vrot.slane %v2306, 4
  %v2314 = vadd.f32 %v2306, %v2313
  %v2315 = vrot.slane %v2314, 2
  %v2316 = vadd.f32 %v2314, %v2315
  %v2317 = vrot.slane %v2316, 1
  %v2318 = vadd.f32 %v2316, %v2317
  %v2319 = vmul.f32 %v2312, %v2158
  %v2320 = vmul.f32 %v2318, %v2159
  %2323 = vst [vmem:[#allocation1] sm:$0xff] %v2319
  %2324 = vst [vmem:[#allocation1 + $0x9] sm:$0xff] %v2320
  %s2325 = scalar_lea.vmem [#allocation1], 1
  %v2326 = vld [vmem:[%s2325] ss:$9 sm:$0xff]
  %s2328 = scalar_lea.vmem [#allocation2], 1
  %2329 = vst.msk [vmem:[%s2328] ss:$8 sm:$0x3] %vm2242, %v2326
  %2330 = vst.msk [vmem:[%s2328] ss:$8 sm:$0x0] %vm2242, %v2326
  %v2331 = vrot.slane %v2259, 7
  %v2332 = vrot.slane %v2260, 7
  %v2333 = vrot.slane %v2259, 1
  %v2334 = vrot.slane %v2260, 1
  %v2335 = vperm.slane %v2112, 1
  %v2336 = vperm.slane %v2113, 1
  %v2337 = vmul.f32 %v2333, %v2335
  %v2338 = vmul.f32 %v2334, %v2336
  %v2339 = vperm.slane %v2114, 1
  %v2340 = vperm.slane %v2115, 1
  %v2341 = vmul.f32 %v2259, %v2339
  %v2342 = vmul.f32 %v2260, %v2340
  %v2343 = vadd.f32 %v2337, %v2341
  %v2344 = vadd.f32 %v2338, %v2342
  %v2345 = vperm.slane %v2116, 1
  %v2346 = vperm.slane %v2117, 1
  %v2347 = vmul.f32 %v2331, %v2345
  %v2348 = vmul.f32 %v2332, %v2346
  %v2349 = vadd.f32 %v2343, %v2347
  %v2350 = vadd.f32 %v2344, %v2348
  %v2351 = vmul.f32 %v2283, %v2303
  %v2352 = vmul.f32 %v2284, %v2304
  %v2353 = vrot.slane %v2351, 4
  %v2354 = vadd.f32 %v2351, %v2353
  %v2355 = vrot.slane %v2354, 2
  %v2356 = vadd.f32 %v2354, %v2355
  %v2357 = vrot.slane %v2356, 1
  %v2358 = vadd.f32 %v2356, %v2357
  %v2359 = vrot.slane %v2352, 4
  %v2360 = vadd.f32 %v2352, %v2359
  %v2361 = vrot.slane %v2360, 2
  %v2362 = vadd.f32 %v2360, %v2361
  %v2363 = vrot.slane %v2362, 1
  %v2364 = vadd.f32 %v2362, %v2363
  %v2365 = vmul.f32 %v2358, %v2174
  %v2366 = vmul.f32 %v2364, %v2175
  %v2367 = vsub.f32 %v2188, %v2365
  %v2368 = vsub.f32 %v2189, %v2366
  %v2369 = vperm.slane %v2367, 2
  %v2370 = vperm.slane %v2368, 2
  %v2371 = vmul.f32 %v2303, %v2369
  %v2372 = vmul.f32 %v2304, %v2370
  %v2373 = vadd.f32 %v2283, %v2371
  %v2374 = vadd.f32 %v2284, %v2372
  %v2375 = vrot.slane %v2303, 7
  %v2376 = vrot.slane %v2304, 7
  %v2377 = vrot.slane %v2303, 1
  %v2378 = vrot.slane %v2304, 1
  %v2379 = vperm.slane %v2146, 2
  %v2380 = vperm.slane %v2147, 2
  %v2381 = vmul.f32 %v2377, %v2379
  %v2382 = vmul.f32 %v2378, %v2380
  %v2383 = vperm.slane %v2148, 2
  %v2384 = vperm.slane %v2149, 2
  %v2385 = vmul.f32 %v2303, %v2383
  %v2386 = vmul.f32 %v2304, %v2384
  %v2387 = vadd.f32 %v2381, %v2385
  %v2388 = vadd.f32 %v2382, %v2386
  %v2389 = vperm.slane %v2150, 2
  %v2390 = vperm.slane %v2151, 2
  %v2391 = vmul.f32 %v2375, %v2389
  %v2392 = vmul.f32 %v2376, %v2390
  %v2393 = vadd.f32 %v2387, %v2391
  %v2394 = vadd.f32 %v2388, %v2392
  %v2395 = vmul.f32 %v2373, %v2349
  %v2396 = vmul.f32 %v2374, %v2350
  %v2397 = vrot.slane %v2395, 4
  %v2398 = vadd.f32 %v2395, %v2397
  %v2399 = vrot.slane %v2398, 2
  %v2400 = vadd.f32 %v2398, %v2399
  %v2401 = vrot.slane %v2400, 1
  %v2402 = vadd.f32 %v2400, %v2401
  %v2403 = vrot.slane %v2396, 4
  %v2404 = vadd.f32 %v2396, %v2403
  %v2405 = vrot.slane %v2404, 2
  %v2406 = vadd.f32 %v2404, %v2405
  %v2407 = vrot.slane %v2406, 1
  %v2408 = vadd.f32 %v2406, %v2407
  %v2409 = vmul.f32 %v2402, %v2158
  %v2410 = vmul.f32 %v2408, %v2159
  %2413 = vst [vmem:[#allocation1] sm:$0xff] %v2409
  %2414 = vst [vmem:[#allocation1 + $0x9] sm:$0xff] %v2410
  %s2415 = scalar_lea.vmem [#allocation1], 2
  %v2416 = vld [vmem:[%s2415] ss:$9 sm:$0xff]
  %s2418 = scalar_lea.vmem [#allocation2], 2
  %2419 = vst.msk [vmem:[%s2418] ss:$8 sm:$0x3] %vm2242, %v2416
  %2420 = vst.msk [vmem:[%s2418] ss:$8 sm:$0x0] %vm2242, %v2416
  %v2421 = vrot.slane %v2349, 7
  %v2422 = vrot.slane %v2350, 7
  %v2423 = vrot.slane %v2349, 1
  %v2424 = vrot.slane %v2350, 1
  %v2425 = vperm.slane %v2112, 2
  %v2426 = vperm.slane %v2113, 2
  %v2427 = vmul.f32 %v2423, %v2425
  %v2428 = vmul.f32 %v2424, %v2426
  %v2429 = vperm.slane %v2114, 2
  %v2430 = vperm.slane %v2115, 2
  %v2431 = vmul.f32 %v2349, %v2429
  %v2432 = vmul.f32 %v2350, %v2430
  %v2433 = vadd.f32 %v2427, %v2431
  %v2434 = vadd.f32 %v2428, %v2432
  %v2435 = vperm.slane %v2116, 2
  %v2436 = vperm.slane %v2117, 2
  %v2437 = vmul.f32 %v2421, %v2435
  %v2438 = vmul.f32 %v2422, %v2436
  %v2439 = vadd.f32 %v2433, %v2437
  %v2440 = vadd.f32 %v2434, %v2438
  %v2441 = vmul.f32 %v2373, %v2393
  %v2442 = vmul.f32 %v2374, %v2394
  %v2443 = vrot.slane %v2441, 4
  %v2444 = vadd.f32 %v2441, %v2443
  %v2445 = vrot.slane %v2444, 2
  %v2446 = vadd.f32 %v2444, %v2445
  %v2447 = vrot.slane %v2446, 1
  %v2448 = vadd.f32 %v2446, %v2447
  %v2449 = vrot.slane %v2442, 4
  %v2450 = vadd.f32 %v2442, %v2449
  %v2451 = vrot.slane %v2450, 2
  %v2452 = vadd.f32 %v2450, %v2451
  %v2453 = vrot.slane %v2452, 1
  %v2454 = vadd.f32 %v2452, %v2453
  %v2455 = vmul.f32 %v2448, %v2174
  %v2456 = vmul.f32 %v2454, %v2175
  %v2457 = vsub.f32 %v2188, %v2455
  %v2458 = vsub.f32 %v2189, %v2456
  %v2459 = vperm.slane %v2457, 3
  %v2460 = vperm.slane %v2458, 3
  %v2461 = vmul.f32 %v2393, %v2459
  %v2462 = vmul.f32 %v2394, %v2460
  %v2463 = vadd.f32 %v2373, %v2461
  %v2464 = vadd.f32 %v2374, %v2462
  %v2465 = vrot.slane %v2393, 7
  %v2466 = vrot.slane %v2394, 7
  %v2467 = vrot.slane %v2393, 1
  %v2468 = vrot.slane %v2394, 1
  %v2469 = vperm.slane %v2146, 3
  %v2470 = vperm.slane %v2147, 3
  %v2471 = vmul.f32 %v2467, %v2469
  %v2472 = vmul.f32 %v2468, %v2470
  %v2473 = vperm.slane %v2148, 3
  %v2474 = vperm.slane %v2149, 3
  %v2475 = vmul.f32 %v2393, %v2473
  %v2476 = vmul.f32 %v2394, %v2474
  %v2477 = vadd.f32 %v2471, %v2475
  %v2478 = vadd.f32 %v2472, %v2476
  %v2479 = vperm.slane %v2150, 3
  %v2480 = vperm.slane %v2151, 3
  %v2481 = vmul.f32 %v2465, %v2479
  %v2482 = vmul.f32 %v2466, %v2480
  %v2483 = vadd.f32 %v2477, %v2481
  %v2484 = vadd.f32 %v2478, %v2482
  %v2485 = vmul.f32 %v2463, %v2439
  %v2486 = vmul.f32 %v2464, %v2440
  %v2487 = vrot.slane %v2485, 4
  %v2488 = vadd.f32 %v2485, %v2487
  %v2489 = vrot.slane %v2488, 2
  %v2490 = vadd.f32 %v2488, %v2489
  %v2491 = vrot.slane %v2490, 1
  %v2492 = vadd.f32 %v2490, %v2491
  %v2493 = vrot.slane %v2486, 4
  %v2494 = vadd.f32 %v2486, %v2493
  %v2495 = vrot.slane %v2494, 2
  %v2496 = vadd.f32 %v2494, %v2495
  %v2497 = vrot.slane %v2496, 1
  %v2498 = vadd.f32 %v2496, %v2497
  %v2499 = vmul.f32 %v2492, %v2158
  %v2500 = vmul.f32 %v2498, %v2159
  %2503 = vst [vmem:[#allocation1] sm:$0xff] %v2499
  %2504 = vst [vmem:[#allocation1 + $0x9] sm:$0xff] %v2500
  %s2505 = scalar_lea.vmem [#allocation1], 3
  %v2506 = vld [vmem:[%s2505] ss:$9 sm:$0xff]
  %s2508 = scalar_lea.vmem [#allocation2], 3
  %2509 = vst.msk [vmem:[%s2508] ss:$8 sm:$0x3] %vm2242, %v2506
  %2510 = vst.msk [vmem:[%s2508] ss:$8 sm:$0x0] %vm2242, %v2506
  %v2511 = vrot.slane %v2439, 7
  %v2512 = vrot.slane %v2440, 7
  %v2513 = vrot.slane %v2439, 1
  %v2514 = vrot.slane %v2440, 1
  %v2515 = vperm.slane %v2112, 3
  %v2516 = vperm.slane %v2113, 3
  %v2517 = vmul.f32 %v2513, %v2515
  %v2518 = vmul.f32 %v2514, %v2516
  %v2519 = vperm.slane %v2114, 3
  %v2520 = vperm.slane %v2115, 3
  %v2521 = vmul.f32 %v2439, %v2519
  %v2522 = vmul.f32 %v2440, %v2520
  %v2523 = vadd.f32 %v2517, %v2521
  %v2524 = vadd.f32 %v2518, %v2522
  %v2525 = vperm.slane %v2116, 3
  %v2526 = vperm.slane %v2117, 3
  %v2527 = vmul.f32 %v2511, %v2525
  %v2528 = vmul.f32 %v2512, %v2526
  %v2529 = vadd.f32 %v2523, %v2527
  %v2530 = vadd.f32 %v2524, %v2528
  %v2531 = vmul.f32 %v2463, %v2483
  %v2532 = vmul.f32 %v2464, %v2484
  %v2533 = vrot.slane %v2531, 4
  %v2534 = vadd.f32 %v2531, %v2533
  %v2535 = vrot.slane %v2534, 2
  %v2536 = vadd.f32 %v2534, %v2535
  %v2537 = vrot.slane %v2536, 1
  %v2538 = vadd.f32 %v2536, %v2537
  %v2539 = vrot.slane %v2532, 4
  %v2540 = vadd.f32 %v2532, %v2539
  %v2541 = vrot.slane %v2540, 2
  %v2542 = vadd.f32 %v2540, %v2541
  %v2543 = vrot.slane %v2542, 1
  %v2544 = vadd.f32 %v2542, %v2543
  %v2545 = vmul.f32 %v2538, %v2174
  %v2546 = vmul.f32 %v2544, %v2175
  %v2547 = vsub.f32 %v2188, %v2545
  %v2548 = vsub.f32 %v2189, %v2546
  %v2549 = vperm.slane %v2547, 4
  %v2550 = vperm.slane %v2548, 4
  %v2551 = vmul.f32 %v2483, %v2549
  %v2552 = vmul.f32 %v2484, %v2550
  %v2553 = vadd.f32 %v2463, %v2551
  %v2554 = vadd.f32 %v2464, %v2552
  %v2555 = vrot.slane %v2483, 7
  %v2556 = vrot.slane %v2484, 7
  %v2557 = vrot.slane %v2483, 1
  %v2558 = vrot.slane %v2484, 1
  %v2559 = vperm.slane %v2146, 4
  %v2560 = vperm.slane %v2147, 4
  %v2561 = vmul.f32 %v2557, %v2559
  %v2562 = vmul.f32 %v2558, %v2560
  %v2563 = vperm.slane %v2148, 4
  %v2564 = vperm.slane %v2149, 4
  %v2565 = vmul.f32 %v2483, %v2563
  %v2566 = vmul.f32 %v2484, %v2564
  %v2567 = vadd.f32 %v2561, %v2565
  %v2568 = vadd.f32 %v2562, %v2566
  %v2569 = vperm.slane %v2150, 4
  %v2570 = vperm.slane %v2151, 4
  %v2571 = vmul.f32 %v2555, %v2569
  %v2572 = vmul.f32 %v2556, %v2570
  %v2573 = vadd.f32 %v2567, %v2571
  %v2574 = vadd.f32 %v2568, %v2572
  %v2575 = vmul.f32 %v2553, %v2529
  %v2576 = vmul.f32 %v2554, %v2530
  %v2577 = vrot.slane %v2575, 4
  %v2578 = vadd.f32 %v2575, %v2577
  %v2579 = vrot.slane %v2578, 2
  %v2580 = vadd.f32 %v2578, %v2579
  %v2581 = vrot.slane %v2580, 1
  %v2582 = vadd.f32 %v2580, %v2581
  %v2583 = vrot.slane %v2576, 4
  %v2584 = vadd.f32 %v2576, %v2583
  %v2585 = vrot.slane %v2584, 2
  %v2586 = vadd.f32 %v2584, %v2585
  %v2587 = vrot.slane %v2586, 1
  %v2588 = vadd.f32 %v2586, %v2587
  %v2589 = vmul.f32 %v2582, %v2158
  %v2590 = vmul.f32 %v2588, %v2159
  %2593 = vst [vmem:[#allocation1] sm:$0xff] %v2589
  %2594 = vst [vmem:[#allocation1 + $0x9] sm:$0xff] %v2590
  %s2595 = scalar_lea.vmem [#allocation1], 4
  %v2596 = vld [vmem:[%s2595] ss:$9 sm:$0xff]
  %s2598 = scalar_lea.vmem [#allocation2], 4
  %2599 = vst.msk [vmem:[%s2598] ss:$8 sm:$0x3] %vm2242, %v2596
  %2600 = vst.msk [vmem:[%s2598] ss:$8 sm:$0x0] %vm2242, %v2596
  %v2601 = vrot.slane %v2529, 7
  %v2602 = vrot.slane %v2530, 7
  %v2603 = vrot.slane %v2529, 1
  %v2604 = vrot.slane %v2530, 1
  %v2605 = vperm.slane %v2112, 4
  %v2606 = vperm.slane %v2113, 4
  %v2607 = vmul.f32 %v2603, %v2605
  %v2608 = vmul.f32 %v2604, %v2606
  %v2609 = vperm.slane %v2114, 4
  %v2610 = vperm.slane %v2115, 4
  %v2611 = vmul.f32 %v2529, %v2609
  %v2612 = vmul.f32 %v2530, %v2610
  %v2613 = vadd.f32 %v2607, %v2611
  %v2614 = vadd.f32 %v2608, %v2612
  %v2615 = vperm.slane %v2116, 4
  %v2616 = vperm.slane %v2117, 4
  %v2617 = vmul.f32 %v2601, %v2615
  %v2618 = vmul.f32 %v2602, %v2616
  %v2619 = vadd.f32 %v2613, %v2617
  %v2620 = vadd.f32 %v2614, %v2618
  %v2621 = vmul.f32 %v2553, %v2573
  %v2622 = vmul.f32 %v2554, %v2574
  %v2623 = vrot.slane %v2621, 4
  %v2624 = vadd.f32 %v2621, %v2623
  %v2625 = vrot.slane %v2624, 2
  %v2626 = vadd.f32 %v2624, %v2625
  %v2627 = vrot.slane %v2626, 1
  %v2628 = vadd.f32 %v2626, %v2627
  %v2629 = vrot.slane %v2622, 4
  %v2630 = vadd.f32 %v2622, %v2629
  %v2631 = vrot.slane %v2630, 2
  %v2632 = vadd.f32 %v2630, %v2631
  %v2633 = vrot.slane %v2632, 1
  %v2634 = vadd.f32 %v2632, %v2633
  %v2635 = vmul.f32 %v2628, %v2174
  %v2636 = vmul.f32 %v2634, %v2175
  %v2637 = vsub.f32 %v2188, %v2635
  %v2638 = vsub.f32 %v2189, %v2636
  %v2639 = vperm.slane %v2637, 5
  %v2640 = vperm.slane %v2638, 5
  %v2641 = vmul.f32 %v2573, %v2639
  %v2642 = vmul.f32 %v2574, %v2640
  %v2643 = vadd.f32 %v2553, %v2641
  %v2644 = vadd.f32 %v2554, %v2642
  %v2645 = vrot.slane %v2573, 7
  %v2646 = vrot.slane %v2574, 7
  %v2647 = vrot.slane %v2573, 1
  %v2648 = vrot.slane %v2574, 1
  %v2649 = vperm.slane %v2146, 5
  %v2650 = vperm.slane %v2147, 5
  %v2651 = vmul.f32 %v2647, %v2649
  %v2652 = vmul.f32 %v2648, %v2650
  %v2653 = vperm.slane %v2148, 5
  %v2654 = vperm.slane %v2149, 5
  %v2655 = vmul.f32 %v2573, %v2653
  %v2656 = vmul.f32 %v2574, %v2654
  %v2657 = vadd.f32 %v2651, %v2655
  %v2658 = vadd.f32 %v2652, %v2656
  %v2659 = vperm.slane %v2150, 5
  %v2660 = vperm.slane %v2151, 5
  %v2661 = vmul.f32 %v2645, %v2659
  %v2662 = vmul.f32 %v2646, %v2660
  %v2663 = vadd.f32 %v2657, %v2661
  %v2664 = vadd.f32 %v2658, %v2662
  %v2665 = vmul.f32 %v2643, %v2619
  %v2666 = vmul.f32 %v2644, %v2620
  %v2667 = vrot.slane %v2665, 4
  %v2668 = vadd.f32 %v2665, %v2667
  %v2669 = vrot.slane %v2668, 2
  %v2670 = vadd.f32 %v2668, %v2669
  %v2671 = vrot.slane %v2670, 1
  %v2672 = vadd.f32 %v2670, %v2671
  %v2673 = vrot.slane %v2666, 4
  %v2674 = vadd.f32 %v2666, %v2673
  %v2675 = vrot.slane %v2674, 2
  %v2676 = vadd.f32 %v2674, %v2675
  %v2677 = vrot.slane %v2676, 1
  %v2678 = vadd.f32 %v2676, %v2677
  %v2679 = vmul.f32 %v2672, %v2158
  %v2680 = vmul.f32 %v2678, %v2159
  %2683 = vst [vmem:[#allocation1] sm:$0xff] %v2679
  %2684 = vst [vmem:[#allocation1 + $0x9] sm:$0xff] %v2680
  %s2685 = scalar_lea.vmem [#allocation1], 5
  %v2686 = vld [vmem:[%s2685] ss:$9 sm:$0xff]
  %s2688 = scalar_lea.vmem [#allocation2], 5
  %2689 = vst.msk [vmem:[%s2688] ss:$8 sm:$0x3] %vm2242, %v2686
  %2690 = vst.msk [vmem:[%s2688] ss:$8 sm:$0x0] %vm2242, %v2686
  %v2691 = vrot.slane %v2619, 7
  %v2692 = vrot.slane %v2620, 7
  %v2693 = vrot.slane %v2619, 1
  %v2694 = vrot.slane %v2620, 1
  %v2695 = vperm.slane %v2112, 5
  %v2696 = vperm.slane %v2113, 5
  %v2697 = vmul.f32 %v2693, %v2695
  %v2698 = vmul.f32 %v2694, %v2696
  %v2699 = vperm.slane %v2114, 5
  %v2700 = vperm.slane %v2115, 5
  %v2701 = vmul.f32 %v2619, %v2699
  %v2702 = vmul.f32 %v2620, %v2700
  %v2703 = vadd.f32 %v2697, %v2701
  %v2704 = vadd.f32 %v2698, %v2702
  %v2705 = vperm.slane %v2116, 5
  %v2706 = vperm.slane %v2117, 5
  %v2707 = vmul.f32 %v2691, %v2705
  %v2708 = vmul.f32 %v2692, %v2706
  %v2709 = vadd.f32 %v2703, %v2707
  %v2710 = vadd.f32 %v2704, %v2708
  %v2711 = vmul.f32 %v2643, %v2663
  %v2712 = vmul.f32 %v2644, %v2664
  %v2713 = vrot.slane %v2711, 4
  %v2714 = vadd.f32 %v2711, %v2713
  %v2715 = vrot.slane %v2714, 2
  %v2716 = vadd.f32 %v2714, %v2715
  %v2717 = vrot.slane %v2716, 1
  %v2718 = vadd.f32 %v2716, %v2717
  %v2719 = vrot.slane %v2712, 4
  %v2720 = vadd.f32 %v2712, %v2719
  %v2721 = vrot.slane %v2720, 2
  %v2722 = vadd.f32 %v2720, %v2721
  %v2723 = vrot.slane %v2722, 1
  %v2724 = vadd.f32 %v2722, %v2723
  %v2725 = vmul.f32 %v2718, %v2174
  %v2726 = vmul.f32 %v2724, %v2175
  %v2727 = vsub.f32 %v2188, %v2725
  %v2728 = vsub.f32 %v2189, %v2726
  %v2729 = vperm.slane %v2727, 6
  %v2730 = vperm.slane %v2728, 6
  %v2731 = vmul.f32 %v2663, %v2729
  %v2732 = vmul.f32 %v2664, %v2730
  %v2733 = vadd.f32 %v2643, %v2731
  %v2734 = vadd.f32 %v2644, %v2732
  %v2735 = vrot.slane %v2663, 7
  %v2736 = vrot.slane %v2664, 7
  %v2737 = vrot.slane %v2663, 1
  %v2738 = vrot.slane %v2664, 1
  %v2739 = vperm.slane %v2146, 6
  %v2740 = vperm.slane %v2147, 6
  %v2741 = vmul.f32 %v2737, %v2739
  %v2742 = vmul.f32 %v2738, %v2740
  %v2743 = vperm.slane %v2148, 6
  %v2744 = vperm.slane %v2149, 6
  %v2745 = vmul.f32 %v2663, %v2743
  %v2746 = vmul.f32 %v2664, %v2744
  %v2747 = vadd.f32 %v2741, %v2745
  %v2748 = vadd.f32 %v2742, %v2746
  %v2749 = vperm.slane %v2150, 6
  %v2750 = vperm.slane %v2151, 6
  %v2751 = vmul.f32 %v2735, %v2749
  %v2752 = vmul.f32 %v2736, %v2750
  %v2753 = vadd.f32 %v2747, %v2751
  %v2754 = vadd.f32 %v2748, %v2752
  %v2755 = vmul.f32 %v2733, %v2709
  %v2756 = vmul.f32 %v2734, %v2710
  %v2757 = vrot.slane %v2755, 4
  %v2758 = vadd.f32 %v2755, %v2757
  %v2759 = vrot.slane %v2758, 2
  %v2760 = vadd.f32 %v2758, %v2759
  %v2761 = vrot.slane %v2760, 1
  %v2762 = vadd.f32 %v2760, %v2761
  %v2763 = vrot.slane %v2756, 4
  %v2764 = vadd.f32 %v2756, %v2763
  %v2765 = vrot.slane %v2764, 2
  %v2766 = vadd.f32 %v2764, %v2765
  %v2767 = vrot.slane %v2766, 1
  %v2768 = vadd.f32 %v2766, %v2767
  %v2769 = vmul.f32 %v2762, %v2158
  %v2770 = vmul.f32 %v2768, %v2159
  %2773 = vst [vmem:[#allocation1] sm:$0xff] %v2769
  %2774 = vst [vmem:[#allocation1 + $0x9] sm:$0xff] %v2770
  %s2775 = scalar_lea.vmem [#allocation1], 6
  %v2776 = vld [vmem:[%s2775] ss:$9 sm:$0xff]
  %s2778 = scalar_lea.vmem [#allocation2], 6
  %2779 = vst.msk [vmem:[%s2778] ss:$8 sm:$0x3] %vm2242, %v2776
  %2780 = vst.msk [vmem:[%s2778] ss:$8 sm:$0x0] %vm2242, %v2776
  %v2781 = vrot.slane %v2709, 7
  %v2782 = vrot.slane %v2710, 7
  %v2783 = vrot.slane %v2709, 1
  %v2784 = vrot.slane %v2710, 1
  %v2785 = vperm.slane %v2112, 6
  %v2786 = vperm.slane %v2113, 6
  %v2787 = vmul.f32 %v2783, %v2785
  %v2788 = vmul.f32 %v2784, %v2786
  %v2789 = vperm.slane %v2114, 6
  %v2790 = vperm.slane %v2115, 6
  %v2791 = vmul.f32 %v2709, %v2789
  %v2792 = vmul.f32 %v2710, %v2790
  %v2793 = vadd.f32 %v2787, %v2791
  %v2794 = vadd.f32 %v2788, %v2792
  %v2795 = vperm.slane %v2116, 6
  %v2796 = vperm.slane %v2117, 6
  %v2797 = vmul.f32 %v2781, %v2795
  %v2798 = vmul.f32 %v2782, %v2796
  %v2799 = vadd.f32 %v2793, %v2797
  %v2800 = vadd.f32 %v2794, %v2798
  %v2801 = vmul.f32 %v2733, %v2753
  %v2802 = vmul.f32 %v2734, %v2754
  %v2803 = vrot.slane %v2801, 4
  %v2804 = vadd.f32 %v2801, %v2803
  %v2805 = vrot.slane %v2804, 2
  %v2806 = vadd.f32 %v2804, %v2805
  %v2807 = vrot.slane %v2806, 1
  %v2808 = vadd.f32 %v2806, %v2807
  %v2809 = vrot.slane %v2802, 4
  %v2810 = vadd.f32 %v2802, %v2809
  %v2811 = vrot.slane %v2810, 2
  %v2812 = vadd.f32 %v2810, %v2811
  %v2813 = vrot.slane %v2812, 1
  %v2814 = vadd.f32 %v2812, %v2813
  %v2815 = vmul.f32 %v2808, %v2174
  %v2816 = vmul.f32 %v2814, %v2175
  %v2817 = vsub.f32 %v2188, %v2815
  %v2818 = vsub.f32 %v2189, %v2816
  %v2819 = vperm.slane %v2817, 7
  %v2820 = vperm.slane %v2818, 7
  %v2821 = vmul.f32 %v2753, %v2819
  %v2822 = vmul.f32 %v2754, %v2820
  %v2823 = vadd.f32 %v2733, %v2821
  %v2824 = vadd.f32 %v2734, %v2822
  %v2825 = vmul.f32 %v2823, %v2799
  %v2826 = vmul.f32 %v2824, %v2800
  %v2827 = vrot.slane %v2825, 4
  %v2828 = vadd.f32 %v2825, %v2827
  %v2829 = vrot.slane %v2828, 2
  %v2830 = vadd.f32 %v2828, %v2829
  %v2831 = vrot.slane %v2830, 1
  %v2832 = vadd.f32 %v2830, %v2831
  %v2833 = vrot.slane %v2826, 4
  %v2834 = vadd.f32 %v2826, %v2833
  %v2835 = vrot.slane %v2834, 2
  %v2836 = vadd.f32 %v2834, %v2835
  %v2837 = vrot.slane %v2836, 1
  %v2838 = vadd.f32 %v2836, %v2837
  %v2839 = vmul.f32 %v2832, %v2158
  %v2840 = vmul.f32 %v2838, %v2159
  %2843 = vst [vmem:[#allocation1] sm:$0xff] %v2839
  %2844 = vst [vmem:[#allocation1 + $0x9] sm:$0xff] %v2840
  %s2845 = scalar_lea.vmem [#allocation1], 7
  %v2846 = vld [vmem:[%s2845] ss:$9 sm:$0xff]
  %s2848 = scalar_lea.vmem [#allocation2], 7
  %2849 = vst.msk [vmem:[%s2848] ss:$8 sm:$0x3] %vm2242, %v2846
  %2850 = vst.msk [vmem:[%s2848] ss:$8 sm:$0x0] %vm2242, %v2846
  %2851 = vst [vmem:[%s9] sm:$0xff] %v2823
  %2852 = vst [vmem:[%s9 + $0x8] sm:$0xff] %v2824
  %v2853 = vld [vmem:[%s6] sm:$0xf]
  %v2854 = vld [vmem:[%s6 + $0x4] sm:$0xf]
  %v2855 = vld [vmem:[%s6 + $0x8] sm:$0xf]
  %v2856 = vld [vmem:[%s6 + $0xc] sm:$0xf]
  %v2857 = vld [vmem:[%s6 + $0x10] sm:$0xf]
  %v2858 = vld [vmem:[%s6 + $0x14] sm:$0xf]
  %v2859 = vld [vmem:[%s6 + $0x18] sm:$0xf]
  %v2860 = vld [vmem:[%s6 + $0x1c] sm:$0xf]
  %v2861 = vld [vmem:[%s6 + $0x20] sm:$0xf]
  %v2862 = vld [vmem:[%s6 + $0x24] sm:$0xf]
  %v2863 = vld [vmem:[%s6 + $0x28] sm:$0xf]
  %v2864 = vld [vmem:[%s6 + $0x2c] sm:$0xf]
  %v2865 = vld [vmem:[%s6 + $0x30] sm:$0xf]
  %v2866 = vld [vmem:[%s6 + $0x34] sm:$0xf]
  %v2867 = vld [vmem:[%s6 + $0x38] sm:$0xf]
  %v2868 = vld [vmem:[%s6 + $0x3c] sm:$0xf]
  %v2869 = vld [vmem:[#allocation2] sm:$0xff]
  %v2870 = vld [vmem:[#allocation2 + $0x8] sm:$0xff]
  %v2871 = vpack.c.bf16 %v2869, %v2869
  %v2872 = vld [vmem:[%s7] sm:$0x1]
  %v2874 = vperm.slane %v2872, 0
  %v2892 = vunpack.c.l.b16 %v2853
  %v2893 = vunpack.c.l.b16 %v2854
  %v2894 = vunpack.c.l.b16 %v2855
  %v2895 = vunpack.c.l.b16 %v2856
  %v2896 = vunpack.c.l.b16 %v2857
  %v2897 = vunpack.c.l.b16 %v2858
  %v2898 = vunpack.c.l.b16 %v2859
  %v2899 = vunpack.c.l.b16 %v2860
  %v2900 = vunpack.c.l.b16 %v2861
  %v2901 = vunpack.c.l.b16 %v2862
  %v2902 = vunpack.c.l.b16 %v2863
  %v2903 = vunpack.c.l.b16 %v2864
  %v2904 = vunpack.c.l.b16 %v2865
  %v2905 = vunpack.c.l.b16 %v2866
  %v2906 = vunpack.c.l.b16 %v2867
  %v2907 = vunpack.c.l.b16 %v2868
  %v2908 = vpack.c.b16 %v2893, %v2892
  %v2909 = vpack.c.b16 %v2895, %v2894
  %v2910 = vpack.c.b16 %v2897, %v2896
  %v2911 = vpack.c.b16 %v2899, %v2898
  %v2912 = vpack.c.b16 %v2901, %v2900
  %v2913 = vpack.c.b16 %v2903, %v2902
  %v2914 = vpack.c.b16 %v2905, %v2904
  %v2915 = vpack.c.b16 %v2907, %v2906
  %2924 = vmatpush.bf16.msra.mxu0 %v2915
  %2925 = vmatpush.bf16.msra.mxu0 %v2914
  %2926 = vmatpush.bf16.msra.mxu0 %v2913
  %2927 = vmatpush.bf16.msra.mxu0 %v2912
  %2928 = vmatpush.bf16.msra.mxu0 %v2911
  %2929 = vmatpush.bf16.msra.mxu0 %v2910
  %2930 = vmatpush.bf16.msra.mxu0 %v2909
  %2931 = vmatpush.bf16.msra.mxu0 %v2908
  %2932 = vmatmul.bf16.gmra.mxu0 %v2871
  %v2933 = vpop.f32.mrf.mxu0
  %v2934 = vadd.f32 %v2874, %v2933
  %v2935 = vpop.f32.mrf.mxu0
  %2936 = vdwg.mxu0
  %2937 = vst [vmem:[%s8] sm:$0xff] %v2934
  %v2938 = vpack.c.bf16 %v2870, %v2870
  %v2939 = vld [vmem:[%s7] sm:$0x1]
  %v2941 = vperm.slane %v2939, 0
  %2943 = vmatpush.bf16.msra.mxu0 %v2915
  %2944 = vmatpush.bf16.msra.mxu0 %v2914
  %2945 = vmatpush.bf16.msra.mxu0 %v2913
  %2946 = vmatpush.bf16.msra.mxu0 %v2912
  %2947 = vmatpush.bf16.msra.mxu0 %v2911
  %2948 = vmatpush.bf16.msra.mxu0 %v2910
  %2949 = vmatpush.bf16.msra.mxu0 %v2909
  %2950 = vmatpush.bf16.msra.mxu0 %v2908
  %2951 = vmatmul.bf16.gmra.mxu0 %v2938
  %v2952 = vpop.f32.mrf.mxu0
  %v2953 = vadd.f32 %v2941, %v2952
  %v2954 = vpop.f32.mrf.mxu0
  %2955 = vdwg.mxu0
  %2956 = vst [vmem:[%s8 + $0x8] sm:$0xff] %v2953
  // Predicated region
  $region34: #{nam_turing_forward.1} parent=0 // pred_check
    _
  $region35: #{nam_turing_forward.1} parent=0 // pred_check_branch
    %2958 = sbr.rel (0) target = $region37
  $region36: #{nam_turing_forward.1} parent=0 // pred_region
    _
  $region37: #{nam_turing_forward.1} parent=0 // pred_fallthru
    _
  // Predicated region
  $region38: #{nam_turing_forward.1} parent=0 // pred_check
    _
  $region39: #{nam_turing_forward.1} parent=0 // pred_check_branch
    %2960 = sbr.rel (0) target = $region41
  $region40: #{nam_turing_forward.1} parent=0 // pred_region
    _
  $region41: #{nam_turing_forward.1} parent=0 // pred_fallthru
    _
  // Predicated region
  $region42: #{nam_turing_forward.1} parent=0 // pred_check
    _
  $region43: #{nam_turing_forward.1} parent=0 // pred_check_branch
    %2962 = sbr.rel (0) target = $region45
  $region44: #{nam_turing_forward.1} parent=0 // pred_region
    _
  $region45: #{nam_turing_forward.1} parent=0 // pred_fallthru
    _
  // Predicated region
  $region46: #{nam_turing_forward.1} parent=0 // pred_check
    _
  $region47: #{nam_turing_forward.1} parent=0 // pred_check_branch
    %2964 = sbr.rel (0) target = $region49
  $region48: #{nam_turing_forward.1} parent=0 // pred_region
    _
  $region49: #{nam_turing_forward.1} parent=0 // pred_fallthru
    _

</llo_original>
